<compile_context>
chip_gen: v5e
topology: v5e:2x2
jax: 0.10.0
libtpu: 0.0.40
codegen_flags: <defaults>
</compile_context>

<pallas_src>
import numpy as np
import jax
import jax.numpy as jnp
from jax.experimental import pallas as pl
from jax.experimental.pallas import tpu as pltpu


# ----------------------------------------------------------------------------
# Host-side weight packing: many tiny tensors -> two (rows, cols) f32 slabs,
# each segment's first row aligned to a multiple of 8 (sublane tile).
# ----------------------------------------------------------------------------
def _pack_slab(pieces):
    """pieces: list of (name, 2-D array). Returns (slab, {name: (row0, r, c)})."""
    cols = max(int(a.shape[1]) for _, a in pieces)
    offs, rows = {}, 0
    for name, a in pieces:
        r, c = int(a.shape[0]), int(a.shape[1])
        offs[name] = (rows, r, c)
        rows += ((r + 7) // 8) * 8          # keep every segment 8-row aligned
    slab = np.zeros((rows, cols), np.float32)
    for name, a in pieces:
        r0, r, c = offs[name]
        slab[r0:r0 + r, :c] = np.asarray(a, np.float32)
    return jnp.asarray(slab), offs


def pack_params(p):
    # Slab A: GRU weights + biases (all 3*hid wide). Gate order r|z|n (PyTorch).
    slab_a, offs_a = _pack_slab([
        ("e1_wih", p["e1_wih"]), ("e1_whh", p["e1_whh"]),
        ("e1_bih", p["e1_bih"]), ("e1_bhh", p["e1_bhh"]),
        ("e2_wih", p["e2_wih"]), ("e2_whh", p["e2_whh"]),
        ("e2_bih", p["e2_bih"]), ("e2_bhh", p["e2_bhh"]),
        ("d_wih", p["d_wih"]), ("d_whh", p["d_whh"]),
        ("d_bih", p["d_bih"]), ("d_bhh", p["d_bhh"]),
    ])
    # Slab B: attention / fuse / fc weights.
    slab_b, offs_b = _pack_slab([
        ("wg_ws", p["wg_ws"]), ("wg_wh", p["wg_wh"]), ("wg_b", p["wg_b"]),
        ("ug", p["ug"]), ("vg", p["vg_T"]), ("Wv", p["Wv"]),
        ("fuse_wh", p["fuse_wh"]), ("fuse_ws", p["fuse_ws"]),
        ("fuse_b", p["fuse_b"]),
        ("fc_w", p["fc_w"]), ("fc_b", p["fc_b"]),
    ])
    return slab_a, slab_b, offs_a, offs_b


# ----------------------------------------------------------------------------
# Fused kernel factory (hyperparams + slab offsets are closed over as Python
# constants so every slice / loop bound is static).
# ----------------------------------------------------------------------------
def make_stcmta_forward(hps, offs_a, offs_b):
    hid1, hid2 = hps["hid1"], hps["hid2"]
    N, GA, L, FU = hps["n_neighbors"], hps["ga"], hps["l1"], hps["fuse"]
    F = hps["n_global_feats"]

    def kernel(x0_ref, x1_ref, x2_ref, wa_ref, wb_ref, out_ref):
        f32 = jnp.float32
        B = x2_ref.shape[0]

        def rd(ref, offs, name):
            r0, r, c = offs[name]
            return ref[r0:r0 + r, 0:c]

        rdA = lambda n: rd(wa_ref, offs_a, n)
        rdB = lambda n: rd(wb_ref, offs_b, n)

        # ---- hoisted, loop-invariant weight loads (each read exactly once) --
        e1_wih, e1_whh = rdA("e1_wih"), rdA("e1_whh")
        e1_bih, e1_bhh = rdA("e1_bih"), rdA("e1_bhh")
        e2_wih, e2_whh = rdA("e2_wih"), rdA("e2_whh")
        e2_bih, e2_bhh = rdA("e2_bih"), rdA("e2_bhh")
        d_wih, d_whh = rdA("d_wih"), rdA("d_whh")
        d_bih, d_bhh = rdA("d_bih"), rdA("d_bhh")

        wg_ws, wg_wh, wg_b = rdB("wg_ws"), rdB("wg_wh"), rdB("wg_b")
        ug = rdB("ug")                                # (1, F+1)
        vg = rdB("vg")                                # (L, GA)
        wv = rdB("Wv").reshape(1, 1, GA)              # (1, 1, GA)
        fuse_wh, fuse_ws, fuse_b = rdB("fuse_wh"), rdB("fuse_ws"), rdB("fuse_b")
        fc_w, fc_b = rdB("fc_w"), rdB("fc_b")

        # ---- preload tiny sequence inputs into values (no loads in the loop)
        x1v = x1_ref[...]                             # (B, L, N)
        x2v = x2_ref[...]                             # (B, L)

        # ---- time-invariant attention term:
        #      tmat[b,n,g] = sum_l (x_m[b,l,n,:] . ug) * vg[l,g]
        ug_feat = ug[:, 0:F].reshape(1, 1, F)         # (1,1,F)
        ug_last = ug[:, F:F + 1]                      # (1,1)
        tmat = jnp.zeros((B, N, GA), f32)
        for l in range(L):
            x0_l = x0_ref[:, l, :, :]                 # (B, N, F)
            u_l = jnp.sum(x0_l * ug_feat, axis=-1) + x1v[:, l, :] * ug_last
            tmat = tmat + u_l[:, :, None] * vg[l:l + 1, :].reshape(1, 1, GA)

        def gru(gi, gh, h, H):
            # PyTorch GRU semantics, stacked gates (r|z|n) along the last dim.
            r = jax.nn.sigmoid(gi[:, 0:H] + gh[:, 0:H])
            z = jax.nn.sigmoid(gi[:, H:2 * H] + gh[:, H:2 * H])
            n = jnp.tanh(gi[:, 2 * H:3 * H] + r * gh[:, 2 * H:3 * H])
            return (1.0 - z) * n + z * h

        h1 = jnp.zeros((B, hid1), f32)
        s = jnp.zeros((B, hid2), f32)
        xt = jnp.zeros((B, N), f32)

        # ---- fully unrolled recurrence (L is small & static): gives the
        #      scheduler cross-step visibility to overlap MXU/EUP/VPU work.
        for t in range(L):
            # enc1 GRU step (input dim == 1 -> broadcast multiply, no MXU).
            x_t = x2v[:, t:t + 1]                                     # (B, 1)
            gi1 = x_t * e1_wih + e1_bih                               # (B, 3*hid1)
            gh1 = jnp.dot(h1, e1_whh, preferred_element_type=f32) + e1_bhh
            h1 = gru(gi1, gh1, h1, hid1)

            # globalAttn(s, ht[:, t, :], x_m, x1[:, t, :]); the h1 projection
            # is a separate dot so it stays off the serial s-chain.
            sh = (jnp.dot(s, wg_ws, preferred_element_type=f32)
                  + jnp.dot(h1, wg_wh, preferred_element_type=f32) + wg_b)
            a = jnp.sum(jnp.tanh(tmat + sh[:, None, :]) * wv, axis=-1)  # (B, N)
            xt = x1v[:, t, :] * a                                       # (B, N)

            # enc2 GRUCell: 2 stacked-gate dots.
            gi2 = jnp.dot(xt, e2_wih, preferred_element_type=f32) + e2_bih
            gh2 = jnp.dot(s, e2_whh, preferred_element_type=f32) + e2_bhh
            s = gru(gi2, gh2, s, hid2)

        # hf = fuse(cat(ht[:, -1, :], s))
        hf = (jnp.dot(h1, fuse_wh, preferred_element_type=f32)
              + jnp.dot(s, fuse_ws, preferred_element_type=f32) + fuse_b)

        # out = sigmoid(fc(dec(x_tilde, hf)))
        gi3 = jnp.dot(xt, d_wih, preferred_element_type=f32) + d_bih
        gh3 = jnp.dot(hf, d_whh, preferred_element_type=f32) + d_bhh
        out = gru(gi3, gh3, hf, FU)
        out_ref[...] = jax.nn.sigmoid(
            jnp.dot(out, fc_w, preferred_element_type=f32) + fc_b)

    def forward(x0, x1, x2, slab_a, slab_b):
        B = x0.shape[0]
        vmem = lambda: pl.BlockSpec(memory_space=pltpu.MemorySpace.VMEM)
        return pl.pallas_call(
            kernel,
            out_shape=jax.ShapeDtypeStruct((B, 1), jnp.float32),
            in_specs=[vmem() for _ in range(5)],
            out_specs=vmem(),
        )(x0, x1, x2, slab_a, slab_b)

    return forward


# ----------------------------------------------------------------------------
# Pure-JAX reference (mirrors the PyTorch forward semantics; unpacked params).
# ----------------------------------------------------------------------------
def reference_forward(x0, x1, x2, p, hps):
    B, L, N, F = x0.shape
    hid1, hid2, FU = hps["hid1"], hps["hid2"], hps["fuse"]

    def gru(gi, gh, h, H):
        r = jax.nn.sigmoid(gi[:, :H] + gh[:, :H])
        z = jax.nn.sigmoid(gi[:, H:2 * H] + gh[:, H:2 * H])
        n = jnp.tanh(gi[:, 2 * H:] + r * gh[:, 2 * H:])
        return (1.0 - z) * n + z * h

    # enc1 = GRU(1, hid1) over the whole sequence (as in the PyTorch forward).
    h = jnp.zeros((B, hid1), jnp.float32)
    ht = []
    for t in range(L):
        gi = x2[:, t][:, None] * p["e1_wih"] + p["e1_bih"]
        gh = h @ p["e1_whh"] + p["e1_bhh"]
        h = gru(gi, gh, h, hid1)
        ht.append(h)

    # t = vg(ug(x_m).squeeze(3).permute(0, 2, 1))
    x_m = jnp.concatenate([x0, x1[..., None]], axis=-1)       # (B, L, N, F+1)
    u = jnp.einsum("blnf,f->bln", x_m, p["ug"][0])
    tmat = jnp.einsum("bln,lg->bng", u, p["vg_T"])             # (B, N, GA)

    s = jnp.zeros((B, hid2), jnp.float32)
    xt = jnp.zeros((B, N), jnp.float32)
    for t in range(L):
        sh = s @ p["wg_ws"] + ht[t] @ p["wg_wh"] + p["wg_b"]
        a = jnp.sum(jnp.tanh(tmat + sh[:, None, :]) * p["Wv"][None, :, :], axis=-1)
        xt = x1[:, t, :] * a
        gi = xt @ p["e2_wih"] + p["e2_bih"]
        gh = s @ p["e2_whh"] + p["e2_bhh"]
        s = gru(gi, gh, s, hid2)

    hf = ht[-1] @ p["fuse_wh"] + s @ p["fuse_ws"] + p["fuse_b"]
    gi = xt @ p["d_wih"] + p["d_bih"]
    gh = hf @ p["d_whh"] + p["d_bhh"]
    out = gru(gi, gh, hf, FU)
    return jax.nn.sigmoid(out @ p["fc_w"] + p["fc_b"])


# ----------------------------------------------------------------------------
# Deterministic synthetic parameters (shapes follow the module __init__;
# GRU gate weights stored stacked as (in, 3*hid) in PyTorch gate order r,z,n).
# ----------------------------------------------------------------------------
def init_params(key, hps):
    hid1, hid2 = hps["hid1"], hps["hid2"]
    N, GA, L, FU = hps["n_neighbors"], hps["ga"], hps["l1"], hps["fuse"]
    F1 = hps["n_global_feats"] + 1

    ks = iter(jax.random.split(key, 32))
    w = lambda shape, s=0.4: (s * jax.random.normal(next(ks), shape)).astype(jnp.float32)
    b = lambda shape, s=0.1: (s * jax.random.normal(next(ks), shape)).astype(jnp.float32)

    return dict(
        # enc1 = GRU(1, hid1)
        e1_wih=w((1, 3 * hid1)), e1_whh=w((hid1, 3 * hid1)),
        e1_bih=b((1, 3 * hid1)), e1_bhh=b((1, 3 * hid1)),
        # enc2 = GRUCell(n_neighbors, hid2)
        e2_wih=w((N, 3 * hid2)), e2_whh=w((hid2, 3 * hid2)),
        e2_bih=b((1, 3 * hid2)), e2_bhh=b((1, 3 * hid2)),
        # wg = Linear(hid1+hid2, ga): split as cat(s, h) -> s-part, h-part
        wg_ws=w((hid2, GA)), wg_wh=w((hid1, GA)), wg_b=b((1, GA)),
        # ug = Linear(n_global_feats+1, 1, bias=False)
        ug=w((1, F1)),
        # vg = Linear(l1, ga, bias=False), stored transposed (L, GA)
        vg_T=w((L, GA)),
        # W = Linear(ga, 1, bias=False)
        Wv=w((1, GA)),
        # fuse = Linear(hid1+hid2, fuse): split as cat(h, s) -> h-part, s-part
        fuse_wh=w((hid1, FU)), fuse_ws=w((hid2, FU)), fuse_b=b((1, FU)),
        # dec = GRUCell(n_neighbors, fuse)
        d_wih=w((N, 3 * FU)), d_whh=w((FU, 3 * FU)),
        d_bih=b((1, 3 * FU)), d_bhh=b((1, 3 * FU)),
        # fc = Linear(fuse, 1)
        fc_w=w((FU, 1)), fc_b=b((1, 1)),
    )
    # TODO(synk): dropout / wgg / V and the getGA/getTA attention-return paths
    # are unused by the default forward and intentionally not implemented.


if __name__ == "__main__":
    hps = dict(dropout=0.1, hid1=16, hid2=16, n_neighbors=4, ga=8,
               n_global_feats=3, l1=8, ta=8, fuse=16)
    B = 2
    L, N, F = hps["l1"], hps["n_neighbors"], hps["n_global_feats"]

    key = jax.random.PRNGKey(0)
    kx0, kx1, kx2, kp = jax.random.split(key, 4)
    x0 = jax.random.normal(kx0, (B, L, N, F), dtype=jnp.float32)   # x[0]
    x1 = jax.random.normal(kx1, (B, L, N), dtype=jnp.float32)      # x[1]
    x2 = jax.random.normal(kx2, (B, L), dtype=jnp.float32)         # x[2]
    params = init_params(kp, hps)

    slab_a, slab_b, offs_a, offs_b = pack_params(params)
    forward = jax.jit(make_stcmta_forward(hps, offs_a, offs_b))

    out = jax.block_until_ready(forward(x0, x1, x2, slab_a, slab_b))
    ref = jax.block_until_ready(reference_forward(x0, x1, x2, params, hps))

    np.testing.assert_allclose(np.asarray(out), np.asarray(ref),
                               rtol=2e-2, atol=2e-2)
    assert out.shape == (B, 1)

    print("KERNEL_OK")
</pallas_src>

<mosaic_0001>
module attributes {stable_mosaic.version = 11 : i64} {
  func.func @kernel(%arg0: memref<2x8x4x3xf32, #tpu.memory_space<vmem>>, %arg1: memref<2x8x4xf32, #tpu.memory_space<vmem>>, %arg2: memref<2x8xf32, #tpu.memory_space<vmem>>, %arg3: memref<120x48xf32, #tpu.memory_space<vmem>>, %arg4: memref<128x16xf32, #tpu.memory_space<vmem>>, %arg5: memref<2x1xf32, #tpu.memory_space<vmem>>) attributes {dimension_semantics = [], scalar_prefetch = 0 : i64, scratch_operands = 0 : i64, tpu.core_type = #tpu.core_type<tc>} {
    %c0 = arith.constant 0 : index
    %c0_0 = arith.constant 0 : index
    %0 = vector.load %arg3[%c0, %c0_0] : memref<120x48xf32, #tpu.memory_space<vmem>>, vector<1x48xf32>
    %c8 = arith.constant 8 : index
    %c0_1 = arith.constant 0 : index
    %1 = vector.load %arg3[%c8, %c0_1] : memref<120x48xf32, #tpu.memory_space<vmem>>, vector<16x48xf32>
    %c24 = arith.constant 24 : index
    %c0_2 = arith.constant 0 : index
    %2 = vector.load %arg3[%c24, %c0_2] : memref<120x48xf32, #tpu.memory_space<vmem>>, vector<1x48xf32>
    %c32 = arith.constant 32 : index
    %c0_3 = arith.constant 0 : index
    %3 = vector.load %arg3[%c32, %c0_3] : memref<120x48xf32, #tpu.memory_space<vmem>>, vector<1x48xf32>
    %c40 = arith.constant 40 : index
    %c0_4 = arith.constant 0 : index
    %4 = vector.load %arg3[%c40, %c0_4] : memref<120x48xf32, #tpu.memory_space<vmem>>, vector<4x48xf32>
    %c48 = arith.constant 48 : index
    %c0_5 = arith.constant 0 : index
    %5 = vector.load %arg3[%c48, %c0_5] : memref<120x48xf32, #tpu.memory_space<vmem>>, vector<16x48xf32>
    %c64 = arith.constant 64 : index
    %c0_6 = arith.constant 0 : index
    %6 = vector.load %arg3[%c64, %c0_6] : memref<120x48xf32, #tpu.memory_space<vmem>>, vector<1x48xf32>
    %c72 = arith.constant 72 : index
    %c0_7 = arith.constant 0 : index
    %7 = vector.load %arg3[%c72, %c0_7] : memref<120x48xf32, #tpu.memory_space<vmem>>, vector<1x48xf32>
    %c80 = arith.constant 80 : index
    %c0_8 = arith.constant 0 : index
    %8 = vector.load %arg3[%c80, %c0_8] : memref<120x48xf32, #tpu.memory_space<vmem>>, vector<4x48xf32>
    %c88 = arith.constant 88 : index
    %c0_9 = arith.constant 0 : index
    %9 = vector.load %arg3[%c88, %c0_9] : memref<120x48xf32, #tpu.memory_space<vmem>>, vector<16x48xf32>
    %c104 = arith.constant 104 : index
    %c0_10 = arith.constant 0 : index
    %10 = vector.load %arg3[%c104, %c0_10] : memref<120x48xf32, #tpu.memory_space<vmem>>, vector<1x48xf32>
    %c112 = arith.constant 112 : index
    %c0_11 = arith.constant 0 : index
    %11 = vector.load %arg3[%c112, %c0_11] : memref<120x48xf32, #tpu.memory_space<vmem>>, vector<1x48xf32>
    %c0_12 = arith.constant 0 : index
    %c0_13 = arith.constant 0 : index
    %12 = vector.load %arg4[%c0_12, %c0_13] : memref<128x16xf32, #tpu.memory_space<vmem>>, vector<16x8xf32>
    %c16 = arith.constant 16 : index
    %c0_14 = arith.constant 0 : index
    %13 = vector.load %arg4[%c16, %c0_14] : memref<128x16xf32, #tpu.memory_space<vmem>>, vector<16x8xf32>
    %c32_15 = arith.constant 32 : index
    %c0_16 = arith.constant 0 : index
    %14 = vector.load %arg4[%c32_15, %c0_16] : memref<128x16xf32, #tpu.memory_space<vmem>>, vector<1x8xf32>
    %c40_17 = arith.constant 40 : index
    %c0_18 = arith.constant 0 : index
    %15 = vector.load %arg4[%c40_17, %c0_18] : memref<128x16xf32, #tpu.memory_space<vmem>>, vector<1x4xf32>
    %c48_19 = arith.constant 48 : index
    %c0_20 = arith.constant 0 : index
    %16 = vector.load %arg4[%c48_19, %c0_20] : memref<128x16xf32, #tpu.memory_space<vmem>>, vector<8x8xf32>
    %c56 = arith.constant 56 : index
    %c0_21 = arith.constant 0 : index
    %17 = vector.load %arg4[%c56, %c0_21] : memref<128x16xf32, #tpu.memory_space<vmem>>, vector<1x8xf32>
    %18 = vector.shape_cast %17 : vector<1x8xf32> to vector<1x1x8xf32>
    %c64_22 = arith.constant 64 : index
    %c0_23 = arith.constant 0 : index
    %19 = vector.load %arg4[%c64_22, %c0_23] : memref<128x16xf32, #tpu.memory_space<vmem>>, vector<16x16xf32>
    %c80_24 = arith.constant 80 : index
    %c0_25 = arith.constant 0 : index
    %20 = vector.load %arg4[%c80_24, %c0_25] : memref<128x16xf32, #tpu.memory_space<vmem>>, vector<16x16xf32>
    %c96 = arith.constant 96 : index
    %c0_26 = arith.constant 0 : index
    %21 = vector.load %arg4[%c96, %c0_26] : memref<128x16xf32, #tpu.memory_space<vmem>>, vector<1x16xf32>
    %c104_27 = arith.constant 104 : index
    %c0_28 = arith.constant 0 : index
    %22 = vector.load %arg4[%c104_27, %c0_28] : memref<128x16xf32, #tpu.memory_space<vmem>>, vector<16x1xf32>
    %c120 = arith.constant 120 : index
    %c0_29 = arith.constant 0 : index
    %23 = vector.load %arg4[%c120, %c0_29] : memref<128x16xf32, #tpu.memory_space<vmem>>, vector<1x1xf32>
    %c0_30 = arith.constant 0 : index
    %c0_31 = arith.constant 0 : index
    %c0_32 = arith.constant 0 : index
    %24 = vector.load %arg1[%c0_30, %c0_31, %c0_32] : memref<2x8x4xf32, #tpu.memory_space<vmem>>, vector<2x8x4xf32>
    %c0_33 = arith.constant 0 : index
    %c0_34 = arith.constant 0 : index
    %25 = vector.load %arg2[%c0_33, %c0_34] : memref<2x8xf32, #tpu.memory_space<vmem>>, vector<2x8xf32>
    %26 = vector.extract_strided_slice %15 {offsets = [0, 0], sizes = [1, 3], strides = [1, 1]} : vector<1x4xf32> to vector<1x3xf32>
    %27 = vector.shape_cast %26 : vector<1x3xf32> to vector<1x1x3xf32>
    %28 = vector.extract_strided_slice %15 {offsets = [0, 3], sizes = [1, 1], strides = [1, 1]} : vector<1x4xf32> to vector<1x1xf32>
    %cst = arith.constant 0.000000e+00 : f32
    %29 = vector.broadcast %cst : f32 to vector<2x4x8xf32>
    %c0_35 = arith.constant 0 : index
    %c0_36 = arith.constant 0 : index
    %c0_37 = arith.constant 0 : index
    %c0_38 = arith.constant 0 : index
    %30 = vector.load %arg0[%c0_35, %c0_36, %c0_37, %c0_38] : memref<2x8x4x3xf32, #tpu.memory_space<vmem>>, vector<2x1x4x3xf32>
    %31 = vector.shape_cast %30 : vector<2x1x4x3xf32> to vector<2x4x3xf32>
    %32 = vector.broadcast %27 : vector<1x1x3xf32> to vector<2x4x3xf32>
    %33 = arith.mulf %31, %32 : vector<2x4x3xf32>
    %cst_39 = arith.constant dense<0.000000e+00> : vector<2x4xf32>
    %34 = vector.multi_reduction <add>, %33, %cst_39 [2] : vector<2x4x3xf32> to vector<2x4xf32>
    %35 = vector.extract_strided_slice %24 {offsets = [0, 0, 0], sizes = [2, 1, 4], strides = [1, 1, 1]} : vector<2x8x4xf32> to vector<2x1x4xf32>
    %36 = vector.shape_cast %35 : vector<2x1x4xf32> to vector<2x4xf32>
    %37 = vector.broadcast %28 : vector<1x1xf32> to vector<2x4xf32>
    %38 = arith.mulf %36, %37 : vector<2x4xf32>
    %39 = arith.addf %34, %38 : vector<2x4xf32>
    %40 = vector.shape_cast %39 : vector<2x4xf32> to vector<2x4x1xf32>
    %41 = vector.extract_strided_slice %16 {offsets = [0, 0], sizes = [1, 8], strides = [1, 1]} : vector<8x8xf32> to vector<1x8xf32>
    %42 = vector.shape_cast %41 : vector<1x8xf32> to vector<1x1x8xf32>
    %43 = vector.broadcast %40 : vector<2x4x1xf32> to vector<2x4x8xf32>
    %44 = vector.broadcast %42 : vector<1x1x8xf32> to vector<2x4x8xf32>
    %45 = arith.mulf %43, %44 : vector<2x4x8xf32>
    %46 = arith.addf %29, %45 : vector<2x4x8xf32>
    %c0_40 = arith.constant 0 : index
    %c1 = arith.constant 1 : index
    %c0_41 = arith.constant 0 : index
    %c0_42 = arith.constant 0 : index
    %47 = vector.load %arg0[%c0_40, %c1, %c0_41, %c0_42] : memref<2x8x4x3xf32, #tpu.memory_space<vmem>>, vector<2x1x4x3xf32>
    %48 = vector.shape_cast %47 : vector<2x1x4x3xf32> to vector<2x4x3xf32>
    %49 = vector.broadcast %27 : vector<1x1x3xf32> to vector<2x4x3xf32>
    %50 = arith.mulf %48, %49 : vector<2x4x3xf32>
    %cst_43 = arith.constant dense<0.000000e+00> : vector<2x4xf32>
    %51 = vector.multi_reduction <add>, %50, %cst_43 [2] : vector<2x4x3xf32> to vector<2x4xf32>
    %52 = vector.extract_strided_slice %24 {offsets = [0, 1, 0], sizes = [2, 1, 4], strides = [1, 1, 1]} : vector<2x8x4xf32> to vector<2x1x4xf32>
    %53 = vector.shape_cast %52 : vector<2x1x4xf32> to vector<2x4xf32>
    %54 = vector.broadcast %28 : vector<1x1xf32> to vector<2x4xf32>
    %55 = arith.mulf %53, %54 : vector<2x4xf32>
    %56 = arith.addf %51, %55 : vector<2x4xf32>
    %57 = vector.shape_cast %56 : vector<2x4xf32> to vector<2x4x1xf32>
    %58 = vector.extract_strided_slice %16 {offsets = [1, 0], sizes = [1, 8], strides = [1, 1]} : vector<8x8xf32> to vector<1x8xf32>
    %59 = vector.shape_cast %58 : vector<1x8xf32> to vector<1x1x8xf32>
    %60 = vector.broadcast %57 : vector<2x4x1xf32> to vector<2x4x8xf32>
    %61 = vector.broadcast %59 : vector<1x1x8xf32> to vector<2x4x8xf32>
    %62 = arith.mulf %60, %61 : vector<2x4x8xf32>
    %63 = arith.addf %46, %62 : vector<2x4x8xf32>
    %c0_44 = arith.constant 0 : index
    %c2 = arith.constant 2 : index
    %c0_45 = arith.constant 0 : index
    %c0_46 = arith.constant 0 : index
    %64 = vector.load %arg0[%c0_44, %c2, %c0_45, %c0_46] : memref<2x8x4x3xf32, #tpu.memory_space<vmem>>, vector<2x1x4x3xf32>
    %65 = vector.shape_cast %64 : vector<2x1x4x3xf32> to vector<2x4x3xf32>
    %66 = vector.broadcast %27 : vector<1x1x3xf32> to vector<2x4x3xf32>
    %67 = arith.mulf %65, %66 : vector<2x4x3xf32>
    %cst_47 = arith.constant dense<0.000000e+00> : vector<2x4xf32>
    %68 = vector.multi_reduction <add>, %67, %cst_47 [2] : vector<2x4x3xf32> to vector<2x4xf32>
    %69 = vector.extract_strided_slice %24 {offsets = [0, 2, 0], sizes = [2, 1, 4], strides = [1, 1, 1]} : vector<2x8x4xf32> to vector<2x1x4xf32>
    %70 = vector.shape_cast %69 : vector<2x1x4xf32> to vector<2x4xf32>
    %71 = vector.broadcast %28 : vector<1x1xf32> to vector<2x4xf32>
    %72 = arith.mulf %70, %71 : vector<2x4xf32>
    %73 = arith.addf %68, %72 : vector<2x4xf32>
    %74 = vector.shape_cast %73 : vector<2x4xf32> to vector<2x4x1xf32>
    %75 = vector.extract_strided_slice %16 {offsets = [2, 0], sizes = [1, 8], strides = [1, 1]} : vector<8x8xf32> to vector<1x8xf32>
    %76 = vector.shape_cast %75 : vector<1x8xf32> to vector<1x1x8xf32>
    %77 = vector.broadcast %74 : vector<2x4x1xf32> to vector<2x4x8xf32>
    %78 = vector.broadcast %76 : vector<1x1x8xf32> to vector<2x4x8xf32>
    %79 = arith.mulf %77, %78 : vector<2x4x8xf32>
    %80 = arith.addf %63, %79 : vector<2x4x8xf32>
    %c0_48 = arith.constant 0 : index
    %c3 = arith.constant 3 : index
    %c0_49 = arith.constant 0 : index
    %c0_50 = arith.constant 0 : index
    %81 = vector.load %arg0[%c0_48, %c3, %c0_49, %c0_50] : memref<2x8x4x3xf32, #tpu.memory_space<vmem>>, vector<2x1x4x3xf32>
    %82 = vector.shape_cast %81 : vector<2x1x4x3xf32> to vector<2x4x3xf32>
    %83 = vector.broadcast %27 : vector<1x1x3xf32> to vector<2x4x3xf32>
    %84 = arith.mulf %82, %83 : vector<2x4x3xf32>
    %cst_51 = arith.constant dense<0.000000e+00> : vector<2x4xf32>
    %85 = vector.multi_reduction <add>, %84, %cst_51 [2] : vector<2x4x3xf32> to vector<2x4xf32>
    %86 = vector.extract_strided_slice %24 {offsets = [0, 3, 0], sizes = [2, 1, 4], strides = [1, 1, 1]} : vector<2x8x4xf32> to vector<2x1x4xf32>
    %87 = vector.shape_cast %86 : vector<2x1x4xf32> to vector<2x4xf32>
    %88 = vector.broadcast %28 : vector<1x1xf32> to vector<2x4xf32>
    %89 = arith.mulf %87, %88 : vector<2x4xf32>
    %90 = arith.addf %85, %89 : vector<2x4xf32>
    %91 = vector.shape_cast %90 : vector<2x4xf32> to vector<2x4x1xf32>
    %92 = vector.extract_strided_slice %16 {offsets = [3, 0], sizes = [1, 8], strides = [1, 1]} : vector<8x8xf32> to vector<1x8xf32>
    %93 = vector.shape_cast %92 : vector<1x8xf32> to vector<1x1x8xf32>
    %94 = vector.broadcast %91 : vector<2x4x1xf32> to vector<2x4x8xf32>
    %95 = vector.broadcast %93 : vector<1x1x8xf32> to vector<2x4x8xf32>
    %96 = arith.mulf %94, %95 : vector<2x4x8xf32>
    %97 = arith.addf %80, %96 : vector<2x4x8xf32>
    %c0_52 = arith.constant 0 : index
    %c4 = arith.constant 4 : index
    %c0_53 = arith.constant 0 : index
    %c0_54 = arith.constant 0 : index
    %98 = vector.load %arg0[%c0_52, %c4, %c0_53, %c0_54] : memref<2x8x4x3xf32, #tpu.memory_space<vmem>>, vector<2x1x4x3xf32>
    %99 = vector.shape_cast %98 : vector<2x1x4x3xf32> to vector<2x4x3xf32>
    %100 = vector.broadcast %27 : vector<1x1x3xf32> to vector<2x4x3xf32>
    %101 = arith.mulf %99, %100 : vector<2x4x3xf32>
    %cst_55 = arith.constant dense<0.000000e+00> : vector<2x4xf32>
    %102 = vector.multi_reduction <add>, %101, %cst_55 [2] : vector<2x4x3xf32> to vector<2x4xf32>
    %103 = vector.extract_strided_slice %24 {offsets = [0, 4, 0], sizes = [2, 1, 4], strides = [1, 1, 1]} : vector<2x8x4xf32> to vector<2x1x4xf32>
    %104 = vector.shape_cast %103 : vector<2x1x4xf32> to vector<2x4xf32>
    %105 = vector.broadcast %28 : vector<1x1xf32> to vector<2x4xf32>
    %106 = arith.mulf %104, %105 : vector<2x4xf32>
    %107 = arith.addf %102, %106 : vector<2x4xf32>
    %108 = vector.shape_cast %107 : vector<2x4xf32> to vector<2x4x1xf32>
    %109 = vector.extract_strided_slice %16 {offsets = [4, 0], sizes = [1, 8], strides = [1, 1]} : vector<8x8xf32> to vector<1x8xf32>
    %110 = vector.shape_cast %109 : vector<1x8xf32> to vector<1x1x8xf32>
    %111 = vector.broadcast %108 : vector<2x4x1xf32> to vector<2x4x8xf32>
    %112 = vector.broadcast %110 : vector<1x1x8xf32> to vector<2x4x8xf32>
    %113 = arith.mulf %111, %112 : vector<2x4x8xf32>
    %114 = arith.addf %97, %113 : vector<2x4x8xf32>
    %c0_56 = arith.constant 0 : index
    %c5 = arith.constant 5 : index
    %c0_57 = arith.constant 0 : index
    %c0_58 = arith.constant 0 : index
    %115 = vector.load %arg0[%c0_56, %c5, %c0_57, %c0_58] : memref<2x8x4x3xf32, #tpu.memory_space<vmem>>, vector<2x1x4x3xf32>
    %116 = vector.shape_cast %115 : vector<2x1x4x3xf32> to vector<2x4x3xf32>
    %117 = vector.broadcast %27 : vector<1x1x3xf32> to vector<2x4x3xf32>
    %118 = arith.mulf %116, %117 : vector<2x4x3xf32>
    %cst_59 = arith.constant dense<0.000000e+00> : vector<2x4xf32>
    %119 = vector.multi_reduction <add>, %118, %cst_59 [2] : vector<2x4x3xf32> to vector<2x4xf32>
    %120 = vector.extract_strided_slice %24 {offsets = [0, 5, 0], sizes = [2, 1, 4], strides = [1, 1, 1]} : vector<2x8x4xf32> to vector<2x1x4xf32>
    %121 = vector.shape_cast %120 : vector<2x1x4xf32> to vector<2x4xf32>
    %122 = vector.broadcast %28 : vector<1x1xf32> to vector<2x4xf32>
    %123 = arith.mulf %121, %122 : vector<2x4xf32>
    %124 = arith.addf %119, %123 : vector<2x4xf32>
    %125 = vector.shape_cast %124 : vector<2x4xf32> to vector<2x4x1xf32>
    %126 = vector.extract_strided_slice %16 {offsets = [5, 0], sizes = [1, 8], strides = [1, 1]} : vector<8x8xf32> to vector<1x8xf32>
    %127 = vector.shape_cast %126 : vector<1x8xf32> to vector<1x1x8xf32>
    %128 = vector.broadcast %125 : vector<2x4x1xf32> to vector<2x4x8xf32>
    %129 = vector.broadcast %127 : vector<1x1x8xf32> to vector<2x4x8xf32>
    %130 = arith.mulf %128, %129 : vector<2x4x8xf32>
    %131 = arith.addf %114, %130 : vector<2x4x8xf32>
    %c0_60 = arith.constant 0 : index
    %c6 = arith.constant 6 : index
    %c0_61 = arith.constant 0 : index
    %c0_62 = arith.constant 0 : index
    %132 = vector.load %arg0[%c0_60, %c6, %c0_61, %c0_62] : memref<2x8x4x3xf32, #tpu.memory_space<vmem>>, vector<2x1x4x3xf32>
    %133 = vector.shape_cast %132 : vector<2x1x4x3xf32> to vector<2x4x3xf32>
    %134 = vector.broadcast %27 : vector<1x1x3xf32> to vector<2x4x3xf32>
    %135 = arith.mulf %133, %134 : vector<2x4x3xf32>
    %cst_63 = arith.constant dense<0.000000e+00> : vector<2x4xf32>
    %136 = vector.multi_reduction <add>, %135, %cst_63 [2] : vector<2x4x3xf32> to vector<2x4xf32>
    %137 = vector.extract_strided_slice %24 {offsets = [0, 6, 0], sizes = [2, 1, 4], strides = [1, 1, 1]} : vector<2x8x4xf32> to vector<2x1x4xf32>
    %138 = vector.shape_cast %137 : vector<2x1x4xf32> to vector<2x4xf32>
    %139 = vector.broadcast %28 : vector<1x1xf32> to vector<2x4xf32>
    %140 = arith.mulf %138, %139 : vector<2x4xf32>
    %141 = arith.addf %136, %140 : vector<2x4xf32>
    %142 = vector.shape_cast %141 : vector<2x4xf32> to vector<2x4x1xf32>
    %143 = vector.extract_strided_slice %16 {offsets = [6, 0], sizes = [1, 8], strides = [1, 1]} : vector<8x8xf32> to vector<1x8xf32>
    %144 = vector.shape_cast %143 : vector<1x8xf32> to vector<1x1x8xf32>
    %145 = vector.broadcast %142 : vector<2x4x1xf32> to vector<2x4x8xf32>
    %146 = vector.broadcast %144 : vector<1x1x8xf32> to vector<2x4x8xf32>
    %147 = arith.mulf %145, %146 : vector<2x4x8xf32>
    %148 = arith.addf %131, %147 : vector<2x4x8xf32>
    %c0_64 = arith.constant 0 : index
    %c7 = arith.constant 7 : index
    %c0_65 = arith.constant 0 : index
    %c0_66 = arith.constant 0 : index
    %149 = vector.load %arg0[%c0_64, %c7, %c0_65, %c0_66] : memref<2x8x4x3xf32, #tpu.memory_space<vmem>>, vector<2x1x4x3xf32>
    %150 = vector.shape_cast %149 : vector<2x1x4x3xf32> to vector<2x4x3xf32>
    %151 = vector.broadcast %27 : vector<1x1x3xf32> to vector<2x4x3xf32>
    %152 = arith.mulf %150, %151 : vector<2x4x3xf32>
    %cst_67 = arith.constant dense<0.000000e+00> : vector<2x4xf32>
    %153 = vector.multi_reduction <add>, %152, %cst_67 [2] : vector<2x4x3xf32> to vector<2x4xf32>
    %154 = vector.extract_strided_slice %24 {offsets = [0, 7, 0], sizes = [2, 1, 4], strides = [1, 1, 1]} : vector<2x8x4xf32> to vector<2x1x4xf32>
    %155 = vector.shape_cast %154 : vector<2x1x4xf32> to vector<2x4xf32>
    %156 = vector.broadcast %28 : vector<1x1xf32> to vector<2x4xf32>
    %157 = arith.mulf %155, %156 : vector<2x4xf32>
    %158 = arith.addf %153, %157 : vector<2x4xf32>
    %159 = vector.shape_cast %158 : vector<2x4xf32> to vector<2x4x1xf32>
    %160 = vector.extract_strided_slice %16 {offsets = [7, 0], sizes = [1, 8], strides = [1, 1]} : vector<8x8xf32> to vector<1x8xf32>
    %161 = vector.shape_cast %160 : vector<1x8xf32> to vector<1x1x8xf32>
    %162 = vector.broadcast %159 : vector<2x4x1xf32> to vector<2x4x8xf32>
    %163 = vector.broadcast %161 : vector<1x1x8xf32> to vector<2x4x8xf32>
    %164 = arith.mulf %162, %163 : vector<2x4x8xf32>
    %165 = arith.addf %148, %164 : vector<2x4x8xf32>
    %cst_68 = arith.constant 0.000000e+00 : f32
    %166 = vector.broadcast %cst_68 : f32 to vector<2x16xf32>
    %cst_69 = arith.constant 0.000000e+00 : f32
    %167 = vector.broadcast %cst_69 : f32 to vector<2x16xf32>
    %168 = vector.extract_strided_slice %25 {offsets = [0, 0], sizes = [2, 1], strides = [1, 1]} : vector<2x8xf32> to vector<2x1xf32>
    %169 = vector.broadcast %168 : vector<2x1xf32> to vector<2x48xf32>
    %170 = vector.broadcast %0 : vector<1x48xf32> to vector<2x48xf32>
    %171 = arith.mulf %169, %170 : vector<2x48xf32>
    %172 = vector.broadcast %2 : vector<1x48xf32> to vector<2x48xf32>
    %173 = arith.addf %171, %172 : vector<2x48xf32>
    %cst_70 = arith.constant dense<0.000000e+00> : vector<2x48xf32>
    %174 = tpu.matmul %166, %1, %cst_70 {dimension_numbers = #tpu.dot_dimension_numbers<[1], [0], [0], [1], [0, 0, 1, 1], [], []>} : vector<2x16xf32>, vector<16x48xf32>, vector<2x48xf32> -> vector<2x48xf32>
    %175 = vector.broadcast %3 : vector<1x48xf32> to vector<2x48xf32>
    %176 = arith.addf %174, %175 : vector<2x48xf32>
    %177 = vector.extract_strided_slice %173 {offsets = [0, 0], sizes = [2, 16], strides = [1, 1]} : vector<2x48xf32> to vector<2x16xf32>
    %178 = vector.extract_strided_slice %176 {offsets = [0, 0], sizes = [2, 16], strides = [1, 1]} : vector<2x48xf32> to vector<2x16xf32>
    %179 = arith.addf %177, %178 : vector<2x16xf32>
    %180 = arith.negf %179 : vector<2x16xf32>
    %181 = math.exp %180 : vector<2x16xf32>
    %cst_71 = arith.constant 1.000000e+00 : f32
    %182 = vector.broadcast %cst_71 : f32 to vector<2x16xf32>
    %183 = arith.addf %182, %181 : vector<2x16xf32>
    %184 = arith.divf %182, %183 : vector<2x16xf32>
    %185 = vector.extract_strided_slice %173 {offsets = [0, 16], sizes = [2, 16], strides = [1, 1]} : vector<2x48xf32> to vector<2x16xf32>
    %186 = vector.extract_strided_slice %176 {offsets = [0, 16], sizes = [2, 16], strides = [1, 1]} : vector<2x48xf32> to vector<2x16xf32>
    %187 = arith.addf %185, %186 : vector<2x16xf32>
    %188 = arith.negf %187 : vector<2x16xf32>
    %189 = math.exp %188 : vector<2x16xf32>
    %cst_72 = arith.constant 1.000000e+00 : f32
    %190 = vector.broadcast %cst_72 : f32 to vector<2x16xf32>
    %191 = arith.addf %190, %189 : vector<2x16xf32>
    %192 = arith.divf %190, %191 : vector<2x16xf32>
    %193 = vector.extract_strided_slice %173 {offsets = [0, 32], sizes = [2, 16], strides = [1, 1]} : vector<2x48xf32> to vector<2x16xf32>
    %194 = vector.extract_strided_slice %176 {offsets = [0, 32], sizes = [2, 16], strides = [1, 1]} : vector<2x48xf32> to vector<2x16xf32>
    %195 = arith.mulf %184, %194 : vector<2x16xf32>
    %196 = arith.addf %193, %195 : vector<2x16xf32>
    %197 = math.tanh %196 : vector<2x16xf32>
    %cst_73 = arith.constant 1.000000e+00 : f32
    %198 = vector.broadcast %cst_73 : f32 to vector<2x16xf32>
    %199 = arith.subf %198, %192 : vector<2x16xf32>
    %200 = arith.mulf %199, %197 : vector<2x16xf32>
    %201 = arith.mulf %192, %166 : vector<2x16xf32>
    %202 = arith.addf %200, %201 : vector<2x16xf32>
    %cst_74 = arith.constant dense<0.000000e+00> : vector<2x8xf32>
    %203 = tpu.matmul %167, %12, %cst_74 {dimension_numbers = #tpu.dot_dimension_numbers<[1], [0], [0], [1], [0, 0, 1, 1], [], []>} : vector<2x16xf32>, vector<16x8xf32>, vector<2x8xf32> -> vector<2x8xf32>
    %cst_75 = arith.constant dense<0.000000e+00> : vector<2x8xf32>
    %204 = tpu.matmul %202, %13, %cst_75 {dimension_numbers = #tpu.dot_dimension_numbers<[1], [0], [0], [1], [0, 0, 1, 1], [], []>} : vector<2x16xf32>, vector<16x8xf32>, vector<2x8xf32> -> vector<2x8xf32>
    %205 = arith.addf %203, %204 : vector<2x8xf32>
    %206 = vector.broadcast %14 : vector<1x8xf32> to vector<2x8xf32>
    %207 = arith.addf %205, %206 : vector<2x8xf32>
    %208 = vector.shape_cast %207 : vector<2x8xf32> to vector<2x1x8xf32>
    %209 = vector.broadcast %208 : vector<2x1x8xf32> to vector<2x4x8xf32>
    %210 = arith.addf %165, %209 : vector<2x4x8xf32>
    %211 = math.tanh %210 : vector<2x4x8xf32>
    %212 = vector.broadcast %18 : vector<1x1x8xf32> to vector<2x4x8xf32>
    %213 = arith.mulf %211, %212 : vector<2x4x8xf32>
    %cst_76 = arith.constant dense<0.000000e+00> : vector<2x4xf32>
    %214 = vector.multi_reduction <add>, %213, %cst_76 [2] : vector<2x4x8xf32> to vector<2x4xf32>
    %215 = vector.extract_strided_slice %24 {offsets = [0, 0, 0], sizes = [2, 1, 4], strides = [1, 1, 1]} : vector<2x8x4xf32> to vector<2x1x4xf32>
    %216 = vector.shape_cast %215 : vector<2x1x4xf32> to vector<2x4xf32>
    %217 = arith.mulf %216, %214 : vector<2x4xf32>
    %cst_77 = arith.constant dense<0.000000e+00> : vector<2x48xf32>
    %218 = tpu.matmul %217, %4, %cst_77 {dimension_numbers = #tpu.dot_dimension_numbers<[1], [0], [0], [1], [0, 0, 1, 1], [], []>} : vector<2x4xf32>, vector<4x48xf32>, vector<2x48xf32> -> vector<2x48xf32>
    %219 = vector.broadcast %6 : vector<1x48xf32> to vector<2x48xf32>
    %220 = arith.addf %218, %219 : vector<2x48xf32>
    %cst_78 = arith.constant dense<0.000000e+00> : vector<2x48xf32>
    %221 = tpu.matmul %167, %5, %cst_78 {dimension_numbers = #tpu.dot_dimension_numbers<[1], [0], [0], [1], [0, 0, 1, 1], [], []>} : vector<2x16xf32>, vector<16x48xf32>, vector<2x48xf32> -> vector<2x48xf32>
    %222 = vector.broadcast %7 : vector<1x48xf32> to vector<2x48xf32>
    %223 = arith.addf %221, %222 : vector<2x48xf32>
    %224 = vector.extract_strided_slice %220 {offsets = [0, 0], sizes = [2, 16], strides = [1, 1]} : vector<2x48xf32> to vector<2x16xf32>
    %225 = vector.extract_strided_slice %223 {offsets = [0, 0], sizes = [2, 16], strides = [1, 1]} : vector<2x48xf32> to vector<2x16xf32>
    %226 = arith.addf %224, %225 : vector<2x16xf32>
    %227 = arith.negf %226 : vector<2x16xf32>
    %228 = math.exp %227 : vector<2x16xf32>
    %cst_79 = arith.constant 1.000000e+00 : f32
    %229 = vector.broadcast %cst_79 : f32 to vector<2x16xf32>
    %230 = arith.addf %229, %228 : vector<2x16xf32>
    %231 = arith.divf %229, %230 : vector<2x16xf32>
    %232 = vector.extract_strided_slice %220 {offsets = [0, 16], sizes = [2, 16], strides = [1, 1]} : vector<2x48xf32> to vector<2x16xf32>
    %233 = vector.extract_strided_slice %223 {offsets = [0, 16], sizes = [2, 16], strides = [1, 1]} : vector<2x48xf32> to vector<2x16xf32>
    %234 = arith.addf %232, %233 : vector<2x16xf32>
    %235 = arith.negf %234 : vector<2x16xf32>
    %236 = math.exp %235 : vector<2x16xf32>
    %cst_80 = arith.constant 1.000000e+00 : f32
    %237 = vector.broadcast %cst_80 : f32 to vector<2x16xf32>
    %238 = arith.addf %237, %236 : vector<2x16xf32>
    %239 = arith.divf %237, %238 : vector<2x16xf32>
    %240 = vector.extract_strided_slice %220 {offsets = [0, 32], sizes = [2, 16], strides = [1, 1]} : vector<2x48xf32> to vector<2x16xf32>
    %241 = vector.extract_strided_slice %223 {offsets = [0, 32], sizes = [2, 16], strides = [1, 1]} : vector<2x48xf32> to vector<2x16xf32>
    %242 = arith.mulf %231, %241 : vector<2x16xf32>
    %243 = arith.addf %240, %242 : vector<2x16xf32>
    %244 = math.tanh %243 : vector<2x16xf32>
    %cst_81 = arith.constant 1.000000e+00 : f32
    %245 = vector.broadcast %cst_81 : f32 to vector<2x16xf32>
    %246 = arith.subf %245, %239 : vector<2x16xf32>
    %247 = arith.mulf %246, %244 : vector<2x16xf32>
    %248 = arith.mulf %239, %167 : vector<2x16xf32>
    %249 = arith.addf %247, %248 : vector<2x16xf32>
    %250 = vector.extract_strided_slice %25 {offsets = [0, 1], sizes = [2, 1], strides = [1, 1]} : vector<2x8xf32> to vector<2x1xf32>
    %251 = vector.broadcast %250 : vector<2x1xf32> to vector<2x48xf32>
    %252 = vector.broadcast %0 : vector<1x48xf32> to vector<2x48xf32>
    %253 = arith.mulf %251, %252 : vector<2x48xf32>
    %254 = vector.broadcast %2 : vector<1x48xf32> to vector<2x48xf32>
    %255 = arith.addf %253, %254 : vector<2x48xf32>
    %cst_82 = arith.constant dense<0.000000e+00> : vector<2x48xf32>
    %256 = tpu.matmul %202, %1, %cst_82 {dimension_numbers = #tpu.dot_dimension_numbers<[1], [0], [0], [1], [0, 0, 1, 1], [], []>} : vector<2x16xf32>, vector<16x48xf32>, vector<2x48xf32> -> vector<2x48xf32>
    %257 = vector.broadcast %3 : vector<1x48xf32> to vector<2x48xf32>
    %258 = arith.addf %256, %257 : vector<2x48xf32>
    %259 = vector.extract_strided_slice %255 {offsets = [0, 0], sizes = [2, 16], strides = [1, 1]} : vector<2x48xf32> to vector<2x16xf32>
    %260 = vector.extract_strided_slice %258 {offsets = [0, 0], sizes = [2, 16], strides = [1, 1]} : vector<2x48xf32> to vector<2x16xf32>
    %261 = arith.addf %259, %260 : vector<2x16xf32>
    %262 = arith.negf %261 : vector<2x16xf32>
    %263 = math.exp %262 : vector<2x16xf32>
    %cst_83 = arith.constant 1.000000e+00 : f32
    %264 = vector.broadcast %cst_83 : f32 to vector<2x16xf32>
    %265 = arith.addf %264, %263 : vector<2x16xf32>
    %266 = arith.divf %264, %265 : vector<2x16xf32>
    %267 = vector.extract_strided_slice %255 {offsets = [0, 16], sizes = [2, 16], strides = [1, 1]} : vector<2x48xf32> to vector<2x16xf32>
    %268 = vector.extract_strided_slice %258 {offsets = [0, 16], sizes = [2, 16], strides = [1, 1]} : vector<2x48xf32> to vector<2x16xf32>
    %269 = arith.addf %267, %268 : vector<2x16xf32>
    %270 = arith.negf %269 : vector<2x16xf32>
    %271 = math.exp %270 : vector<2x16xf32>
    %cst_84 = arith.constant 1.000000e+00 : f32
    %272 = vector.broadcast %cst_84 : f32 to vector<2x16xf32>
    %273 = arith.addf %272, %271 : vector<2x16xf32>
    %274 = arith.divf %272, %273 : vector<2x16xf32>
    %275 = vector.extract_strided_slice %255 {offsets = [0, 32], sizes = [2, 16], strides = [1, 1]} : vector<2x48xf32> to vector<2x16xf32>
    %276 = vector.extract_strided_slice %258 {offsets = [0, 32], sizes = [2, 16], strides = [1, 1]} : vector<2x48xf32> to vector<2x16xf32>
    %277 = arith.mulf %266, %276 : vector<2x16xf32>
    %278 = arith.addf %275, %277 : vector<2x16xf32>
    %279 = math.tanh %278 : vector<2x16xf32>
    %cst_85 = arith.constant 1.000000e+00 : f32
    %280 = vector.broadcast %cst_85 : f32 to vector<2x16xf32>
    %281 = arith.subf %280, %274 : vector<2x16xf32>
    %282 = arith.mulf %281, %279 : vector<2x16xf32>
    %283 = arith.mulf %274, %202 : vector<2x16xf32>
    %284 = arith.addf %282, %283 : vector<2x16xf32>
    %cst_86 = arith.constant dense<0.000000e+00> : vector<2x8xf32>
    %285 = tpu.matmul %249, %12, %cst_86 {dimension_numbers = #tpu.dot_dimension_numbers<[1], [0], [0], [1], [0, 0, 1, 1], [], []>} : vector<2x16xf32>, vector<16x8xf32>, vector<2x8xf32> -> vector<2x8xf32>
    %cst_87 = arith.constant dense<0.000000e+00> : vector<2x8xf32>
    %286 = tpu.matmul %284, %13, %cst_87 {dimension_numbers = #tpu.dot_dimension_numbers<[1], [0], [0], [1], [0, 0, 1, 1], [], []>} : vector<2x16xf32>, vector<16x8xf32>, vector<2x8xf32> -> vector<2x8xf32>
    %287 = arith.addf %285, %286 : vector<2x8xf32>
    %288 = vector.broadcast %14 : vector<1x8xf32> to vector<2x8xf32>
    %289 = arith.addf %287, %288 : vector<2x8xf32>
    %290 = vector.shape_cast %289 : vector<2x8xf32> to vector<2x1x8xf32>
    %291 = vector.broadcast %290 : vector<2x1x8xf32> to vector<2x4x8xf32>
    %292 = arith.addf %165, %291 : vector<2x4x8xf32>
    %293 = math.tanh %292 : vector<2x4x8xf32>
    %294 = vector.broadcast %18 : vector<1x1x8xf32> to vector<2x4x8xf32>
    %295 = arith.mulf %293, %294 : vector<2x4x8xf32>
    %cst_88 = arith.constant dense<0.000000e+00> : vector<2x4xf32>
    %296 = vector.multi_reduction <add>, %295, %cst_88 [2] : vector<2x4x8xf32> to vector<2x4xf32>
    %297 = vector.extract_strided_slice %24 {offsets = [0, 1, 0], sizes = [2, 1, 4], strides = [1, 1, 1]} : vector<2x8x4xf32> to vector<2x1x4xf32>
    %298 = vector.shape_cast %297 : vector<2x1x4xf32> to vector<2x4xf32>
    %299 = arith.mulf %298, %296 : vector<2x4xf32>
    %cst_89 = arith.constant dense<0.000000e+00> : vector<2x48xf32>
    %300 = tpu.matmul %299, %4, %cst_89 {dimension_numbers = #tpu.dot_dimension_numbers<[1], [0], [0], [1], [0, 0, 1, 1], [], []>} : vector<2x4xf32>, vector<4x48xf32>, vector<2x48xf32> -> vector<2x48xf32>
    %301 = vector.broadcast %6 : vector<1x48xf32> to vector<2x48xf32>
    %302 = arith.addf %300, %301 : vector<2x48xf32>
    %cst_90 = arith.constant dense<0.000000e+00> : vector<2x48xf32>
    %303 = tpu.matmul %249, %5, %cst_90 {dimension_numbers = #tpu.dot_dimension_numbers<[1], [0], [0], [1], [0, 0, 1, 1], [], []>} : vector<2x16xf32>, vector<16x48xf32>, vector<2x48xf32> -> vector<2x48xf32>
    %304 = vector.broadcast %7 : vector<1x48xf32> to vector<2x48xf32>
    %305 = arith.addf %303, %304 : vector<2x48xf32>
    %306 = vector.extract_strided_slice %302 {offsets = [0, 0], sizes = [2, 16], strides = [1, 1]} : vector<2x48xf32> to vector<2x16xf32>
    %307 = vector.extract_strided_slice %305 {offsets = [0, 0], sizes = [2, 16], strides = [1, 1]} : vector<2x48xf32> to vector<2x16xf32>
    %308 = arith.addf %306, %307 : vector<2x16xf32>
    %309 = arith.negf %308 : vector<2x16xf32>
    %310 = math.exp %309 : vector<2x16xf32>
    %cst_91 = arith.constant 1.000000e+00 : f32
    %311 = vector.broadcast %cst_91 : f32 to vector<2x16xf32>
    %312 = arith.addf %311, %310 : vector<2x16xf32>
    %313 = arith.divf %311, %312 : vector<2x16xf32>
    %314 = vector.extract_strided_slice %302 {offsets = [0, 16], sizes = [2, 16], strides = [1, 1]} : vector<2x48xf32> to vector<2x16xf32>
    %315 = vector.extract_strided_slice %305 {offsets = [0, 16], sizes = [2, 16], strides = [1, 1]} : vector<2x48xf32> to vector<2x16xf32>
    %316 = arith.addf %314, %315 : vector<2x16xf32>
    %317 = arith.negf %316 : vector<2x16xf32>
    %318 = math.exp %317 : vector<2x16xf32>
    %cst_92 = arith.constant 1.000000e+00 : f32
    %319 = vector.broadcast %cst_92 : f32 to vector<2x16xf32>
    %320 = arith.addf %319, %318 : vector<2x16xf32>
    %321 = arith.divf %319, %320 : vector<2x16xf32>
    %322 = vector.extract_strided_slice %302 {offsets = [0, 32], sizes = [2, 16], strides = [1, 1]} : vector<2x48xf32> to vector<2x16xf32>
    %323 = vector.extract_strided_slice %305 {offsets = [0, 32], sizes = [2, 16], strides = [1, 1]} : vector<2x48xf32> to vector<2x16xf32>
    %324 = arith.mulf %313, %323 : vector<2x16xf32>
    %325 = arith.addf %322, %324 : vector<2x16xf32>
    %326 = math.tanh %325 : vector<2x16xf32>
    %cst_93 = arith.constant 1.000000e+00 : f32
    %327 = vector.broadcast %cst_93 : f32 to vector<2x16xf32>
    %328 = arith.subf %327, %321 : vector<2x16xf32>
    %329 = arith.mulf %328, %326 : vector<2x16xf32>
    %330 = arith.mulf %321, %249 : vector<2x16xf32>
    %331 = arith.addf %329, %330 : vector<2x16xf32>
    %332 = vector.extract_strided_slice %25 {offsets = [0, 2], sizes = [2, 1], strides = [1, 1]} : vector<2x8xf32> to vector<2x1xf32>
    %333 = vector.broadcast %332 : vector<2x1xf32> to vector<2x48xf32>
    %334 = vector.broadcast %0 : vector<1x48xf32> to vector<2x48xf32>
    %335 = arith.mulf %333, %334 : vector<2x48xf32>
    %336 = vector.broadcast %2 : vector<1x48xf32> to vector<2x48xf32>
    %337 = arith.addf %335, %336 : vector<2x48xf32>
    %cst_94 = arith.constant dense<0.000000e+00> : vector<2x48xf32>
    %338 = tpu.matmul %284, %1, %cst_94 {dimension_numbers = #tpu.dot_dimension_numbers<[1], [0], [0], [1], [0, 0, 1, 1], [], []>} : vector<2x16xf32>, vector<16x48xf32>, vector<2x48xf32> -> vector<2x48xf32>
    %339 = vector.broadcast %3 : vector<1x48xf32> to vector<2x48xf32>
    %340 = arith.addf %338, %339 : vector<2x48xf32>
    %341 = vector.extract_strided_slice %337 {offsets = [0, 0], sizes = [2, 16], strides = [1, 1]} : vector<2x48xf32> to vector<2x16xf32>
    %342 = vector.extract_strided_slice %340 {offsets = [0, 0], sizes = [2, 16], strides = [1, 1]} : vector<2x48xf32> to vector<2x16xf32>
    %343 = arith.addf %341, %342 : vector<2x16xf32>
    %344 = arith.negf %343 : vector<2x16xf32>
    %345 = math.exp %344 : vector<2x16xf32>
    %cst_95 = arith.constant 1.000000e+00 : f32
    %346 = vector.broadcast %cst_95 : f32 to vector<2x16xf32>
    %347 = arith.addf %346, %345 : vector<2x16xf32>
    %348 = arith.divf %346, %347 : vector<2x16xf32>
    %349 = vector.extract_strided_slice %337 {offsets = [0, 16], sizes = [2, 16], strides = [1, 1]} : vector<2x48xf32> to vector<2x16xf32>
    %350 = vector.extract_strided_slice %340 {offsets = [0, 16], sizes = [2, 16], strides = [1, 1]} : vector<2x48xf32> to vector<2x16xf32>
    %351 = arith.addf %349, %350 : vector<2x16xf32>
    %352 = arith.negf %351 : vector<2x16xf32>
    %353 = math.exp %352 : vector<2x16xf32>
    %cst_96 = arith.constant 1.000000e+00 : f32
    %354 = vector.broadcast %cst_96 : f32 to vector<2x16xf32>
    %355 = arith.addf %354, %353 : vector<2x16xf32>
    %356 = arith.divf %354, %355 : vector<2x16xf32>
    %357 = vector.extract_strided_slice %337 {offsets = [0, 32], sizes = [2, 16], strides = [1, 1]} : vector<2x48xf32> to vector<2x16xf32>
    %358 = vector.extract_strided_slice %340 {offsets = [0, 32], sizes = [2, 16], strides = [1, 1]} : vector<2x48xf32> to vector<2x16xf32>
    %359 = arith.mulf %348, %358 : vector<2x16xf32>
    %360 = arith.addf %357, %359 : vector<2x16xf32>
    %361 = math.tanh %360 : vector<2x16xf32>
    %cst_97 = arith.constant 1.000000e+00 : f32
    %362 = vector.broadcast %cst_97 : f32 to vector<2x16xf32>
    %363 = arith.subf %362, %356 : vector<2x16xf32>
    %364 = arith.mulf %363, %361 : vector<2x16xf32>
    %365 = arith.mulf %356, %284 : vector<2x16xf32>
    %366 = arith.addf %364, %365 : vector<2x16xf32>
    %cst_98 = arith.constant dense<0.000000e+00> : vector<2x8xf32>
    %367 = tpu.matmul %331, %12, %cst_98 {dimension_numbers = #tpu.dot_dimension_numbers<[1], [0], [0], [1], [0, 0, 1, 1], [], []>} : vector<2x16xf32>, vector<16x8xf32>, vector<2x8xf32> -> vector<2x8xf32>
    %cst_99 = arith.constant dense<0.000000e+00> : vector<2x8xf32>
    %368 = tpu.matmul %366, %13, %cst_99 {dimension_numbers = #tpu.dot_dimension_numbers<[1], [0], [0], [1], [0, 0, 1, 1], [], []>} : vector<2x16xf32>, vector<16x8xf32>, vector<2x8xf32> -> vector<2x8xf32>
    %369 = arith.addf %367, %368 : vector<2x8xf32>
    %370 = vector.broadcast %14 : vector<1x8xf32> to vector<2x8xf32>
    %371 = arith.addf %369, %370 : vector<2x8xf32>
    %372 = vector.shape_cast %371 : vector<2x8xf32> to vector<2x1x8xf32>
    %373 = vector.broadcast %372 : vector<2x1x8xf32> to vector<2x4x8xf32>
    %374 = arith.addf %165, %373 : vector<2x4x8xf32>
    %375 = math.tanh %374 : vector<2x4x8xf32>
    %376 = vector.broadcast %18 : vector<1x1x8xf32> to vector<2x4x8xf32>
    %377 = arith.mulf %375, %376 : vector<2x4x8xf32>
    %cst_100 = arith.constant dense<0.000000e+00> : vector<2x4xf32>
    %378 = vector.multi_reduction <add>, %377, %cst_100 [2] : vector<2x4x8xf32> to vector<2x4xf32>
    %379 = vector.extract_strided_slice %24 {offsets = [0, 2, 0], sizes = [2, 1, 4], strides = [1, 1, 1]} : vector<2x8x4xf32> to vector<2x1x4xf32>
    %380 = vector.shape_cast %379 : vector<2x1x4xf32> to vector<2x4xf32>
    %381 = arith.mulf %380, %378 : vector<2x4xf32>
    %cst_101 = arith.constant dense<0.000000e+00> : vector<2x48xf32>
    %382 = tpu.matmul %381, %4, %cst_101 {dimension_numbers = #tpu.dot_dimension_numbers<[1], [0], [0], [1], [0, 0, 1, 1], [], []>} : vector<2x4xf32>, vector<4x48xf32>, vector<2x48xf32> -> vector<2x48xf32>
    %383 = vector.broadcast %6 : vector<1x48xf32> to vector<2x48xf32>
    %384 = arith.addf %382, %383 : vector<2x48xf32>
    %cst_102 = arith.constant dense<0.000000e+00> : vector<2x48xf32>
    %385 = tpu.matmul %331, %5, %cst_102 {dimension_numbers = #tpu.dot_dimension_numbers<[1], [0], [0], [1], [0, 0, 1, 1], [], []>} : vector<2x16xf32>, vector<16x48xf32>, vector<2x48xf32> -> vector<2x48xf32>
    %386 = vector.broadcast %7 : vector<1x48xf32> to vector<2x48xf32>
    %387 = arith.addf %385, %386 : vector<2x48xf32>
    %388 = vector.extract_strided_slice %384 {offsets = [0, 0], sizes = [2, 16], strides = [1, 1]} : vector<2x48xf32> to vector<2x16xf32>
    %389 = vector.extract_strided_slice %387 {offsets = [0, 0], sizes = [2, 16], strides = [1, 1]} : vector<2x48xf32> to vector<2x16xf32>
    %390 = arith.addf %388, %389 : vector<2x16xf32>
    %391 = arith.negf %390 : vector<2x16xf32>
    %392 = math.exp %391 : vector<2x16xf32>
    %cst_103 = arith.constant 1.000000e+00 : f32
    %393 = vector.broadcast %cst_103 : f32 to vector<2x16xf32>
    %394 = arith.addf %393, %392 : vector<2x16xf32>
    %395 = arith.divf %393, %394 : vector<2x16xf32>
    %396 = vector.extract_strided_slice %384 {offsets = [0, 16], sizes = [2, 16], strides = [1, 1]} : vector<2x48xf32> to vector<2x16xf32>
    %397 = vector.extract_strided_slice %387 {offsets = [0, 16], sizes = [2, 16], strides = [1, 1]} : vector<2x48xf32> to vector<2x16xf32>
    %398 = arith.addf %396, %397 : vector<2x16xf32>
    %399 = arith.negf %398 : vector<2x16xf32>
    %400 = math.exp %399 : vector<2x16xf32>
    %cst_104 = arith.constant 1.000000e+00 : f32
    %401 = vector.broadcast %cst_104 : f32 to vector<2x16xf32>
    %402 = arith.addf %401, %400 : vector<2x16xf32>
    %403 = arith.divf %401, %402 : vector<2x16xf32>
    %404 = vector.extract_strided_slice %384 {offsets = [0, 32], sizes = [2, 16], strides = [1, 1]} : vector<2x48xf32> to vector<2x16xf32>
    %405 = vector.extract_strided_slice %387 {offsets = [0, 32], sizes = [2, 16], strides = [1, 1]} : vector<2x48xf32> to vector<2x16xf32>
    %406 = arith.mulf %395, %405 : vector<2x16xf32>
    %407 = arith.addf %404, %406 : vector<2x16xf32>
    %408 = math.tanh %407 : vector<2x16xf32>
    %cst_105 = arith.constant 1.000000e+00 : f32
    %409 = vector.broadcast %cst_105 : f32 to vector<2x16xf32>
    %410 = arith.subf %409, %403 : vector<2x16xf32>
    %411 = arith.mulf %410, %408 : vector<2x16xf32>
    %412 = arith.mulf %403, %331 : vector<2x16xf32>
    %413 = arith.addf %411, %412 : vector<2x16xf32>
    %414 = vector.extract_strided_slice %25 {offsets = [0, 3], sizes = [2, 1], strides = [1, 1]} : vector<2x8xf32> to vector<2x1xf32>
    %415 = vector.broadcast %414 : vector<2x1xf32> to vector<2x48xf32>
    %416 = vector.broadcast %0 : vector<1x48xf32> to vector<2x48xf32>
    %417 = arith.mulf %415, %416 : vector<2x48xf32>
    %418 = vector.broadcast %2 : vector<1x48xf32> to vector<2x48xf32>
    %419 = arith.addf %417, %418 : vector<2x48xf32>
    %cst_106 = arith.constant dense<0.000000e+00> : vector<2x48xf32>
    %420 = tpu.matmul %366, %1, %cst_106 {dimension_numbers = #tpu.dot_dimension_numbers<[1], [0], [0], [1], [0, 0, 1, 1], [], []>} : vector<2x16xf32>, vector<16x48xf32>, vector<2x48xf32> -> vector<2x48xf32>
    %421 = vector.broadcast %3 : vector<1x48xf32> to vector<2x48xf32>
    %422 = arith.addf %420, %421 : vector<2x48xf32>
    %423 = vector.extract_strided_slice %419 {offsets = [0, 0], sizes = [2, 16], strides = [1, 1]} : vector<2x48xf32> to vector<2x16xf32>
    %424 = vector.extract_strided_slice %422 {offsets = [0, 0], sizes = [2, 16], strides = [1, 1]} : vector<2x48xf32> to vector<2x16xf32>
    %425 = arith.addf %423, %424 : vector<2x16xf32>
    %426 = arith.negf %425 : vector<2x16xf32>
    %427 = math.exp %426 : vector<2x16xf32>
    %cst_107 = arith.constant 1.000000e+00 : f32
    %428 = vector.broadcast %cst_107 : f32 to vector<2x16xf32>
    %429 = arith.addf %428, %427 : vector<2x16xf32>
    %430 = arith.divf %428, %429 : vector<2x16xf32>
    %431 = vector.extract_strided_slice %419 {offsets = [0, 16], sizes = [2, 16], strides = [1, 1]} : vector<2x48xf32> to vector<2x16xf32>
    %432 = vector.extract_strided_slice %422 {offsets = [0, 16], sizes = [2, 16], strides = [1, 1]} : vector<2x48xf32> to vector<2x16xf32>
    %433 = arith.addf %431, %432 : vector<2x16xf32>
    %434 = arith.negf %433 : vector<2x16xf32>
    %435 = math.exp %434 : vector<2x16xf32>
    %cst_108 = arith.constant 1.000000e+00 : f32
    %436 = vector.broadcast %cst_108 : f32 to vector<2x16xf32>
    %437 = arith.addf %436, %435 : vector<2x16xf32>
    %438 = arith.divf %436, %437 : vector<2x16xf32>
    %439 = vector.extract_strided_slice %419 {offsets = [0, 32], sizes = [2, 16], strides = [1, 1]} : vector<2x48xf32> to vector<2x16xf32>
    %440 = vector.extract_strided_slice %422 {offsets = [0, 32], sizes = [2, 16], strides = [1, 1]} : vector<2x48xf32> to vector<2x16xf32>
    %441 = arith.mulf %430, %440 : vector<2x16xf32>
    %442 = arith.addf %439, %441 : vector<2x16xf32>
    %443 = math.tanh %442 : vector<2x16xf32>
    %cst_109 = arith.constant 1.000000e+00 : f32
    %444 = vector.broadcast %cst_109 : f32 to vector<2x16xf32>
    %445 = arith.subf %444, %438 : vector<2x16xf32>
    %446 = arith.mulf %445, %443 : vector<2x16xf32>
    %447 = arith.mulf %438, %366 : vector<2x16xf32>
    %448 = arith.addf %446, %447 : vector<2x16xf32>
    %cst_110 = arith.constant dense<0.000000e+00> : vector<2x8xf32>
    %449 = tpu.matmul %413, %12, %cst_110 {dimension_numbers = #tpu.dot_dimension_numbers<[1], [0], [0], [1], [0, 0, 1, 1], [], []>} : vector<2x16xf32>, vector<16x8xf32>, vector<2x8xf32> -> vector<2x8xf32>
    %cst_111 = arith.constant dense<0.000000e+00> : vector<2x8xf32>
    %450 = tpu.matmul %448, %13, %cst_111 {dimension_numbers = #tpu.dot_dimension_numbers<[1], [0], [0], [1], [0, 0, 1, 1], [], []>} : vector<2x16xf32>, vector<16x8xf32>, vector<2x8xf32> -> vector<2x8xf32>
    %451 = arith.addf %449, %450 : vector<2x8xf32>
    %452 = vector.broadcast %14 : vector<1x8xf32> to vector<2x8xf32>
    %453 = arith.addf %451, %452 : vector<2x8xf32>
    %454 = vector.shape_cast %453 : vector<2x8xf32> to vector<2x1x8xf32>
    %455 = vector.broadcast %454 : vector<2x1x8xf32> to vector<2x4x8xf32>
    %456 = arith.addf %165, %455 : vector<2x4x8xf32>
    %457 = math.tanh %456 : vector<2x4x8xf32>
    %458 = vector.broadcast %18 : vector<1x1x8xf32> to vector<2x4x8xf32>
    %459 = arith.mulf %457, %458 : vector<2x4x8xf32>
    %cst_112 = arith.constant dense<0.000000e+00> : vector<2x4xf32>
    %460 = vector.multi_reduction <add>, %459, %cst_112 [2] : vector<2x4x8xf32> to vector<2x4xf32>
    %461 = vector.extract_strided_slice %24 {offsets = [0, 3, 0], sizes = [2, 1, 4], strides = [1, 1, 1]} : vector<2x8x4xf32> to vector<2x1x4xf32>
    %462 = vector.shape_cast %461 : vector<2x1x4xf32> to vector<2x4xf32>
    %463 = arith.mulf %462, %460 : vector<2x4xf32>
    %cst_113 = arith.constant dense<0.000000e+00> : vector<2x48xf32>
    %464 = tpu.matmul %463, %4, %cst_113 {dimension_numbers = #tpu.dot_dimension_numbers<[1], [0], [0], [1], [0, 0, 1, 1], [], []>} : vector<2x4xf32>, vector<4x48xf32>, vector<2x48xf32> -> vector<2x48xf32>
    %465 = vector.broadcast %6 : vector<1x48xf32> to vector<2x48xf32>
    %466 = arith.addf %464, %465 : vector<2x48xf32>
    %cst_114 = arith.constant dense<0.000000e+00> : vector<2x48xf32>
    %467 = tpu.matmul %413, %5, %cst_114 {dimension_numbers = #tpu.dot_dimension_numbers<[1], [0], [0], [1], [0, 0, 1, 1], [], []>} : vector<2x16xf32>, vector<16x48xf32>, vector<2x48xf32> -> vector<2x48xf32>
    %468 = vector.broadcast %7 : vector<1x48xf32> to vector<2x48xf32>
    %469 = arith.addf %467, %468 : vector<2x48xf32>
    %470 = vector.extract_strided_slice %466 {offsets = [0, 0], sizes = [2, 16], strides = [1, 1]} : vector<2x48xf32> to vector<2x16xf32>
    %471 = vector.extract_strided_slice %469 {offsets = [0, 0], sizes = [2, 16], strides = [1, 1]} : vector<2x48xf32> to vector<2x16xf32>
    %472 = arith.addf %470, %471 : vector<2x16xf32>
    %473 = arith.negf %472 : vector<2x16xf32>
    %474 = math.exp %473 : vector<2x16xf32>
    %cst_115 = arith.constant 1.000000e+00 : f32
    %475 = vector.broadcast %cst_115 : f32 to vector<2x16xf32>
    %476 = arith.addf %475, %474 : vector<2x16xf32>
    %477 = arith.divf %475, %476 : vector<2x16xf32>
    %478 = vector.extract_strided_slice %466 {offsets = [0, 16], sizes = [2, 16], strides = [1, 1]} : vector<2x48xf32> to vector<2x16xf32>
    %479 = vector.extract_strided_slice %469 {offsets = [0, 16], sizes = [2, 16], strides = [1, 1]} : vector<2x48xf32> to vector<2x16xf32>
    %480 = arith.addf %478, %479 : vector<2x16xf32>
    %481 = arith.negf %480 : vector<2x16xf32>
    %482 = math.exp %481 : vector<2x16xf32>
    %cst_116 = arith.constant 1.000000e+00 : f32
    %483 = vector.broadcast %cst_116 : f32 to vector<2x16xf32>
    %484 = arith.addf %483, %482 : vector<2x16xf32>
    %485 = arith.divf %483, %484 : vector<2x16xf32>
    %486 = vector.extract_strided_slice %466 {offsets = [0, 32], sizes = [2, 16], strides = [1, 1]} : vector<2x48xf32> to vector<2x16xf32>
    %487 = vector.extract_strided_slice %469 {offsets = [0, 32], sizes = [2, 16], strides = [1, 1]} : vector<2x48xf32> to vector<2x16xf32>
    %488 = arith.mulf %477, %487 : vector<2x16xf32>
    %489 = arith.addf %486, %488 : vector<2x16xf32>
    %490 = math.tanh %489 : vector<2x16xf32>
    %cst_117 = arith.constant 1.000000e+00 : f32
    %491 = vector.broadcast %cst_117 : f32 to vector<2x16xf32>
    %492 = arith.subf %491, %485 : vector<2x16xf32>
    %493 = arith.mulf %492, %490 : vector<2x16xf32>
    %494 = arith.mulf %485, %413 : vector<2x16xf32>
    %495 = arith.addf %493, %494 : vector<2x16xf32>
    %496 = vector.extract_strided_slice %25 {offsets = [0, 4], sizes = [2, 1], strides = [1, 1]} : vector<2x8xf32> to vector<2x1xf32>
    %497 = vector.broadcast %496 : vector<2x1xf32> to vector<2x48xf32>
    %498 = vector.broadcast %0 : vector<1x48xf32> to vector<2x48xf32>
    %499 = arith.mulf %497, %498 : vector<2x48xf32>
    %500 = vector.broadcast %2 : vector<1x48xf32> to vector<2x48xf32>
    %501 = arith.addf %499, %500 : vector<2x48xf32>
    %cst_118 = arith.constant dense<0.000000e+00> : vector<2x48xf32>
    %502 = tpu.matmul %448, %1, %cst_118 {dimension_numbers = #tpu.dot_dimension_numbers<[1], [0], [0], [1], [0, 0, 1, 1], [], []>} : vector<2x16xf32>, vector<16x48xf32>, vector<2x48xf32> -> vector<2x48xf32>
    %503 = vector.broadcast %3 : vector<1x48xf32> to vector<2x48xf32>
    %504 = arith.addf %502, %503 : vector<2x48xf32>
    %505 = vector.extract_strided_slice %501 {offsets = [0, 0], sizes = [2, 16], strides = [1, 1]} : vector<2x48xf32> to vector<2x16xf32>
    %506 = vector.extract_strided_slice %504 {offsets = [0, 0], sizes = [2, 16], strides = [1, 1]} : vector<2x48xf32> to vector<2x16xf32>
    %507 = arith.addf %505, %506 : vector<2x16xf32>
    %508 = arith.negf %507 : vector<2x16xf32>
    %509 = math.exp %508 : vector<2x16xf32>
    %cst_119 = arith.constant 1.000000e+00 : f32
    %510 = vector.broadcast %cst_119 : f32 to vector<2x16xf32>
    %511 = arith.addf %510, %509 : vector<2x16xf32>
    %512 = arith.divf %510, %511 : vector<2x16xf32>
    %513 = vector.extract_strided_slice %501 {offsets = [0, 16], sizes = [2, 16], strides = [1, 1]} : vector<2x48xf32> to vector<2x16xf32>
    %514 = vector.extract_strided_slice %504 {offsets = [0, 16], sizes = [2, 16], strides = [1, 1]} : vector<2x48xf32> to vector<2x16xf32>
    %515 = arith.addf %513, %514 : vector<2x16xf32>
    %516 = arith.negf %515 : vector<2x16xf32>
    %517 = math.exp %516 : vector<2x16xf32>
    %cst_120 = arith.constant 1.000000e+00 : f32
    %518 = vector.broadcast %cst_120 : f32 to vector<2x16xf32>
    %519 = arith.addf %518, %517 : vector<2x16xf32>
    %520 = arith.divf %518, %519 : vector<2x16xf32>
    %521 = vector.extract_strided_slice %501 {offsets = [0, 32], sizes = [2, 16], strides = [1, 1]} : vector<2x48xf32> to vector<2x16xf32>
    %522 = vector.extract_strided_slice %504 {offsets = [0, 32], sizes = [2, 16], strides = [1, 1]} : vector<2x48xf32> to vector<2x16xf32>
    %523 = arith.mulf %512, %522 : vector<2x16xf32>
    %524 = arith.addf %521, %523 : vector<2x16xf32>
    %525 = math.tanh %524 : vector<2x16xf32>
    %cst_121 = arith.constant 1.000000e+00 : f32
    %526 = vector.broadcast %cst_121 : f32 to vector<2x16xf32>
    %527 = arith.subf %526, %520 : vector<2x16xf32>
    %528 = arith.mulf %527, %525 : vector<2x16xf32>
    %529 = arith.mulf %520, %448 : vector<2x16xf32>
    %530 = arith.addf %528, %529 : vector<2x16xf32>
    %cst_122 = arith.constant dense<0.000000e+00> : vector<2x8xf32>
    %531 = tpu.matmul %495, %12, %cst_122 {dimension_numbers = #tpu.dot_dimension_numbers<[1], [0], [0], [1], [0, 0, 1, 1], [], []>} : vector<2x16xf32>, vector<16x8xf32>, vector<2x8xf32> -> vector<2x8xf32>
    %cst_123 = arith.constant dense<0.000000e+00> : vector<2x8xf32>
    %532 = tpu.matmul %530, %13, %cst_123 {dimension_numbers = #tpu.dot_dimension_numbers<[1], [0], [0], [1], [0, 0, 1, 1], [], []>} : vector<2x16xf32>, vector<16x8xf32>, vector<2x8xf32> -> vector<2x8xf32>
    %533 = arith.addf %531, %532 : vector<2x8xf32>
    %534 = vector.broadcast %14 : vector<1x8xf32> to vector<2x8xf32>
    %535 = arith.addf %533, %534 : vector<2x8xf32>
    %536 = vector.shape_cast %535 : vector<2x8xf32> to vector<2x1x8xf32>
    %537 = vector.broadcast %536 : vector<2x1x8xf32> to vector<2x4x8xf32>
    %538 = arith.addf %165, %537 : vector<2x4x8xf32>
    %539 = math.tanh %538 : vector<2x4x8xf32>
    %540 = vector.broadcast %18 : vector<1x1x8xf32> to vector<2x4x8xf32>
    %541 = arith.mulf %539, %540 : vector<2x4x8xf32>
    %cst_124 = arith.constant dense<0.000000e+00> : vector<2x4xf32>
    %542 = vector.multi_reduction <add>, %541, %cst_124 [2] : vector<2x4x8xf32> to vector<2x4xf32>
    %543 = vector.extract_strided_slice %24 {offsets = [0, 4, 0], sizes = [2, 1, 4], strides = [1, 1, 1]} : vector<2x8x4xf32> to vector<2x1x4xf32>
    %544 = vector.shape_cast %543 : vector<2x1x4xf32> to vector<2x4xf32>
    %545 = arith.mulf %544, %542 : vector<2x4xf32>
    %cst_125 = arith.constant dense<0.000000e+00> : vector<2x48xf32>
    %546 = tpu.matmul %545, %4, %cst_125 {dimension_numbers = #tpu.dot_dimension_numbers<[1], [0], [0], [1], [0, 0, 1, 1], [], []>} : vector<2x4xf32>, vector<4x48xf32>, vector<2x48xf32> -> vector<2x48xf32>
    %547 = vector.broadcast %6 : vector<1x48xf32> to vector<2x48xf32>
    %548 = arith.addf %546, %547 : vector<2x48xf32>
    %cst_126 = arith.constant dense<0.000000e+00> : vector<2x48xf32>
    %549 = tpu.matmul %495, %5, %cst_126 {dimension_numbers = #tpu.dot_dimension_numbers<[1], [0], [0], [1], [0, 0, 1, 1], [], []>} : vector<2x16xf32>, vector<16x48xf32>, vector<2x48xf32> -> vector<2x48xf32>
    %550 = vector.broadcast %7 : vector<1x48xf32> to vector<2x48xf32>
    %551 = arith.addf %549, %550 : vector<2x48xf32>
    %552 = vector.extract_strided_slice %548 {offsets = [0, 0], sizes = [2, 16], strides = [1, 1]} : vector<2x48xf32> to vector<2x16xf32>
    %553 = vector.extract_strided_slice %551 {offsets = [0, 0], sizes = [2, 16], strides = [1, 1]} : vector<2x48xf32> to vector<2x16xf32>
    %554 = arith.addf %552, %553 : vector<2x16xf32>
    %555 = arith.negf %554 : vector<2x16xf32>
    %556 = math.exp %555 : vector<2x16xf32>
    %cst_127 = arith.constant 1.000000e+00 : f32
    %557 = vector.broadcast %cst_127 : f32 to vector<2x16xf32>
    %558 = arith.addf %557, %556 : vector<2x16xf32>
    %559 = arith.divf %557, %558 : vector<2x16xf32>
    %560 = vector.extract_strided_slice %548 {offsets = [0, 16], sizes = [2, 16], strides = [1, 1]} : vector<2x48xf32> to vector<2x16xf32>
    %561 = vector.extract_strided_slice %551 {offsets = [0, 16], sizes = [2, 16], strides = [1, 1]} : vector<2x48xf32> to vector<2x16xf32>
    %562 = arith.addf %560, %561 : vector<2x16xf32>
    %563 = arith.negf %562 : vector<2x16xf32>
    %564 = math.exp %563 : vector<2x16xf32>
    %cst_128 = arith.constant 1.000000e+00 : f32
    %565 = vector.broadcast %cst_128 : f32 to vector<2x16xf32>
    %566 = arith.addf %565, %564 : vector<2x16xf32>
    %567 = arith.divf %565, %566 : vector<2x16xf32>
    %568 = vector.extract_strided_slice %548 {offsets = [0, 32], sizes = [2, 16], strides = [1, 1]} : vector<2x48xf32> to vector<2x16xf32>
    %569 = vector.extract_strided_slice %551 {offsets = [0, 32], sizes = [2, 16], strides = [1, 1]} : vector<2x48xf32> to vector<2x16xf32>
    %570 = arith.mulf %559, %569 : vector<2x16xf32>
    %571 = arith.addf %568, %570 : vector<2x16xf32>
    %572 = math.tanh %571 : vector<2x16xf32>
    %cst_129 = arith.constant 1.000000e+00 : f32
    %573 = vector.broadcast %cst_129 : f32 to vector<2x16xf32>
    %574 = arith.subf %573, %567 : vector<2x16xf32>
    %575 = arith.mulf %574, %572 : vector<2x16xf32>
    %576 = arith.mulf %567, %495 : vector<2x16xf32>
    %577 = arith.addf %575, %576 : vector<2x16xf32>
    %578 = vector.extract_strided_slice %25 {offsets = [0, 5], sizes = [2, 1], strides = [1, 1]} : vector<2x8xf32> to vector<2x1xf32>
    %579 = vector.broadcast %578 : vector<2x1xf32> to vector<2x48xf32>
    %580 = vector.broadcast %0 : vector<1x48xf32> to vector<2x48xf32>
    %581 = arith.mulf %579, %580 : vector<2x48xf32>
    %582 = vector.broadcast %2 : vector<1x48xf32> to vector<2x48xf32>
    %583 = arith.addf %581, %582 : vector<2x48xf32>
    %cst_130 = arith.constant dense<0.000000e+00> : vector<2x48xf32>
    %584 = tpu.matmul %530, %1, %cst_130 {dimension_numbers = #tpu.dot_dimension_numbers<[1], [0], [0], [1], [0, 0, 1, 1], [], []>} : vector<2x16xf32>, vector<16x48xf32>, vector<2x48xf32> -> vector<2x48xf32>
    %585 = vector.broadcast %3 : vector<1x48xf32> to vector<2x48xf32>
    %586 = arith.addf %584, %585 : vector<2x48xf32>
    %587 = vector.extract_strided_slice %583 {offsets = [0, 0], sizes = [2, 16], strides = [1, 1]} : vector<2x48xf32> to vector<2x16xf32>
    %588 = vector.extract_strided_slice %586 {offsets = [0, 0], sizes = [2, 16], strides = [1, 1]} : vector<2x48xf32> to vector<2x16xf32>
    %589 = arith.addf %587, %588 : vector<2x16xf32>
    %590 = arith.negf %589 : vector<2x16xf32>
    %591 = math.exp %590 : vector<2x16xf32>
    %cst_131 = arith.constant 1.000000e+00 : f32
    %592 = vector.broadcast %cst_131 : f32 to vector<2x16xf32>
    %593 = arith.addf %592, %591 : vector<2x16xf32>
    %594 = arith.divf %592, %593 : vector<2x16xf32>
    %595 = vector.extract_strided_slice %583 {offsets = [0, 16], sizes = [2, 16], strides = [1, 1]} : vector<2x48xf32> to vector<2x16xf32>
    %596 = vector.extract_strided_slice %586 {offsets = [0, 16], sizes = [2, 16], strides = [1, 1]} : vector<2x48xf32> to vector<2x16xf32>
    %597 = arith.addf %595, %596 : vector<2x16xf32>
    %598 = arith.negf %597 : vector<2x16xf32>
    %599 = math.exp %598 : vector<2x16xf32>
    %cst_132 = arith.constant 1.000000e+00 : f32
    %600 = vector.broadcast %cst_132 : f32 to vector<2x16xf32>
    %601 = arith.addf %600, %599 : vector<2x16xf32>
    %602 = arith.divf %600, %601 : vector<2x16xf32>
    %603 = vector.extract_strided_slice %583 {offsets = [0, 32], sizes = [2, 16], strides = [1, 1]} : vector<2x48xf32> to vector<2x16xf32>
    %604 = vector.extract_strided_slice %586 {offsets = [0, 32], sizes = [2, 16], strides = [1, 1]} : vector<2x48xf32> to vector<2x16xf32>
    %605 = arith.mulf %594, %604 : vector<2x16xf32>
    %606 = arith.addf %603, %605 : vector<2x16xf32>
    %607 = math.tanh %606 : vector<2x16xf32>
    %cst_133 = arith.constant 1.000000e+00 : f32
    %608 = vector.broadcast %cst_133 : f32 to vector<2x16xf32>
    %609 = arith.subf %608, %602 : vector<2x16xf32>
    %610 = arith.mulf %609, %607 : vector<2x16xf32>
    %611 = arith.mulf %602, %530 : vector<2x16xf32>
    %612 = arith.addf %610, %611 : vector<2x16xf32>
    %cst_134 = arith.constant dense<0.000000e+00> : vector<2x8xf32>
    %613 = tpu.matmul %577, %12, %cst_134 {dimension_numbers = #tpu.dot_dimension_numbers<[1], [0], [0], [1], [0, 0, 1, 1], [], []>} : vector<2x16xf32>, vector<16x8xf32>, vector<2x8xf32> -> vector<2x8xf32>
    %cst_135 = arith.constant dense<0.000000e+00> : vector<2x8xf32>
    %614 = tpu.matmul %612, %13, %cst_135 {dimension_numbers = #tpu.dot_dimension_numbers<[1], [0], [0], [1], [0, 0, 1, 1], [], []>} : vector<2x16xf32>, vector<16x8xf32>, vector<2x8xf32> -> vector<2x8xf32>
    %615 = arith.addf %613, %614 : vector<2x8xf32>
    %616 = vector.broadcast %14 : vector<1x8xf32> to vector<2x8xf32>
    %617 = arith.addf %615, %616 : vector<2x8xf32>
    %618 = vector.shape_cast %617 : vector<2x8xf32> to vector<2x1x8xf32>
    %619 = vector.broadcast %618 : vector<2x1x8xf32> to vector<2x4x8xf32>
    %620 = arith.addf %165, %619 : vector<2x4x8xf32>
    %621 = math.tanh %620 : vector<2x4x8xf32>
    %622 = vector.broadcast %18 : vector<1x1x8xf32> to vector<2x4x8xf32>
    %623 = arith.mulf %621, %622 : vector<2x4x8xf32>
    %cst_136 = arith.constant dense<0.000000e+00> : vector<2x4xf32>
    %624 = vector.multi_reduction <add>, %623, %cst_136 [2] : vector<2x4x8xf32> to vector<2x4xf32>
    %625 = vector.extract_strided_slice %24 {offsets = [0, 5, 0], sizes = [2, 1, 4], strides = [1, 1, 1]} : vector<2x8x4xf32> to vector<2x1x4xf32>
    %626 = vector.shape_cast %625 : vector<2x1x4xf32> to vector<2x4xf32>
    %627 = arith.mulf %626, %624 : vector<2x4xf32>
    %cst_137 = arith.constant dense<0.000000e+00> : vector<2x48xf32>
    %628 = tpu.matmul %627, %4, %cst_137 {dimension_numbers = #tpu.dot_dimension_numbers<[1], [0], [0], [1], [0, 0, 1, 1], [], []>} : vector<2x4xf32>, vector<4x48xf32>, vector<2x48xf32> -> vector<2x48xf32>
    %629 = vector.broadcast %6 : vector<1x48xf32> to vector<2x48xf32>
    %630 = arith.addf %628, %629 : vector<2x48xf32>
    %cst_138 = arith.constant dense<0.000000e+00> : vector<2x48xf32>
    %631 = tpu.matmul %577, %5, %cst_138 {dimension_numbers = #tpu.dot_dimension_numbers<[1], [0], [0], [1], [0, 0, 1, 1], [], []>} : vector<2x16xf32>, vector<16x48xf32>, vector<2x48xf32> -> vector<2x48xf32>
    %632 = vector.broadcast %7 : vector<1x48xf32> to vector<2x48xf32>
    %633 = arith.addf %631, %632 : vector<2x48xf32>
    %634 = vector.extract_strided_slice %630 {offsets = [0, 0], sizes = [2, 16], strides = [1, 1]} : vector<2x48xf32> to vector<2x16xf32>
    %635 = vector.extract_strided_slice %633 {offsets = [0, 0], sizes = [2, 16], strides = [1, 1]} : vector<2x48xf32> to vector<2x16xf32>
    %636 = arith.addf %634, %635 : vector<2x16xf32>
    %637 = arith.negf %636 : vector<2x16xf32>
    %638 = math.exp %637 : vector<2x16xf32>
    %cst_139 = arith.constant 1.000000e+00 : f32
    %639 = vector.broadcast %cst_139 : f32 to vector<2x16xf32>
    %640 = arith.addf %639, %638 : vector<2x16xf32>
    %641 = arith.divf %639, %640 : vector<2x16xf32>
    %642 = vector.extract_strided_slice %630 {offsets = [0, 16], sizes = [2, 16], strides = [1, 1]} : vector<2x48xf32> to vector<2x16xf32>
    %643 = vector.extract_strided_slice %633 {offsets = [0, 16], sizes = [2, 16], strides = [1, 1]} : vector<2x48xf32> to vector<2x16xf32>
    %644 = arith.addf %642, %643 : vector<2x16xf32>
    %645 = arith.negf %644 : vector<2x16xf32>
    %646 = math.exp %645 : vector<2x16xf32>
    %cst_140 = arith.constant 1.000000e+00 : f32
    %647 = vector.broadcast %cst_140 : f32 to vector<2x16xf32>
    %648 = arith.addf %647, %646 : vector<2x16xf32>
    %649 = arith.divf %647, %648 : vector<2x16xf32>
    %650 = vector.extract_strided_slice %630 {offsets = [0, 32], sizes = [2, 16], strides = [1, 1]} : vector<2x48xf32> to vector<2x16xf32>
    %651 = vector.extract_strided_slice %633 {offsets = [0, 32], sizes = [2, 16], strides = [1, 1]} : vector<2x48xf32> to vector<2x16xf32>
    %652 = arith.mulf %641, %651 : vector<2x16xf32>
    %653 = arith.addf %650, %652 : vector<2x16xf32>
    %654 = math.tanh %653 : vector<2x16xf32>
    %cst_141 = arith.constant 1.000000e+00 : f32
    %655 = vector.broadcast %cst_141 : f32 to vector<2x16xf32>
    %656 = arith.subf %655, %649 : vector<2x16xf32>
    %657 = arith.mulf %656, %654 : vector<2x16xf32>
    %658 = arith.mulf %649, %577 : vector<2x16xf32>
    %659 = arith.addf %657, %658 : vector<2x16xf32>
    %660 = vector.extract_strided_slice %25 {offsets = [0, 6], sizes = [2, 1], strides = [1, 1]} : vector<2x8xf32> to vector<2x1xf32>
    %661 = vector.broadcast %660 : vector<2x1xf32> to vector<2x48xf32>
    %662 = vector.broadcast %0 : vector<1x48xf32> to vector<2x48xf32>
    %663 = arith.mulf %661, %662 : vector<2x48xf32>
    %664 = vector.broadcast %2 : vector<1x48xf32> to vector<2x48xf32>
    %665 = arith.addf %663, %664 : vector<2x48xf32>
    %cst_142 = arith.constant dense<0.000000e+00> : vector<2x48xf32>
    %666 = tpu.matmul %612, %1, %cst_142 {dimension_numbers = #tpu.dot_dimension_numbers<[1], [0], [0], [1], [0, 0, 1, 1], [], []>} : vector<2x16xf32>, vector<16x48xf32>, vector<2x48xf32> -> vector<2x48xf32>
    %667 = vector.broadcast %3 : vector<1x48xf32> to vector<2x48xf32>
    %668 = arith.addf %666, %667 : vector<2x48xf32>
    %669 = vector.extract_strided_slice %665 {offsets = [0, 0], sizes = [2, 16], strides = [1, 1]} : vector<2x48xf32> to vector<2x16xf32>
    %670 = vector.extract_strided_slice %668 {offsets = [0, 0], sizes = [2, 16], strides = [1, 1]} : vector<2x48xf32> to vector<2x16xf32>
    %671 = arith.addf %669, %670 : vector<2x16xf32>
    %672 = arith.negf %671 : vector<2x16xf32>
    %673 = math.exp %672 : vector<2x16xf32>
    %cst_143 = arith.constant 1.000000e+00 : f32
    %674 = vector.broadcast %cst_143 : f32 to vector<2x16xf32>
    %675 = arith.addf %674, %673 : vector<2x16xf32>
    %676 = arith.divf %674, %675 : vector<2x16xf32>
    %677 = vector.extract_strided_slice %665 {offsets = [0, 16], sizes = [2, 16], strides = [1, 1]} : vector<2x48xf32> to vector<2x16xf32>
    %678 = vector.extract_strided_slice %668 {offsets = [0, 16], sizes = [2, 16], strides = [1, 1]} : vector<2x48xf32> to vector<2x16xf32>
    %679 = arith.addf %677, %678 : vector<2x16xf32>
    %680 = arith.negf %679 : vector<2x16xf32>
    %681 = math.exp %680 : vector<2x16xf32>
    %cst_144 = arith.constant 1.000000e+00 : f32
    %682 = vector.broadcast %cst_144 : f32 to vector<2x16xf32>
    %683 = arith.addf %682, %681 : vector<2x16xf32>
    %684 = arith.divf %682, %683 : vector<2x16xf32>
    %685 = vector.extract_strided_slice %665 {offsets = [0, 32], sizes = [2, 16], strides = [1, 1]} : vector<2x48xf32> to vector<2x16xf32>
    %686 = vector.extract_strided_slice %668 {offsets = [0, 32], sizes = [2, 16], strides = [1, 1]} : vector<2x48xf32> to vector<2x16xf32>
    %687 = arith.mulf %676, %686 : vector<2x16xf32>
    %688 = arith.addf %685, %687 : vector<2x16xf32>
    %689 = math.tanh %688 : vector<2x16xf32>
    %cst_145 = arith.constant 1.000000e+00 : f32
    %690 = vector.broadcast %cst_145 : f32 to vector<2x16xf32>
    %691 = arith.subf %690, %684 : vector<2x16xf32>
    %692 = arith.mulf %691, %689 : vector<2x16xf32>
    %693 = arith.mulf %684, %612 : vector<2x16xf32>
    %694 = arith.addf %692, %693 : vector<2x16xf32>
    %cst_146 = arith.constant dense<0.000000e+00> : vector<2x8xf32>
    %695 = tpu.matmul %659, %12, %cst_146 {dimension_numbers = #tpu.dot_dimension_numbers<[1], [0], [0], [1], [0, 0, 1, 1], [], []>} : vector<2x16xf32>, vector<16x8xf32>, vector<2x8xf32> -> vector<2x8xf32>
    %cst_147 = arith.constant dense<0.000000e+00> : vector<2x8xf32>
    %696 = tpu.matmul %694, %13, %cst_147 {dimension_numbers = #tpu.dot_dimension_numbers<[1], [0], [0], [1], [0, 0, 1, 1], [], []>} : vector<2x16xf32>, vector<16x8xf32>, vector<2x8xf32> -> vector<2x8xf32>
    %697 = arith.addf %695, %696 : vector<2x8xf32>
    %698 = vector.broadcast %14 : vector<1x8xf32> to vector<2x8xf32>
    %699 = arith.addf %697, %698 : vector<2x8xf32>
    %700 = vector.shape_cast %699 : vector<2x8xf32> to vector<2x1x8xf32>
    %701 = vector.broadcast %700 : vector<2x1x8xf32> to vector<2x4x8xf32>
    %702 = arith.addf %165, %701 : vector<2x4x8xf32>
    %703 = math.tanh %702 : vector<2x4x8xf32>
    %704 = vector.broadcast %18 : vector<1x1x8xf32> to vector<2x4x8xf32>
    %705 = arith.mulf %703, %704 : vector<2x4x8xf32>
    %cst_148 = arith.constant dense<0.000000e+00> : vector<2x4xf32>
    %706 = vector.multi_reduction <add>, %705, %cst_148 [2] : vector<2x4x8xf32> to vector<2x4xf32>
    %707 = vector.extract_strided_slice %24 {offsets = [0, 6, 0], sizes = [2, 1, 4], strides = [1, 1, 1]} : vector<2x8x4xf32> to vector<2x1x4xf32>
    %708 = vector.shape_cast %707 : vector<2x1x4xf32> to vector<2x4xf32>
    %709 = arith.mulf %708, %706 : vector<2x4xf32>
    %cst_149 = arith.constant dense<0.000000e+00> : vector<2x48xf32>
    %710 = tpu.matmul %709, %4, %cst_149 {dimension_numbers = #tpu.dot_dimension_numbers<[1], [0], [0], [1], [0, 0, 1, 1], [], []>} : vector<2x4xf32>, vector<4x48xf32>, vector<2x48xf32> -> vector<2x48xf32>
    %711 = vector.broadcast %6 : vector<1x48xf32> to vector<2x48xf32>
    %712 = arith.addf %710, %711 : vector<2x48xf32>
    %cst_150 = arith.constant dense<0.000000e+00> : vector<2x48xf32>
    %713 = tpu.matmul %659, %5, %cst_150 {dimension_numbers = #tpu.dot_dimension_numbers<[1], [0], [0], [1], [0, 0, 1, 1], [], []>} : vector<2x16xf32>, vector<16x48xf32>, vector<2x48xf32> -> vector<2x48xf32>
    %714 = vector.broadcast %7 : vector<1x48xf32> to vector<2x48xf32>
    %715 = arith.addf %713, %714 : vector<2x48xf32>
    %716 = vector.extract_strided_slice %712 {offsets = [0, 0], sizes = [2, 16], strides = [1, 1]} : vector<2x48xf32> to vector<2x16xf32>
    %717 = vector.extract_strided_slice %715 {offsets = [0, 0], sizes = [2, 16], strides = [1, 1]} : vector<2x48xf32> to vector<2x16xf32>
    %718 = arith.addf %716, %717 : vector<2x16xf32>
    %719 = arith.negf %718 : vector<2x16xf32>
    %720 = math.exp %719 : vector<2x16xf32>
    %cst_151 = arith.constant 1.000000e+00 : f32
    %721 = vector.broadcast %cst_151 : f32 to vector<2x16xf32>
    %722 = arith.addf %721, %720 : vector<2x16xf32>
    %723 = arith.divf %721, %722 : vector<2x16xf32>
    %724 = vector.extract_strided_slice %712 {offsets = [0, 16], sizes = [2, 16], strides = [1, 1]} : vector<2x48xf32> to vector<2x16xf32>
    %725 = vector.extract_strided_slice %715 {offsets = [0, 16], sizes = [2, 16], strides = [1, 1]} : vector<2x48xf32> to vector<2x16xf32>
    %726 = arith.addf %724, %725 : vector<2x16xf32>
    %727 = arith.negf %726 : vector<2x16xf32>
    %728 = math.exp %727 : vector<2x16xf32>
    %cst_152 = arith.constant 1.000000e+00 : f32
    %729 = vector.broadcast %cst_152 : f32 to vector<2x16xf32>
    %730 = arith.addf %729, %728 : vector<2x16xf32>
    %731 = arith.divf %729, %730 : vector<2x16xf32>
    %732 = vector.extract_strided_slice %712 {offsets = [0, 32], sizes = [2, 16], strides = [1, 1]} : vector<2x48xf32> to vector<2x16xf32>
    %733 = vector.extract_strided_slice %715 {offsets = [0, 32], sizes = [2, 16], strides = [1, 1]} : vector<2x48xf32> to vector<2x16xf32>
    %734 = arith.mulf %723, %733 : vector<2x16xf32>
    %735 = arith.addf %732, %734 : vector<2x16xf32>
    %736 = math.tanh %735 : vector<2x16xf32>
    %cst_153 = arith.constant 1.000000e+00 : f32
    %737 = vector.broadcast %cst_153 : f32 to vector<2x16xf32>
    %738 = arith.subf %737, %731 : vector<2x16xf32>
    %739 = arith.mulf %738, %736 : vector<2x16xf32>
    %740 = arith.mulf %731, %659 : vector<2x16xf32>
    %741 = arith.addf %739, %740 : vector<2x16xf32>
    %742 = vector.extract_strided_slice %25 {offsets = [0, 7], sizes = [2, 1], strides = [1, 1]} : vector<2x8xf32> to vector<2x1xf32>
    %743 = vector.broadcast %742 : vector<2x1xf32> to vector<2x48xf32>
    %744 = vector.broadcast %0 : vector<1x48xf32> to vector<2x48xf32>
    %745 = arith.mulf %743, %744 : vector<2x48xf32>
    %746 = vector.broadcast %2 : vector<1x48xf32> to vector<2x48xf32>
    %747 = arith.addf %745, %746 : vector<2x48xf32>
    %cst_154 = arith.constant dense<0.000000e+00> : vector<2x48xf32>
    %748 = tpu.matmul %694, %1, %cst_154 {dimension_numbers = #tpu.dot_dimension_numbers<[1], [0], [0], [1], [0, 0, 1, 1], [], []>} : vector<2x16xf32>, vector<16x48xf32>, vector<2x48xf32> -> vector<2x48xf32>
    %749 = vector.broadcast %3 : vector<1x48xf32> to vector<2x48xf32>
    %750 = arith.addf %748, %749 : vector<2x48xf32>
    %751 = vector.extract_strided_slice %747 {offsets = [0, 0], sizes = [2, 16], strides = [1, 1]} : vector<2x48xf32> to vector<2x16xf32>
    %752 = vector.extract_strided_slice %750 {offsets = [0, 0], sizes = [2, 16], strides = [1, 1]} : vector<2x48xf32> to vector<2x16xf32>
    %753 = arith.addf %751, %752 : vector<2x16xf32>
    %754 = arith.negf %753 : vector<2x16xf32>
    %755 = math.exp %754 : vector<2x16xf32>
    %cst_155 = arith.constant 1.000000e+00 : f32
    %756 = vector.broadcast %cst_155 : f32 to vector<2x16xf32>
    %757 = arith.addf %756, %755 : vector<2x16xf32>
    %758 = arith.divf %756, %757 : vector<2x16xf32>
    %759 = vector.extract_strided_slice %747 {offsets = [0, 16], sizes = [2, 16], strides = [1, 1]} : vector<2x48xf32> to vector<2x16xf32>
    %760 = vector.extract_strided_slice %750 {offsets = [0, 16], sizes = [2, 16], strides = [1, 1]} : vector<2x48xf32> to vector<2x16xf32>
    %761 = arith.addf %759, %760 : vector<2x16xf32>
    %762 = arith.negf %761 : vector<2x16xf32>
    %763 = math.exp %762 : vector<2x16xf32>
    %cst_156 = arith.constant 1.000000e+00 : f32
    %764 = vector.broadcast %cst_156 : f32 to vector<2x16xf32>
    %765 = arith.addf %764, %763 : vector<2x16xf32>
    %766 = arith.divf %764, %765 : vector<2x16xf32>
    %767 = vector.extract_strided_slice %747 {offsets = [0, 32], sizes = [2, 16], strides = [1, 1]} : vector<2x48xf32> to vector<2x16xf32>
    %768 = vector.extract_strided_slice %750 {offsets = [0, 32], sizes = [2, 16], strides = [1, 1]} : vector<2x48xf32> to vector<2x16xf32>
    %769 = arith.mulf %758, %768 : vector<2x16xf32>
    %770 = arith.addf %767, %769 : vector<2x16xf32>
    %771 = math.tanh %770 : vector<2x16xf32>
    %cst_157 = arith.constant 1.000000e+00 : f32
    %772 = vector.broadcast %cst_157 : f32 to vector<2x16xf32>
    %773 = arith.subf %772, %766 : vector<2x16xf32>
    %774 = arith.mulf %773, %771 : vector<2x16xf32>
    %775 = arith.mulf %766, %694 : vector<2x16xf32>
    %776 = arith.addf %774, %775 : vector<2x16xf32>
    %cst_158 = arith.constant dense<0.000000e+00> : vector<2x8xf32>
    %777 = tpu.matmul %741, %12, %cst_158 {dimension_numbers = #tpu.dot_dimension_numbers<[1], [0], [0], [1], [0, 0, 1, 1], [], []>} : vector<2x16xf32>, vector<16x8xf32>, vector<2x8xf32> -> vector<2x8xf32>
    %cst_159 = arith.constant dense<0.000000e+00> : vector<2x8xf32>
    %778 = tpu.matmul %776, %13, %cst_159 {dimension_numbers = #tpu.dot_dimension_numbers<[1], [0], [0], [1], [0, 0, 1, 1], [], []>} : vector<2x16xf32>, vector<16x8xf32>, vector<2x8xf32> -> vector<2x8xf32>
    %779 = arith.addf %777, %778 : vector<2x8xf32>
    %780 = vector.broadcast %14 : vector<1x8xf32> to vector<2x8xf32>
    %781 = arith.addf %779, %780 : vector<2x8xf32>
    %782 = vector.shape_cast %781 : vector<2x8xf32> to vector<2x1x8xf32>
    %783 = vector.broadcast %782 : vector<2x1x8xf32> to vector<2x4x8xf32>
    %784 = arith.addf %165, %783 : vector<2x4x8xf32>
    %785 = math.tanh %784 : vector<2x4x8xf32>
    %786 = vector.broadcast %18 : vector<1x1x8xf32> to vector<2x4x8xf32>
    %787 = arith.mulf %785, %786 : vector<2x4x8xf32>
    %cst_160 = arith.constant dense<0.000000e+00> : vector<2x4xf32>
    %788 = vector.multi_reduction <add>, %787, %cst_160 [2] : vector<2x4x8xf32> to vector<2x4xf32>
    %789 = vector.extract_strided_slice %24 {offsets = [0, 7, 0], sizes = [2, 1, 4], strides = [1, 1, 1]} : vector<2x8x4xf32> to vector<2x1x4xf32>
    %790 = vector.shape_cast %789 : vector<2x1x4xf32> to vector<2x4xf32>
    %791 = arith.mulf %790, %788 : vector<2x4xf32>
    %cst_161 = arith.constant dense<0.000000e+00> : vector<2x48xf32>
    %792 = tpu.matmul %791, %4, %cst_161 {dimension_numbers = #tpu.dot_dimension_numbers<[1], [0], [0], [1], [0, 0, 1, 1], [], []>} : vector<2x4xf32>, vector<4x48xf32>, vector<2x48xf32> -> vector<2x48xf32>
    %793 = vector.broadcast %6 : vector<1x48xf32> to vector<2x48xf32>
    %794 = arith.addf %792, %793 : vector<2x48xf32>
    %cst_162 = arith.constant dense<0.000000e+00> : vector<2x48xf32>
    %795 = tpu.matmul %741, %5, %cst_162 {dimension_numbers = #tpu.dot_dimension_numbers<[1], [0], [0], [1], [0, 0, 1, 1], [], []>} : vector<2x16xf32>, vector<16x48xf32>, vector<2x48xf32> -> vector<2x48xf32>
    %796 = vector.broadcast %7 : vector<1x48xf32> to vector<2x48xf32>
    %797 = arith.addf %795, %796 : vector<2x48xf32>
    %798 = vector.extract_strided_slice %794 {offsets = [0, 0], sizes = [2, 16], strides = [1, 1]} : vector<2x48xf32> to vector<2x16xf32>
    %799 = vector.extract_strided_slice %797 {offsets = [0, 0], sizes = [2, 16], strides = [1, 1]} : vector<2x48xf32> to vector<2x16xf32>
    %800 = arith.addf %798, %799 : vector<2x16xf32>
    %801 = arith.negf %800 : vector<2x16xf32>
    %802 = math.exp %801 : vector<2x16xf32>
    %cst_163 = arith.constant 1.000000e+00 : f32
    %803 = vector.broadcast %cst_163 : f32 to vector<2x16xf32>
    %804 = arith.addf %803, %802 : vector<2x16xf32>
    %805 = arith.divf %803, %804 : vector<2x16xf32>
    %806 = vector.extract_strided_slice %794 {offsets = [0, 16], sizes = [2, 16], strides = [1, 1]} : vector<2x48xf32> to vector<2x16xf32>
    %807 = vector.extract_strided_slice %797 {offsets = [0, 16], sizes = [2, 16], strides = [1, 1]} : vector<2x48xf32> to vector<2x16xf32>
    %808 = arith.addf %806, %807 : vector<2x16xf32>
    %809 = arith.negf %808 : vector<2x16xf32>
    %810 = math.exp %809 : vector<2x16xf32>
    %cst_164 = arith.constant 1.000000e+00 : f32
    %811 = vector.broadcast %cst_164 : f32 to vector<2x16xf32>
    %812 = arith.addf %811, %810 : vector<2x16xf32>
    %813 = arith.divf %811, %812 : vector<2x16xf32>
    %814 = vector.extract_strided_slice %794 {offsets = [0, 32], sizes = [2, 16], strides = [1, 1]} : vector<2x48xf32> to vector<2x16xf32>
    %815 = vector.extract_strided_slice %797 {offsets = [0, 32], sizes = [2, 16], strides = [1, 1]} : vector<2x48xf32> to vector<2x16xf32>
    %816 = arith.mulf %805, %815 : vector<2x16xf32>
    %817 = arith.addf %814, %816 : vector<2x16xf32>
    %818 = math.tanh %817 : vector<2x16xf32>
    %cst_165 = arith.constant 1.000000e+00 : f32
    %819 = vector.broadcast %cst_165 : f32 to vector<2x16xf32>
    %820 = arith.subf %819, %813 : vector<2x16xf32>
    %821 = arith.mulf %820, %818 : vector<2x16xf32>
    %822 = arith.mulf %813, %741 : vector<2x16xf32>
    %823 = arith.addf %821, %822 : vector<2x16xf32>
    %cst_166 = arith.constant dense<0.000000e+00> : vector<2x16xf32>
    %824 = tpu.matmul %776, %19, %cst_166 {dimension_numbers = #tpu.dot_dimension_numbers<[1], [0], [0], [1], [0, 0, 1, 1], [], []>} : vector<2x16xf32>, vector<16x16xf32>, vector<2x16xf32> -> vector<2x16xf32>
    %cst_167 = arith.constant dense<0.000000e+00> : vector<2x16xf32>
    %825 = tpu.matmul %823, %20, %cst_167 {dimension_numbers = #tpu.dot_dimension_numbers<[1], [0], [0], [1], [0, 0, 1, 1], [], []>} : vector<2x16xf32>, vector<16x16xf32>, vector<2x16xf32> -> vector<2x16xf32>
    %826 = arith.addf %824, %825 : vector<2x16xf32>
    %827 = vector.broadcast %21 : vector<1x16xf32> to vector<2x16xf32>
    %828 = arith.addf %826, %827 : vector<2x16xf32>
    %cst_168 = arith.constant dense<0.000000e+00> : vector<2x48xf32>
    %829 = tpu.matmul %791, %8, %cst_168 {dimension_numbers = #tpu.dot_dimension_numbers<[1], [0], [0], [1], [0, 0, 1, 1], [], []>} : vector<2x4xf32>, vector<4x48xf32>, vector<2x48xf32> -> vector<2x48xf32>
    %830 = vector.broadcast %10 : vector<1x48xf32> to vector<2x48xf32>
    %831 = arith.addf %829, %830 : vector<2x48xf32>
    %cst_169 = arith.constant dense<0.000000e+00> : vector<2x48xf32>
    %832 = tpu.matmul %828, %9, %cst_169 {dimension_numbers = #tpu.dot_dimension_numbers<[1], [0], [0], [1], [0, 0, 1, 1], [], []>} : vector<2x16xf32>, vector<16x48xf32>, vector<2x48xf32> -> vector<2x48xf32>
    %833 = vector.broadcast %11 : vector<1x48xf32> to vector<2x48xf32>
    %834 = arith.addf %832, %833 : vector<2x48xf32>
    %835 = vector.extract_strided_slice %831 {offsets = [0, 0], sizes = [2, 16], strides = [1, 1]} : vector<2x48xf32> to vector<2x16xf32>
    %836 = vector.extract_strided_slice %834 {offsets = [0, 0], sizes = [2, 16], strides = [1, 1]} : vector<2x48xf32> to vector<2x16xf32>
    %837 = arith.addf %835, %836 : vector<2x16xf32>
    %838 = arith.negf %837 : vector<2x16xf32>
    %839 = math.exp %838 : vector<2x16xf32>
    %cst_170 = arith.constant 1.000000e+00 : f32
    %840 = vector.broadcast %cst_170 : f32 to vector<2x16xf32>
    %841 = arith.addf %840, %839 : vector<2x16xf32>
    %842 = arith.divf %840, %841 : vector<2x16xf32>
    %843 = vector.extract_strided_slice %831 {offsets = [0, 16], sizes = [2, 16], strides = [1, 1]} : vector<2x48xf32> to vector<2x16xf32>
    %844 = vector.extract_strided_slice %834 {offsets = [0, 16], sizes = [2, 16], strides = [1, 1]} : vector<2x48xf32> to vector<2x16xf32>
    %845 = arith.addf %843, %844 : vector<2x16xf32>
    %846 = arith.negf %845 : vector<2x16xf32>
    %847 = math.exp %846 : vector<2x16xf32>
    %cst_171 = arith.constant 1.000000e+00 : f32
    %848 = vector.broadcast %cst_171 : f32 to vector<2x16xf32>
    %849 = arith.addf %848, %847 : vector<2x16xf32>
    %850 = arith.divf %848, %849 : vector<2x16xf32>
    %851 = vector.extract_strided_slice %831 {offsets = [0, 32], sizes = [2, 16], strides = [1, 1]} : vector<2x48xf32> to vector<2x16xf32>
    %852 = vector.extract_strided_slice %834 {offsets = [0, 32], sizes = [2, 16], strides = [1, 1]} : vector<2x48xf32> to vector<2x16xf32>
    %853 = arith.mulf %842, %852 : vector<2x16xf32>
    %854 = arith.addf %851, %853 : vector<2x16xf32>
    %855 = math.tanh %854 : vector<2x16xf32>
    %cst_172 = arith.constant 1.000000e+00 : f32
    %856 = vector.broadcast %cst_172 : f32 to vector<2x16xf32>
    %857 = arith.subf %856, %850 : vector<2x16xf32>
    %858 = arith.mulf %857, %855 : vector<2x16xf32>
    %859 = arith.mulf %850, %828 : vector<2x16xf32>
    %860 = arith.addf %858, %859 : vector<2x16xf32>
    %cst_173 = arith.constant dense<0.000000e+00> : vector<2x1xf32>
    %861 = tpu.matmul %860, %22, %cst_173 {dimension_numbers = #tpu.dot_dimension_numbers<[1], [0], [0], [1], [0, 0, 1, 1], [], []>} : vector<2x16xf32>, vector<16x1xf32>, vector<2x1xf32> -> vector<2x1xf32>
    %862 = vector.broadcast %23 : vector<1x1xf32> to vector<2x1xf32>
    %863 = arith.addf %861, %862 : vector<2x1xf32>
    %864 = arith.negf %863 : vector<2x1xf32>
    %865 = math.exp %864 : vector<2x1xf32>
    %cst_174 = arith.constant 1.000000e+00 : f32
    %866 = vector.broadcast %cst_174 : f32 to vector<2x1xf32>
    %867 = arith.addf %866, %865 : vector<2x1xf32>
    %868 = arith.divf %866, %867 : vector<2x1xf32>
    %c0_175 = arith.constant 0 : index
    %c0_176 = arith.constant 0 : index
    %869 = vector.load %arg5[%c0_175, %c0_176] : memref<2x1xf32, #tpu.memory_space<vmem>>, vector<2x1xf32>
    tpu.vector_store %arg5[%c0_175, %c0_176], %868 {strides = array<i32>} : memref<2x1xf32, #tpu.memory_space<vmem>>, vector<2x1xf32>,
    return
  }
}

</mosaic_0001>

<llo_original>
// kernel: forward.1
$region0: #{forward.1}
  #allocation0 [shape = 'u32[]', space=smem, size = 0x4, offset = 0x4, fixed_abs, tag = 'smem constant byte address 0x4 - core index']
  #allocation1 [shape = 'u32[72,128]{1,0:T(1,128)}', space=vmem, size = 0x9000, scoped, tag = 'internal scratch']
  %s0 = inlined_call_operand.vmem [shape: f32[2,8,4,3], index: 0, kind: input, shape index: {}]
  %s1 = inlined_call_operand.vmem [shape: f32[2,8,4], index: 1, kind: input, shape index: {}]
  %s2 = inlined_call_operand.vmem [shape: f32[2,8], index: 2, kind: input, shape index: {}]
  %s3 = inlined_call_operand.vmem [shape: f32[120,48], index: 3, kind: input, shape index: {}]
  %s4 = inlined_call_operand.vmem [shape: f32[128,16], index: 4, kind: input, shape index: {}]
  %s5 = inlined_call_operand.vmem [shape: f32[2,1], index: 5, kind: output, shape index: {}]
  %s6 = sld [smem:[#allocation0]]
  $region30: #{forward.1} parent=0
    _
  %s8 = ssub.s32 1, %s6
  %s9 = scalar_select 0, %s8, %s6
  // Predicated region
  $region2: #{forward.1} parent=0 // pred_check
    _
  $region3: #{forward.1} parent=0 // pred_check_branch
    %11 = sbr.rel (0) target = $region5
  $region4: #{forward.1} parent=0 // pred_region
    _
  $region5: #{forward.1} parent=0 // pred_fallthru
    _
  // Predicated region
  $region6: #{forward.1} parent=0 // pred_check
    _
  $region7: #{forward.1} parent=0 // pred_check_branch
    %13 = sbr.rel (0) target = $region9
  $region8: #{forward.1} parent=0 // pred_region
    _
  $region9: #{forward.1} parent=0 // pred_fallthru
    _
  // Predicated region
  $region10: #{forward.1} parent=0 // pred_check
    _
  $region11: #{forward.1} parent=0 // pred_check_branch
    %15 = sbr.rel (0) target = $region13
  $region12: #{forward.1} parent=0 // pred_region
    _
  $region13: #{forward.1} parent=0 // pred_fallthru
    _
  // Predicated region
  $region14: #{forward.1} parent=0 // pred_check
    _
  $region15: #{forward.1} parent=0 // pred_check_branch
    %17 = sbr.rel (0) target = $region17
  $region16: #{forward.1} parent=0 // pred_region
    _
  $region17: #{forward.1} parent=0 // pred_fallthru
    _
  // Predicated region
  $region18: #{forward.1} parent=0 // pred_check
    _
  $region19: #{forward.1} parent=0 // pred_check_branch
    %19 = sbr.rel (0) target = $region21
  $region20: #{forward.1} parent=0 // pred_region
    _
  $region21: #{forward.1} parent=0 // pred_fallthru
    _
  %v20 = vld [vmem:[%s3] sm:$0x1]
  %v21 = vld [vmem:[%s3 + $0x8] sm:$0xff]
  %v22 = vld [vmem:[%s3 + $0x10] sm:$0xff]
  %v23 = vld [vmem:[%s3 + $0x18] sm:$0x1]
  %v24 = vld [vmem:[%s3 + $0x20] sm:$0x1]
  %v25 = vld [vmem:[%s3 + $0x28] sm:$0xf]
  %v26 = vld [vmem:[%s3 + $0x30] sm:$0xff]
  %v27 = vld [vmem:[%s3 + $0x38] sm:$0xff]
  %v28 = vld [vmem:[%s3 + $0x40] sm:$0x1]
  %v29 = vld [vmem:[%s3 + $0x48] sm:$0x1]
  %v30 = vld [vmem:[%s3 + $0x50] sm:$0xf]
  %v31 = vld [vmem:[%s3 + $0x58] sm:$0xff]
  %v32 = vld [vmem:[%s3 + $0x60] sm:$0xff]
  %v33 = vld [vmem:[%s3 + $0x68] sm:$0x1]
  %v34 = vld [vmem:[%s3 + $0x70] sm:$0x1]
  %v35 = vld [vmem:[%s4] sm:$0xff]
  %v36 = vld [vmem:[%s4 + $0x8] sm:$0xff]
  %v37 = vld [vmem:[%s4 + $0x10] sm:$0xff]
  %v38 = vld [vmem:[%s4 + $0x18] sm:$0xff]
  %v39 = vld [vmem:[%s4 + $0x20] sm:$0x1]
  %v40 = vld [vmem:[%s4 + $0x28] sm:$0x1]
  %v41 = vld [vmem:[%s4 + $0x30] sm:$0xff]
  %v42 = vld [vmem:[%s4 + $0x38] sm:$0x1]
  %v43 = vld [vmem:[%s4 + $0x40] sm:$0xff]
  %v44 = vld [vmem:[%s4 + $0x48] sm:$0xff]
  %v45 = vld [vmem:[%s4 + $0x50] sm:$0xff]
  %v46 = vld [vmem:[%s4 + $0x58] sm:$0xff]
  %v47 = vld [vmem:[%s4 + $0x60] sm:$0x1]
  %v48 = vld [vmem:[%s4 + $0x68] sm:$0xff]
  %v49 = vld [vmem:[%s4 + $0x70] sm:$0xff]
  %v50 = vld [vmem:[%s4 + $0x78] sm:$0x1]
  %v51 = vld [vmem:[%s1] sm:$0xff]
  %v52 = vld [vmem:[%s1 + $0x8] sm:$0xff]
  %v53 = vld [vmem:[%s2] sm:$0x3]
  %v54 = vld [vmem:[%s0] sm:$0xf]
  %v55 = vld [vmem:[%s0 + $0x20] sm:$0xf]
  %v56 = vperm.slane %v40, 0
  %v57 = vmul.f32 %v54, %v56
  %v58 = vmul.f32 %v55, %v56
  %vm59 = vcmask 19456
  %v60 = vsel %vm59, %v57, 0.0
  %61 = vadd.xlane.f32.xlu0 %v60
  %v62 = vpop.xlane.xlu0 %61
  %v63 = vsel %vm59, %v58, 0.0
  %64 = vadd.xlane.f32.xlu0 %v63
  %v65 = vpop.xlane.xlu0 %64
  %67 = vrot.lane.b32.xlu0 %v40, 125
  %v68 = vpop.permute.xlu0 %67
  %s69 = vtos %v68
  %v70 = vstv %s69
  %v72 = vmul.f32 %v51, %v70
  %v73 = vmul.f32 %v52, %v70
  %v76 = vperm.slane %v72, 0
  %v77 = vlaneseq
  %v78 = vshrl.u32 %v77, 7
  %80 = vset.pattern.permute.xlu0 %v78
  %81 = vperm.xlu0 %80, %v76
  %v82 = vpop.permute.xlu0 %81
  %v83 = vperm.slane %v73, 0
  %v84 = vlaneseq
  %v85 = vshrl.u32 %v84, 7
  %87 = vset.pattern.permute.xlu0 %v85
  %88 = vperm.xlu0 %87, %v83
  %v89 = vpop.permute.xlu0 %88
  %v92 = vadd.f32 %v62, %v82
  %v93 = vadd.f32 %v65, %v89
  %95 = vset.pattern.permute.xlu0 0
  %96 = vperm.xlu0 %95, %v92
  %v97 = vpop.permute.xlu0 %96
  %100 = vset.pattern.permute.xlu0 0
  %101 = vperm.xlu0 %100, %v93
  %v102 = vpop.permute.xlu0 %101
  %v104 = vperm.slane %v41, 0
  %v105 = vmul.f32 %v97, %v104
  %v106 = vmul.f32 %v102, %v104
  %v107 = vadd.f32 %v105, 0.0
  %v108 = vadd.f32 %v106, 0.0
  %s109 = scalar_lea.vmem %s0, 4
  %v110 = vld [vmem:[%s109] sm:$0xf]
  %v111 = vld [vmem:[%s109 + $0x20] sm:$0xf]
  %v112 = vmul.f32 %v110, %v56
  %v113 = vmul.f32 %v111, %v56
  %v114 = vsel %vm59, %v112, 0.0
  %115 = vadd.xlane.f32.xlu0 %v114
  %v116 = vpop.xlane.xlu0 %115
  %v117 = vsel %vm59, %v113, 0.0
  %118 = vadd.xlane.f32.xlu0 %v117
  %v119 = vpop.xlane.xlu0 %118
  %v120 = vperm.slane %v72, 1
  %v121 = vlaneseq
  %v122 = vshrl.u32 %v121, 7
  %124 = vset.pattern.permute.xlu0 %v122
  %125 = vperm.xlu0 %124, %v120
  %v126 = vpop.permute.xlu0 %125
  %v127 = vperm.slane %v73, 1
  %v128 = vlaneseq
  %v129 = vshrl.u32 %v128, 7
  %131 = vset.pattern.permute.xlu0 %v129
  %132 = vperm.xlu0 %131, %v127
  %v133 = vpop.permute.xlu0 %132
  %v136 = vadd.f32 %v116, %v126
  %v137 = vadd.f32 %v119, %v133
  %139 = vset.pattern.permute.xlu0 0
  %140 = vperm.xlu0 %139, %v136
  %v141 = vpop.permute.xlu0 %140
  %144 = vset.pattern.permute.xlu0 0
  %145 = vperm.xlu0 %144, %v137
  %v146 = vpop.permute.xlu0 %145
  %v148 = vperm.slane %v41, 1
  %v149 = vmul.f32 %v141, %v148
  %v150 = vmul.f32 %v146, %v148
  %v151 = vadd.f32 %v107, %v149
  %v152 = vadd.f32 %v108, %v150
  %s153 = scalar_lea.vmem %s0, 8
  %v154 = vld [vmem:[%s153] sm:$0xf]
  %v155 = vld [vmem:[%s153 + $0x20] sm:$0xf]
  %v156 = vmul.f32 %v154, %v56
  %v157 = vmul.f32 %v155, %v56
  %v158 = vsel %vm59, %v156, 0.0
  %159 = vadd.xlane.f32.xlu0 %v158
  %v160 = vpop.xlane.xlu0 %159
  %v161 = vsel %vm59, %v157, 0.0
  %162 = vadd.xlane.f32.xlu0 %v161
  %v163 = vpop.xlane.xlu0 %162
  %v164 = vperm.slane %v72, 2
  %v165 = vlaneseq
  %v166 = vshrl.u32 %v165, 7
  %168 = vset.pattern.permute.xlu0 %v166
  %169 = vperm.xlu0 %168, %v164
  %v170 = vpop.permute.xlu0 %169
  %v171 = vperm.slane %v73, 2
  %v172 = vlaneseq
  %v173 = vshrl.u32 %v172, 7
  %175 = vset.pattern.permute.xlu0 %v173
  %176 = vperm.xlu0 %175, %v171
  %v177 = vpop.permute.xlu0 %176
  %v180 = vadd.f32 %v160, %v170
  %v181 = vadd.f32 %v163, %v177
  %183 = vset.pattern.permute.xlu0 0
  %184 = vperm.xlu0 %183, %v180
  %v185 = vpop.permute.xlu0 %184
  %188 = vset.pattern.permute.xlu0 0
  %189 = vperm.xlu0 %188, %v181
  %v190 = vpop.permute.xlu0 %189
  %v192 = vperm.slane %v41, 2
  %v193 = vmul.f32 %v185, %v192
  %v194 = vmul.f32 %v190, %v192
  %v195 = vadd.f32 %v151, %v193
  %v196 = vadd.f32 %v152, %v194
  %s197 = scalar_lea.vmem %s0, 12
  %v198 = vld [vmem:[%s197] sm:$0xf]
  %v199 = vld [vmem:[%s197 + $0x20] sm:$0xf]
  %v200 = vmul.f32 %v198, %v56
  %v201 = vmul.f32 %v199, %v56
  %v202 = vsel %vm59, %v200, 0.0
  %203 = vadd.xlane.f32.xlu0 %v202
  %v204 = vpop.xlane.xlu0 %203
  %v205 = vsel %vm59, %v201, 0.0
  %206 = vadd.xlane.f32.xlu0 %v205
  %v207 = vpop.xlane.xlu0 %206
  %v208 = vperm.slane %v72, 3
  %v209 = vlaneseq
  %v210 = vshrl.u32 %v209, 7
  %212 = vset.pattern.permute.xlu0 %v210
  %213 = vperm.xlu0 %212, %v208
  %v214 = vpop.permute.xlu0 %213
  %v215 = vperm.slane %v73, 3
  %v216 = vlaneseq
  %v217 = vshrl.u32 %v216, 7
  %219 = vset.pattern.permute.xlu0 %v217
  %220 = vperm.xlu0 %219, %v215
  %v221 = vpop.permute.xlu0 %220
  %v224 = vadd.f32 %v204, %v214
  %v225 = vadd.f32 %v207, %v221
  %227 = vset.pattern.permute.xlu0 0
  %228 = vperm.xlu0 %227, %v224
  %v229 = vpop.permute.xlu0 %228
  %232 = vset.pattern.permute.xlu0 0
  %233 = vperm.xlu0 %232, %v225
  %v234 = vpop.permute.xlu0 %233
  %v236 = vperm.slane %v41, 3
  %v237 = vmul.f32 %v229, %v236
  %v238 = vmul.f32 %v234, %v236
  %v239 = vadd.f32 %v195, %v237
  %v240 = vadd.f32 %v196, %v238
  %s241 = scalar_lea.vmem %s0, 16
  %v242 = vld [vmem:[%s241] sm:$0xf]
  %v243 = vld [vmem:[%s241 + $0x20] sm:$0xf]
  %v244 = vmul.f32 %v242, %v56
  %v245 = vmul.f32 %v243, %v56
  %v246 = vsel %vm59, %v244, 0.0
  %247 = vadd.xlane.f32.xlu0 %v246
  %v248 = vpop.xlane.xlu0 %247
  %v249 = vsel %vm59, %v245, 0.0
  %250 = vadd.xlane.f32.xlu0 %v249
  %v251 = vpop.xlane.xlu0 %250
  %v252 = vperm.slane %v72, 4
  %v253 = vlaneseq
  %v254 = vshrl.u32 %v253, 7
  %256 = vset.pattern.permute.xlu0 %v254
  %257 = vperm.xlu0 %256, %v252
  %v258 = vpop.permute.xlu0 %257
  %v259 = vperm.slane %v73, 4
  %v260 = vlaneseq
  %v261 = vshrl.u32 %v260, 7
  %263 = vset.pattern.permute.xlu0 %v261
  %264 = vperm.xlu0 %263, %v259
  %v265 = vpop.permute.xlu0 %264
  %v268 = vadd.f32 %v248, %v258
  %v269 = vadd.f32 %v251, %v265
  %271 = vset.pattern.permute.xlu0 0
  %272 = vperm.xlu0 %271, %v268
  %v273 = vpop.permute.xlu0 %272
  %276 = vset.pattern.permute.xlu0 0
  %277 = vperm.xlu0 %276, %v269
  %v278 = vpop.permute.xlu0 %277
  %v280 = vperm.slane %v41, 4
  %v281 = vmul.f32 %v273, %v280
  %v282 = vmul.f32 %v278, %v280
  %v283 = vadd.f32 %v239, %v281
  %v284 = vadd.f32 %v240, %v282
  %s285 = scalar_lea.vmem %s0, 20
  %v286 = vld [vmem:[%s285] sm:$0xf]
  %v287 = vld [vmem:[%s285 + $0x20] sm:$0xf]
  %v288 = vmul.f32 %v286, %v56
  %v289 = vmul.f32 %v287, %v56
  %v290 = vsel %vm59, %v288, 0.0
  %291 = vadd.xlane.f32.xlu0 %v290
  %v292 = vpop.xlane.xlu0 %291
  %v293 = vsel %vm59, %v289, 0.0
  %294 = vadd.xlane.f32.xlu0 %v293
  %v295 = vpop.xlane.xlu0 %294
  %v296 = vperm.slane %v72, 5
  %v297 = vlaneseq
  %v298 = vshrl.u32 %v297, 7
  %300 = vset.pattern.permute.xlu0 %v298
  %301 = vperm.xlu0 %300, %v296
  %v302 = vpop.permute.xlu0 %301
  %v303 = vperm.slane %v73, 5
  %v304 = vlaneseq
  %v305 = vshrl.u32 %v304, 7
  %307 = vset.pattern.permute.xlu0 %v305
  %308 = vperm.xlu0 %307, %v303
  %v309 = vpop.permute.xlu0 %308
  %v312 = vadd.f32 %v292, %v302
  %v313 = vadd.f32 %v295, %v309
  %315 = vset.pattern.permute.xlu0 0
  %316 = vperm.xlu0 %315, %v312
  %v317 = vpop.permute.xlu0 %316
  %320 = vset.pattern.permute.xlu0 0
  %321 = vperm.xlu0 %320, %v313
  %v322 = vpop.permute.xlu0 %321
  %v324 = vperm.slane %v41, 5
  %v325 = vmul.f32 %v317, %v324
  %v326 = vmul.f32 %v322, %v324
  %v327 = vadd.f32 %v283, %v325
  %v328 = vadd.f32 %v284, %v326
  %s329 = scalar_lea.vmem %s0, 24
  %v330 = vld [vmem:[%s329] sm:$0xf]
  %v331 = vld [vmem:[%s329 + $0x20] sm:$0xf]
  %v332 = vmul.f32 %v330, %v56
  %v333 = vmul.f32 %v331, %v56
  %v334 = vsel %vm59, %v332, 0.0
  %335 = vadd.xlane.f32.xlu0 %v334
  %v336 = vpop.xlane.xlu0 %335
  %v337 = vsel %vm59, %v333, 0.0
  %338 = vadd.xlane.f32.xlu0 %v337
  %v339 = vpop.xlane.xlu0 %338
  %v340 = vperm.slane %v72, 6
  %v341 = vlaneseq
  %v342 = vshrl.u32 %v341, 7
  %344 = vset.pattern.permute.xlu0 %v342
  %345 = vperm.xlu0 %344, %v340
  %v346 = vpop.permute.xlu0 %345
  %v347 = vperm.slane %v73, 6
  %v348 = vlaneseq
  %v349 = vshrl.u32 %v348, 7
  %351 = vset.pattern.permute.xlu0 %v349
  %352 = vperm.xlu0 %351, %v347
  %v353 = vpop.permute.xlu0 %352
  %v356 = vadd.f32 %v336, %v346
  %v357 = vadd.f32 %v339, %v353
  %359 = vset.pattern.permute.xlu0 0
  %360 = vperm.xlu0 %359, %v356
  %v361 = vpop.permute.xlu0 %360
  %364 = vset.pattern.permute.xlu0 0
  %365 = vperm.xlu0 %364, %v357
  %v366 = vpop.permute.xlu0 %365
  %v368 = vperm.slane %v41, 6
  %v369 = vmul.f32 %v361, %v368
  %v370 = vmul.f32 %v366, %v368
  %v371 = vadd.f32 %v327, %v369
  %v372 = vadd.f32 %v328, %v370
  %s373 = scalar_lea.vmem %s0, 28
  %v374 = vld [vmem:[%s373] sm:$0xf]
  %v375 = vld [vmem:[%s373 + $0x20] sm:$0xf]
  %v376 = vmul.f32 %v374, %v56
  %v377 = vmul.f32 %v375, %v56
  %v378 = vsel %vm59, %v376, 0.0
  %379 = vadd.xlane.f32.xlu0 %v378
  %v380 = vpop.xlane.xlu0 %379
  %v381 = vsel %vm59, %v377, 0.0
  %382 = vadd.xlane.f32.xlu0 %v381
  %v383 = vpop.xlane.xlu0 %382
  %v384 = vperm.slane %v72, 7
  %v385 = vlaneseq
  %v386 = vshrl.u32 %v385, 7
  %388 = vset.pattern.permute.xlu0 %v386
  %389 = vperm.xlu0 %388, %v384
  %v390 = vpop.permute.xlu0 %389
  %v391 = vperm.slane %v73, 7
  %v392 = vlaneseq
  %v393 = vshrl.u32 %v392, 7
  %395 = vset.pattern.permute.xlu0 %v393
  %396 = vperm.xlu0 %395, %v391
  %v397 = vpop.permute.xlu0 %396
  %v400 = vadd.f32 %v380, %v390
  %v401 = vadd.f32 %v383, %v397
  %403 = vset.pattern.permute.xlu0 0
  %404 = vperm.xlu0 %403, %v400
  %v405 = vpop.permute.xlu0 %404
  %408 = vset.pattern.permute.xlu0 0
  %409 = vperm.xlu0 %408, %v401
  %v410 = vpop.permute.xlu0 %409
  %v412 = vperm.slane %v41, 7
  %v413 = vmul.f32 %v405, %v412
  %v414 = vmul.f32 %v410, %v412
  %v415 = vadd.f32 %v371, %v413
  %v416 = vadd.f32 %v372, %v414
  %418 = vset.pattern.permute.xlu0 0
  %419 = vperm.xlu0 %418, %v53
  %v420 = vpop.permute.xlu0 %419
  %v422 = vperm.slane %v20, 0
  %v423 = vmul.f32 %v420, %v422
  %v424 = vperm.slane %v23, 0
  %v425 = vadd.f32 %v423, %v424
  %v426 = vperm.slane %v24, 0
  %vm427 = vcmask 130048
  %v429 = vsel %vm427, 0.0, 0
  %431 = vmatpush.msra.mxu0 0.0
  %432 = vmatpush.msra.mxu0 0.0
  %433 = vmatpush.msra.mxu0 0.0
  %434 = vmatpush.msra.mxu0 0.0
  %435 = vmatpush.msra.mxu0 0.0
  %436 = vmatpush.msra.mxu0 0.0
  %437 = vmatpush.msra.mxu0 0.0
  %438 = vmatpush.msra.mxu0 0.0
  %439 = vmatpush.msra.mxu0 0.0
  %440 = vmatpush.msra.mxu0 0.0
  %441 = vmatpush.msra.mxu0 0.0
  %442 = vmatpush.msra.mxu0 0.0
  %443 = vmatpush.msra.mxu0 0.0
  %444 = vmatpush.msra.mxu0 0.0
  %445 = vmatpush.msra.mxu0 %v22
  %446 = vmatpush.msra.mxu0 %v21
  %447 = vmatmul.f32.gmra.mxu0 %v429
  %v448 = vpop.f32.mrf.mxu0
  %v449 = vadd.f32 %v426, %v448
  %450 = vdwg.mxu0
  %v451 = vadd.f32 %v425, %v449
  %v452 = vxor.u32 %v451, 2147483648
  %v453 = vmul.f32 %v452, 1.442695
  %v454 = vpow.pop %v453
  %v455 = vadd.f32 %v454, 1.0
  %v456 = vrcp.pop %v455
  %v457 = vmul.f32 %v455, %v456
  %v458 = vsub.f32 1.0, %v457
  %v459 = vmul.f32 %v456, %v458
  %v460 = vadd.f32 %v456, %v459
  %vm461 = vweird.f32 %v455
  %vm462 = vweird.f32 %v456
  %vm463 = vmor %vm461, %vm462
  %v464 = vsel %vm463, %v456, %v460
  %v465 = vand.u32 2147483647, %v455
  %vm466 = vcmp.eq.f32.partialorder %v465, 8.507059e+37
  %v467 = vand.u32 %v455, 2147483648
  %v468 = vor.u32 1.1754944e-38, %v467
  %v469 = vsel %vm466, %v468, %v464
  %v470 = vmul.f32 1.0, %v469
  %472 = vrot.lane.b32.xlu0 %v449, 96
  %v473 = vpop.permute.xlu0 %472
  %v475 = vmul.f32 %v470, %v473
  %477 = vrot.lane.b32.xlu0 %v475, 32
  %v478 = vpop.permute.xlu0 %477
  %v480 = vadd.f32 %v425, %v478
  %v481 = vtanh.pop %v480
  %v482 = vsub.f32 1.0, %v470
  %484 = vrot.lane.b32.xlu0 %v481, 112
  %v485 = vpop.permute.xlu0 %484
  %v487 = vmul.f32 %v482, %v485
  %v488 = vmul.f32 %v470, 0.0
  %v489 = vadd.f32 %v487, %v488
  %491 = vrot.lane.b32.xlu0 %v489, 112
  %v492 = vpop.permute.xlu0 %491
  %v493 = vsel %vm427, %v492, 0
  %495 = vmatpush.msra.mxu0 0.0
  %496 = vmatpush.msra.mxu0 0.0
  %497 = vmatpush.msra.mxu0 0.0
  %498 = vmatpush.msra.mxu0 0.0
  %499 = vmatpush.msra.mxu0 0.0
  %500 = vmatpush.msra.mxu0 0.0
  %501 = vmatpush.msra.mxu0 0.0
  %502 = vmatpush.msra.mxu0 0.0
  %503 = vmatpush.msra.mxu0 0.0
  %504 = vmatpush.msra.mxu0 0.0
  %505 = vmatpush.msra.mxu0 0.0
  %506 = vmatpush.msra.mxu0 0.0
  %507 = vmatpush.msra.mxu0 0.0
  %508 = vmatpush.msra.mxu0 0.0
  %509 = vmatpush.msra.mxu0 %v38
  %510 = vmatpush.msra.mxu0 %v37
  %511 = vmatmul.f32.gmra.mxu0 %v493
  %v512 = vpop.f32.mrf.mxu0
  %v513 = vadd.f32 0.0, %v512
  %514 = vdwg.mxu0
  %515 = vmatpush.msra.mxu0 0.0
  %516 = vmatpush.msra.mxu0 0.0
  %517 = vmatpush.msra.mxu0 0.0
  %518 = vmatpush.msra.mxu0 0.0
  %519 = vmatpush.msra.mxu0 0.0
  %520 = vmatpush.msra.mxu0 0.0
  %521 = vmatpush.msra.mxu0 0.0
  %522 = vmatpush.msra.mxu0 0.0
  %523 = vmatpush.msra.mxu0 0.0
  %524 = vmatpush.msra.mxu0 0.0
  %525 = vmatpush.msra.mxu0 0.0
  %526 = vmatpush.msra.mxu0 0.0
  %527 = vmatpush.msra.mxu0 0.0
  %528 = vmatpush.msra.mxu0 0.0
  %529 = vmatpush.msra.mxu0 %v36
  %530 = vmatpush.msra.mxu0 %v35
  %531 = vmatmul.f32.gmra.mxu0 %v429
  %v532 = vpop.f32.mrf.mxu0
  %v533 = vadd.f32 %v513, %v532
  %534 = vdwg.mxu0
  %v535 = vperm.slane %v39, 0
  %v536 = vadd.f32 %v533, %v535
  %v538 = vrot.slane %v536, 1
  %v539 = vperm.slane %v536, 0
  %v540 = vperm.slane %v538, 0
  %v543 = vadd.f32 %v415, %v539
  %v544 = vadd.f32 %v416, %v540
  %v545 = vtanh.pop %v543
  %v546 = vtanh.pop %v544
  %v547 = vperm.slane %v42, 0
  %v548 = vmul.f32 %v545, %v547
  %v549 = vmul.f32 %v546, %v547
  %vm550 = vcmask 60416
  %v551 = vsel %vm550, %v548, 0.0
  %552 = vadd.xlane.f32.xlu0 %v551
  %v553 = vpop.xlane.xlu0 %552
  %v554 = vsel %vm550, %v549, 0.0
  %555 = vadd.xlane.f32.xlu0 %v554
  %v556 = vpop.xlane.xlu0 %555
  %v559 = vlaneseq
  %v560 = vand.u32 %v559, 127
  %v561 = vperm.slane %v553, %v560
  %v562 = vperm.slane %v556, %v560
  %v565 = vmul.f32 %v51, %v561
  %v566 = vmul.f32 %v52, %v562
  %v567 = vperm.slane %v28, 0
  %v570 = vrot.slane %v566, 7
  %vm571 = vcmask 1041409
  %v572 = vsel %vm571, %v570, %v565
  %vm573 = vcmask 31744
  %v574 = vsel %vm573, %v572, 0
  %vm576 = vcmask 1043456
  %v578 = vsel %vm576, %v25, 0
  %580 = vmatpush.msra.mxu0 0.0
  %581 = vmatpush.msra.mxu0 0.0
  %582 = vmatpush.msra.mxu0 0.0
  %583 = vmatpush.msra.mxu0 0.0
  %584 = vmatpush.msra.mxu0 0.0
  %585 = vmatpush.msra.mxu0 0.0
  %586 = vmatpush.msra.mxu0 0.0
  %587 = vmatpush.msra.mxu0 0.0
  %588 = vmatpush.msra.mxu0 0.0
  %589 = vmatpush.msra.mxu0 0.0
  %590 = vmatpush.msra.mxu0 0.0
  %591 = vmatpush.msra.mxu0 0.0
  %592 = vmatpush.msra.mxu0 0.0
  %593 = vmatpush.msra.mxu0 0.0
  %594 = vmatpush.msra.mxu0 0.0
  %595 = vmatpush.msra.mxu0 %v578
  %596 = vmatmul.f32.gmra.mxu0 %v574
  %v597 = vpop.f32.mrf.mxu0
  %v598 = vadd.f32 %v567, %v597
  %599 = vdwg.mxu0
  %v600 = vperm.slane %v29, 0
  %601 = vmatpush.msra.mxu0 0.0
  %602 = vmatpush.msra.mxu0 0.0
  %603 = vmatpush.msra.mxu0 0.0
  %604 = vmatpush.msra.mxu0 0.0
  %605 = vmatpush.msra.mxu0 0.0
  %606 = vmatpush.msra.mxu0 0.0
  %607 = vmatpush.msra.mxu0 0.0
  %608 = vmatpush.msra.mxu0 0.0
  %609 = vmatpush.msra.mxu0 0.0
  %610 = vmatpush.msra.mxu0 0.0
  %611 = vmatpush.msra.mxu0 0.0
  %612 = vmatpush.msra.mxu0 0.0
  %613 = vmatpush.msra.mxu0 0.0
  %614 = vmatpush.msra.mxu0 0.0
  %615 = vmatpush.msra.mxu0 %v27
  %616 = vmatpush.msra.mxu0 %v26
  %617 = vmatmul.f32.gmra.mxu0 %v429
  %v618 = vpop.f32.mrf.mxu0
  %v619 = vadd.f32 %v600, %v618
  %620 = vdwg.mxu0
  %v621 = vadd.f32 %v598, %v619
  %v622 = vxor.u32 %v621, 2147483648
  %v623 = vmul.f32 %v622, 1.442695
  %v624 = vpow.pop %v623
  %v625 = vadd.f32 %v624, 1.0
  %v626 = vrcp.pop %v625
  %v627 = vmul.f32 %v625, %v626
  %v628 = vsub.f32 1.0, %v627
  %v629 = vmul.f32 %v626, %v628
  %v630 = vadd.f32 %v626, %v629
  %vm631 = vweird.f32 %v625
  %vm632 = vweird.f32 %v626
  %vm633 = vmor %vm631, %vm632
  %v634 = vsel %vm633, %v626, %v630
  %v635 = vand.u32 2147483647, %v625
  %vm636 = vcmp.eq.f32.partialorder %v635, 8.507059e+37
  %v637 = vand.u32 %v625, 2147483648
  %v638 = vor.u32 1.1754944e-38, %v637
  %v639 = vsel %vm636, %v638, %v634
  %v640 = vmul.f32 1.0, %v639
  %642 = vrot.lane.b32.xlu0 %v619, 96
  %v643 = vpop.permute.xlu0 %642
  %v645 = vmul.f32 %v640, %v643
  %647 = vrot.lane.b32.xlu0 %v645, 32
  %v648 = vpop.permute.xlu0 %647
  %v650 = vadd.f32 %v598, %v648
  %v651 = vtanh.pop %v650
  %v652 = vsub.f32 1.0, %v640
  %654 = vrot.lane.b32.xlu0 %v651, 112
  %v655 = vpop.permute.xlu0 %654
  %v657 = vmul.f32 %v652, %v655
  %v658 = vmul.f32 %v640, 0.0
  %v659 = vadd.f32 %v657, %v658
  %660 = vset.pattern.permute.xlu0 1
  %661 = vperm.xlu0 %660, %v53
  %v662 = vpop.permute.xlu0 %661
  %v664 = vmul.f32 %v662, %v422
  %v665 = vadd.f32 %v664, %v424
  %666 = vmatpush.msra.mxu0 0.0
  %667 = vmatpush.msra.mxu0 0.0
  %668 = vmatpush.msra.mxu0 0.0
  %669 = vmatpush.msra.mxu0 0.0
  %670 = vmatpush.msra.mxu0 0.0
  %671 = vmatpush.msra.mxu0 0.0
  %672 = vmatpush.msra.mxu0 0.0
  %673 = vmatpush.msra.mxu0 0.0
  %674 = vmatpush.msra.mxu0 0.0
  %675 = vmatpush.msra.mxu0 0.0
  %676 = vmatpush.msra.mxu0 0.0
  %677 = vmatpush.msra.mxu0 0.0
  %678 = vmatpush.msra.mxu0 0.0
  %679 = vmatpush.msra.mxu0 0.0
  %680 = vmatpush.msra.mxu0 %v22
  %681 = vmatpush.msra.mxu0 %v21
  %682 = vmatmul.f32.gmra.mxu0 %v493
  %v683 = vpop.f32.mrf.mxu0
  %v684 = vadd.f32 %v426, %v683
  %685 = vdwg.mxu0
  %v686 = vadd.f32 %v665, %v684
  %v687 = vxor.u32 %v686, 2147483648
  %v688 = vmul.f32 %v687, 1.442695
  %v689 = vpow.pop %v688
  %v690 = vadd.f32 %v689, 1.0
  %v691 = vrcp.pop %v690
  %v692 = vmul.f32 %v690, %v691
  %v693 = vsub.f32 1.0, %v692
  %v694 = vmul.f32 %v691, %v693
  %v695 = vadd.f32 %v691, %v694
  %vm696 = vweird.f32 %v690
  %vm697 = vweird.f32 %v691
  %vm698 = vmor %vm696, %vm697
  %v699 = vsel %vm698, %v691, %v695
  %v700 = vand.u32 2147483647, %v690
  %vm701 = vcmp.eq.f32.partialorder %v700, 8.507059e+37
  %v702 = vand.u32 %v690, 2147483648
  %v703 = vor.u32 1.1754944e-38, %v702
  %v704 = vsel %vm701, %v703, %v699
  %v705 = vmul.f32 1.0, %v704
  %707 = vrot.lane.b32.xlu0 %v684, 96
  %v708 = vpop.permute.xlu0 %707
  %v710 = vmul.f32 %v705, %v708
  %712 = vrot.lane.b32.xlu0 %v710, 32
  %v713 = vpop.permute.xlu0 %712
  %v715 = vadd.f32 %v665, %v713
  %v716 = vtanh.pop %v715
  %v717 = vsub.f32 1.0, %v705
  %719 = vrot.lane.b32.xlu0 %v716, 112
  %v720 = vpop.permute.xlu0 %719
  %v722 = vmul.f32 %v717, %v720
  %v723 = vmul.f32 %v705, %v489
  %v724 = vadd.f32 %v722, %v723
  %726 = vrot.lane.b32.xlu0 %v724, 112
  %v727 = vpop.permute.xlu0 %726
  %v728 = vsel %vm427, %v727, 0
  %730 = vmatpush.msra.mxu0 0.0
  %731 = vmatpush.msra.mxu0 0.0
  %732 = vmatpush.msra.mxu0 0.0
  %733 = vmatpush.msra.mxu0 0.0
  %734 = vmatpush.msra.mxu0 0.0
  %735 = vmatpush.msra.mxu0 0.0
  %736 = vmatpush.msra.mxu0 0.0
  %737 = vmatpush.msra.mxu0 0.0
  %738 = vmatpush.msra.mxu0 0.0
  %739 = vmatpush.msra.mxu0 0.0
  %740 = vmatpush.msra.mxu0 0.0
  %741 = vmatpush.msra.mxu0 0.0
  %742 = vmatpush.msra.mxu0 0.0
  %743 = vmatpush.msra.mxu0 0.0
  %744 = vmatpush.msra.mxu0 %v38
  %745 = vmatpush.msra.mxu0 %v37
  %746 = vmatmul.f32.gmra.mxu0 %v728
  %v747 = vpop.f32.mrf.mxu0
  %v748 = vadd.f32 0.0, %v747
  %749 = vdwg.mxu0
  %751 = vrot.lane.b32.xlu0 %v659, 112
  %v752 = vpop.permute.xlu0 %751
  %v753 = vsel %vm427, %v752, 0
  %755 = vmatpush.msra.mxu0 0.0
  %756 = vmatpush.msra.mxu0 0.0
  %757 = vmatpush.msra.mxu0 0.0
  %758 = vmatpush.msra.mxu0 0.0
  %759 = vmatpush.msra.mxu0 0.0
  %760 = vmatpush.msra.mxu0 0.0
  %761 = vmatpush.msra.mxu0 0.0
  %762 = vmatpush.msra.mxu0 0.0
  %763 = vmatpush.msra.mxu0 0.0
  %764 = vmatpush.msra.mxu0 0.0
  %765 = vmatpush.msra.mxu0 0.0
  %766 = vmatpush.msra.mxu0 0.0
  %767 = vmatpush.msra.mxu0 0.0
  %768 = vmatpush.msra.mxu0 0.0
  %769 = vmatpush.msra.mxu0 %v36
  %770 = vmatpush.msra.mxu0 %v35
  %771 = vmatmul.f32.gmra.mxu0 %v753
  %v772 = vpop.f32.mrf.mxu0
  %v773 = vadd.f32 %v748, %v772
  %774 = vdwg.mxu0
  %v775 = vadd.f32 %v773, %v535
  %v777 = vrot.slane %v775, 1
  %v778 = vperm.slane %v775, 0
  %v779 = vperm.slane %v777, 0
  %v782 = vadd.f32 %v415, %v778
  %v783 = vadd.f32 %v416, %v779
  %v784 = vtanh.pop %v782
  %v785 = vtanh.pop %v783
  %v786 = vmul.f32 %v784, %v547
  %v787 = vmul.f32 %v785, %v547
  %v788 = vsel %vm550, %v786, 0.0
  %789 = vadd.xlane.f32.xlu0 %v788
  %v790 = vpop.xlane.xlu0 %789
  %v791 = vsel %vm550, %v787, 0.0
  %792 = vadd.xlane.f32.xlu0 %v791
  %v793 = vpop.xlane.xlu0 %792
  %v796 = vperm.slane %v790, %v560
  %v797 = vperm.slane %v793, %v560
  %v800 = vmul.f32 %v51, %v796
  %v801 = vmul.f32 %v52, %v797
  %v804 = vrot.slane %v800, 1
  %v805 = vsel %vm571, %v801, %v804
  %v806 = vsel %vm573, %v805, 0
  %808 = vmatpush.msra.mxu0 0.0
  %809 = vmatpush.msra.mxu0 0.0
  %810 = vmatpush.msra.mxu0 0.0
  %811 = vmatpush.msra.mxu0 0.0
  %812 = vmatpush.msra.mxu0 0.0
  %813 = vmatpush.msra.mxu0 0.0
  %814 = vmatpush.msra.mxu0 0.0
  %815 = vmatpush.msra.mxu0 0.0
  %816 = vmatpush.msra.mxu0 0.0
  %817 = vmatpush.msra.mxu0 0.0
  %818 = vmatpush.msra.mxu0 0.0
  %819 = vmatpush.msra.mxu0 0.0
  %820 = vmatpush.msra.mxu0 0.0
  %821 = vmatpush.msra.mxu0 0.0
  %822 = vmatpush.msra.mxu0 0.0
  %823 = vmatpush.msra.mxu0 %v578
  %824 = vmatmul.f32.gmra.mxu0 %v806
  %v825 = vpop.f32.mrf.mxu0
  %v826 = vadd.f32 %v567, %v825
  %827 = vdwg.mxu0
  %828 = vmatpush.msra.mxu0 0.0
  %829 = vmatpush.msra.mxu0 0.0
  %830 = vmatpush.msra.mxu0 0.0
  %831 = vmatpush.msra.mxu0 0.0
  %832 = vmatpush.msra.mxu0 0.0
  %833 = vmatpush.msra.mxu0 0.0
  %834 = vmatpush.msra.mxu0 0.0
  %835 = vmatpush.msra.mxu0 0.0
  %836 = vmatpush.msra.mxu0 0.0
  %837 = vmatpush.msra.mxu0 0.0
  %838 = vmatpush.msra.mxu0 0.0
  %839 = vmatpush.msra.mxu0 0.0
  %840 = vmatpush.msra.mxu0 0.0
  %841 = vmatpush.msra.mxu0 0.0
  %842 = vmatpush.msra.mxu0 %v27
  %843 = vmatpush.msra.mxu0 %v26
  %844 = vmatmul.f32.gmra.mxu0 %v753
  %v845 = vpop.f32.mrf.mxu0
  %v846 = vadd.f32 %v600, %v845
  %847 = vdwg.mxu0
  %v848 = vadd.f32 %v826, %v846
  %v849 = vxor.u32 %v848, 2147483648
  %v850 = vmul.f32 %v849, 1.442695
  %v851 = vpow.pop %v850
  %v852 = vadd.f32 %v851, 1.0
  %v853 = vrcp.pop %v852
  %v854 = vmul.f32 %v852, %v853
  %v855 = vsub.f32 1.0, %v854
  %v856 = vmul.f32 %v853, %v855
  %v857 = vadd.f32 %v853, %v856
  %vm858 = vweird.f32 %v852
  %vm859 = vweird.f32 %v853
  %vm860 = vmor %vm858, %vm859
  %v861 = vsel %vm860, %v853, %v857
  %v862 = vand.u32 2147483647, %v852
  %vm863 = vcmp.eq.f32.partialorder %v862, 8.507059e+37
  %v864 = vand.u32 %v852, 2147483648
  %v865 = vor.u32 1.1754944e-38, %v864
  %v866 = vsel %vm863, %v865, %v861
  %v867 = vmul.f32 1.0, %v866
  %869 = vrot.lane.b32.xlu0 %v846, 96
  %v870 = vpop.permute.xlu0 %869
  %v872 = vmul.f32 %v867, %v870
  %874 = vrot.lane.b32.xlu0 %v872, 32
  %v875 = vpop.permute.xlu0 %874
  %v877 = vadd.f32 %v826, %v875
  %v878 = vtanh.pop %v877
  %v879 = vsub.f32 1.0, %v867
  %881 = vrot.lane.b32.xlu0 %v878, 112
  %v882 = vpop.permute.xlu0 %881
  %v884 = vmul.f32 %v879, %v882
  %v885 = vmul.f32 %v867, %v659
  %v886 = vadd.f32 %v884, %v885
  %887 = vset.pattern.permute.xlu0 2
  %888 = vperm.xlu0 %887, %v53
  %v889 = vpop.permute.xlu0 %888
  %v891 = vmul.f32 %v889, %v422
  %v892 = vadd.f32 %v891, %v424
  %893 = vmatpush.msra.mxu0 0.0
  %894 = vmatpush.msra.mxu0 0.0
  %895 = vmatpush.msra.mxu0 0.0
  %896 = vmatpush.msra.mxu0 0.0
  %897 = vmatpush.msra.mxu0 0.0
  %898 = vmatpush.msra.mxu0 0.0
  %899 = vmatpush.msra.mxu0 0.0
  %900 = vmatpush.msra.mxu0 0.0
  %901 = vmatpush.msra.mxu0 0.0
  %902 = vmatpush.msra.mxu0 0.0
  %903 = vmatpush.msra.mxu0 0.0
  %904 = vmatpush.msra.mxu0 0.0
  %905 = vmatpush.msra.mxu0 0.0
  %906 = vmatpush.msra.mxu0 0.0
  %907 = vmatpush.msra.mxu0 %v22
  %908 = vmatpush.msra.mxu0 %v21
  %909 = vmatmul.f32.gmra.mxu0 %v728
  %v910 = vpop.f32.mrf.mxu0
  %v911 = vadd.f32 %v426, %v910
  %912 = vdwg.mxu0
  %v913 = vadd.f32 %v892, %v911
  %v914 = vxor.u32 %v913, 2147483648
  %v915 = vmul.f32 %v914, 1.442695
  %v916 = vpow.pop %v915
  %v917 = vadd.f32 %v916, 1.0
  %v918 = vrcp.pop %v917
  %v919 = vmul.f32 %v917, %v918
  %v920 = vsub.f32 1.0, %v919
  %v921 = vmul.f32 %v918, %v920
  %v922 = vadd.f32 %v918, %v921
  %vm923 = vweird.f32 %v917
  %vm924 = vweird.f32 %v918
  %vm925 = vmor %vm923, %vm924
  %v926 = vsel %vm925, %v918, %v922
  %v927 = vand.u32 2147483647, %v917
  %vm928 = vcmp.eq.f32.partialorder %v927, 8.507059e+37
  %v929 = vand.u32 %v917, 2147483648
  %v930 = vor.u32 1.1754944e-38, %v929
  %v931 = vsel %vm928, %v930, %v926
  %v932 = vmul.f32 1.0, %v931
  %934 = vrot.lane.b32.xlu0 %v911, 96
  %v935 = vpop.permute.xlu0 %934
  %v937 = vmul.f32 %v932, %v935
  %939 = vrot.lane.b32.xlu0 %v937, 32
  %v940 = vpop.permute.xlu0 %939
  %v942 = vadd.f32 %v892, %v940
  %v943 = vtanh.pop %v942
  %v944 = vsub.f32 1.0, %v932
  %946 = vrot.lane.b32.xlu0 %v943, 112
  %v947 = vpop.permute.xlu0 %946
  %v949 = vmul.f32 %v944, %v947
  %v950 = vmul.f32 %v932, %v724
  %v951 = vadd.f32 %v949, %v950
  %953 = vrot.lane.b32.xlu0 %v951, 112
  %v954 = vpop.permute.xlu0 %953
  %v955 = vsel %vm427, %v954, 0
  %957 = vmatpush.msra.mxu0 0.0
  %958 = vmatpush.msra.mxu0 0.0
  %959 = vmatpush.msra.mxu0 0.0
  %960 = vmatpush.msra.mxu0 0.0
  %961 = vmatpush.msra.mxu0 0.0
  %962 = vmatpush.msra.mxu0 0.0
  %963 = vmatpush.msra.mxu0 0.0
  %964 = vmatpush.msra.mxu0 0.0
  %965 = vmatpush.msra.mxu0 0.0
  %966 = vmatpush.msra.mxu0 0.0
  %967 = vmatpush.msra.mxu0 0.0
  %968 = vmatpush.msra.mxu0 0.0
  %969 = vmatpush.msra.mxu0 0.0
  %970 = vmatpush.msra.mxu0 0.0
  %971 = vmatpush.msra.mxu0 %v38
  %972 = vmatpush.msra.mxu0 %v37
  %973 = vmatmul.f32.gmra.mxu0 %v955
  %v974 = vpop.f32.mrf.mxu0
  %v975 = vadd.f32 0.0, %v974
  %976 = vdwg.mxu0
  %978 = vrot.lane.b32.xlu0 %v886, 112
  %v979 = vpop.permute.xlu0 %978
  %v980 = vsel %vm427, %v979, 0
  %982 = vmatpush.msra.mxu0 0.0
  %983 = vmatpush.msra.mxu0 0.0
  %984 = vmatpush.msra.mxu0 0.0
  %985 = vmatpush.msra.mxu0 0.0
  %986 = vmatpush.msra.mxu0 0.0
  %987 = vmatpush.msra.mxu0 0.0
  %988 = vmatpush.msra.mxu0 0.0
  %989 = vmatpush.msra.mxu0 0.0
  %990 = vmatpush.msra.mxu0 0.0
  %991 = vmatpush.msra.mxu0 0.0
  %992 = vmatpush.msra.mxu0 0.0
  %993 = vmatpush.msra.mxu0 0.0
  %994 = vmatpush.msra.mxu0 0.0
  %995 = vmatpush.msra.mxu0 0.0
  %996 = vmatpush.msra.mxu0 %v36
  %997 = vmatpush.msra.mxu0 %v35
  %998 = vmatmul.f32.gmra.mxu0 %v980
  %v999 = vpop.f32.mrf.mxu0
  %v1000 = vadd.f32 %v975, %v999
  %1001 = vdwg.mxu0
  %v1002 = vadd.f32 %v1000, %v535
  %v1004 = vrot.slane %v1002, 1
  %v1005 = vperm.slane %v1002, 0
  %v1006 = vperm.slane %v1004, 0
  %v1009 = vadd.f32 %v415, %v1005
  %v1010 = vadd.f32 %v416, %v1006
  %v1011 = vtanh.pop %v1009
  %v1012 = vtanh.pop %v1010
  %v1013 = vmul.f32 %v1011, %v547
  %v1014 = vmul.f32 %v1012, %v547
  %v1015 = vsel %vm550, %v1013, 0.0
  %1016 = vadd.xlane.f32.xlu0 %v1015
  %v1017 = vpop.xlane.xlu0 %1016
  %v1018 = vsel %vm550, %v1014, 0.0
  %1019 = vadd.xlane.f32.xlu0 %v1018
  %v1020 = vpop.xlane.xlu0 %1019
  %v1023 = vperm.slane %v1017, %v560
  %v1024 = vperm.slane %v1020, %v560
  %v1027 = vmul.f32 %v51, %v1023
  %v1028 = vmul.f32 %v52, %v1024
  %v1031 = vrot.slane %v1027, 2
  %v1032 = vrot.slane %v1028, 1
  %v1033 = vsel %vm571, %v1032, %v1031
  %v1034 = vsel %vm573, %v1033, 0
  %1036 = vmatpush.msra.mxu0 0.0
  %1037 = vmatpush.msra.mxu0 0.0
  %1038 = vmatpush.msra.mxu0 0.0
  %1039 = vmatpush.msra.mxu0 0.0
  %1040 = vmatpush.msra.mxu0 0.0
  %1041 = vmatpush.msra.mxu0 0.0
  %1042 = vmatpush.msra.mxu0 0.0
  %1043 = vmatpush.msra.mxu0 0.0
  %1044 = vmatpush.msra.mxu0 0.0
  %1045 = vmatpush.msra.mxu0 0.0
  %1046 = vmatpush.msra.mxu0 0.0
  %1047 = vmatpush.msra.mxu0 0.0
  %1048 = vmatpush.msra.mxu0 0.0
  %1049 = vmatpush.msra.mxu0 0.0
  %1050 = vmatpush.msra.mxu0 0.0
  %1051 = vmatpush.msra.mxu0 %v578
  %1052 = vmatmul.f32.gmra.mxu0 %v1034
  %v1053 = vpop.f32.mrf.mxu0
  %v1054 = vadd.f32 %v567, %v1053
  %1055 = vdwg.mxu0
  %1056 = vmatpush.msra.mxu0 0.0
  %1057 = vmatpush.msra.mxu0 0.0
  %1058 = vmatpush.msra.mxu0 0.0
  %1059 = vmatpush.msra.mxu0 0.0
  %1060 = vmatpush.msra.mxu0 0.0
  %1061 = vmatpush.msra.mxu0 0.0
  %1062 = vmatpush.msra.mxu0 0.0
  %1063 = vmatpush.msra.mxu0 0.0
  %1064 = vmatpush.msra.mxu0 0.0
  %1065 = vmatpush.msra.mxu0 0.0
  %1066 = vmatpush.msra.mxu0 0.0
  %1067 = vmatpush.msra.mxu0 0.0
  %1068 = vmatpush.msra.mxu0 0.0
  %1069 = vmatpush.msra.mxu0 0.0
  %1070 = vmatpush.msra.mxu0 %v27
  %1071 = vmatpush.msra.mxu0 %v26
  %1072 = vmatmul.f32.gmra.mxu0 %v980
  %v1073 = vpop.f32.mrf.mxu0
  %v1074 = vadd.f32 %v600, %v1073
  %1075 = vdwg.mxu0
  %v1076 = vadd.f32 %v1054, %v1074
  %v1077 = vxor.u32 %v1076, 2147483648
  %v1078 = vmul.f32 %v1077, 1.442695
  %v1079 = vpow.pop %v1078
  %v1080 = vadd.f32 %v1079, 1.0
  %v1081 = vrcp.pop %v1080
  %v1082 = vmul.f32 %v1080, %v1081
  %v1083 = vsub.f32 1.0, %v1082
  %v1084 = vmul.f32 %v1081, %v1083
  %v1085 = vadd.f32 %v1081, %v1084
  %vm1086 = vweird.f32 %v1080
  %vm1087 = vweird.f32 %v1081
  %vm1088 = vmor %vm1086, %vm1087
  %v1089 = vsel %vm1088, %v1081, %v1085
  %v1090 = vand.u32 2147483647, %v1080
  %vm1091 = vcmp.eq.f32.partialorder %v1090, 8.507059e+37
  %v1092 = vand.u32 %v1080, 2147483648
  %v1093 = vor.u32 1.1754944e-38, %v1092
  %v1094 = vsel %vm1091, %v1093, %v1089
  %v1095 = vmul.f32 1.0, %v1094
  %1097 = vrot.lane.b32.xlu0 %v1074, 96
  %v1098 = vpop.permute.xlu0 %1097
  %v1100 = vmul.f32 %v1095, %v1098
  %1102 = vrot.lane.b32.xlu0 %v1100, 32
  %v1103 = vpop.permute.xlu0 %1102
  %v1105 = vadd.f32 %v1054, %v1103
  %v1106 = vtanh.pop %v1105
  %v1107 = vsub.f32 1.0, %v1095
  %1109 = vrot.lane.b32.xlu0 %v1106, 112
  %v1110 = vpop.permute.xlu0 %1109
  %v1112 = vmul.f32 %v1107, %v1110
  %v1113 = vmul.f32 %v1095, %v886
  %v1114 = vadd.f32 %v1112, %v1113
  %1115 = vset.pattern.permute.xlu0 3
  %1116 = vperm.xlu0 %1115, %v53
  %v1117 = vpop.permute.xlu0 %1116
  %v1119 = vmul.f32 %v1117, %v422
  %v1120 = vadd.f32 %v1119, %v424
  %1121 = vmatpush.msra.mxu0 0.0
  %1122 = vmatpush.msra.mxu0 0.0
  %1123 = vmatpush.msra.mxu0 0.0
  %1124 = vmatpush.msra.mxu0 0.0
  %1125 = vmatpush.msra.mxu0 0.0
  %1126 = vmatpush.msra.mxu0 0.0
  %1127 = vmatpush.msra.mxu0 0.0
  %1128 = vmatpush.msra.mxu0 0.0
  %1129 = vmatpush.msra.mxu0 0.0
  %1130 = vmatpush.msra.mxu0 0.0
  %1131 = vmatpush.msra.mxu0 0.0
  %1132 = vmatpush.msra.mxu0 0.0
  %1133 = vmatpush.msra.mxu0 0.0
  %1134 = vmatpush.msra.mxu0 0.0
  %1135 = vmatpush.msra.mxu0 %v22
  %1136 = vmatpush.msra.mxu0 %v21
  %1137 = vmatmul.f32.gmra.mxu0 %v955
  %v1138 = vpop.f32.mrf.mxu0
  %v1139 = vadd.f32 %v426, %v1138
  %1140 = vdwg.mxu0
  %v1141 = vadd.f32 %v1120, %v1139
  %v1142 = vxor.u32 %v1141, 2147483648
  %v1143 = vmul.f32 %v1142, 1.442695
  %v1144 = vpow.pop %v1143
  %v1145 = vadd.f32 %v1144, 1.0
  %v1146 = vrcp.pop %v1145
  %v1147 = vmul.f32 %v1145, %v1146
  %v1148 = vsub.f32 1.0, %v1147
  %v1149 = vmul.f32 %v1146, %v1148
  %v1150 = vadd.f32 %v1146, %v1149
  %vm1151 = vweird.f32 %v1145
  %vm1152 = vweird.f32 %v1146
  %vm1153 = vmor %vm1151, %vm1152
  %v1154 = vsel %vm1153, %v1146, %v1150
  %v1155 = vand.u32 2147483647, %v1145
  %vm1156 = vcmp.eq.f32.partialorder %v1155, 8.507059e+37
  %v1157 = vand.u32 %v1145, 2147483648
  %v1158 = vor.u32 1.1754944e-38, %v1157
  %v1159 = vsel %vm1156, %v1158, %v1154
  %v1160 = vmul.f32 1.0, %v1159
  %1162 = vrot.lane.b32.xlu0 %v1139, 96
  %v1163 = vpop.permute.xlu0 %1162
  %v1165 = vmul.f32 %v1160, %v1163
  %1167 = vrot.lane.b32.xlu0 %v1165, 32
  %v1168 = vpop.permute.xlu0 %1167
  %v1170 = vadd.f32 %v1120, %v1168
  %v1171 = vtanh.pop %v1170
  %v1172 = vsub.f32 1.0, %v1160
  %1174 = vrot.lane.b32.xlu0 %v1171, 112
  %v1175 = vpop.permute.xlu0 %1174
  %v1177 = vmul.f32 %v1172, %v1175
  %v1178 = vmul.f32 %v1160, %v951
  %v1179 = vadd.f32 %v1177, %v1178
  %1181 = vrot.lane.b32.xlu0 %v1179, 112
  %v1182 = vpop.permute.xlu0 %1181
  %v1183 = vsel %vm427, %v1182, 0
  %1185 = vmatpush.msra.mxu0 0.0
  %1186 = vmatpush.msra.mxu0 0.0
  %1187 = vmatpush.msra.mxu0 0.0
  %1188 = vmatpush.msra.mxu0 0.0
  %1189 = vmatpush.msra.mxu0 0.0
  %1190 = vmatpush.msra.mxu0 0.0
  %1191 = vmatpush.msra.mxu0 0.0
  %1192 = vmatpush.msra.mxu0 0.0
  %1193 = vmatpush.msra.mxu0 0.0
  %1194 = vmatpush.msra.mxu0 0.0
  %1195 = vmatpush.msra.mxu0 0.0
  %1196 = vmatpush.msra.mxu0 0.0
  %1197 = vmatpush.msra.mxu0 0.0
  %1198 = vmatpush.msra.mxu0 0.0
  %1199 = vmatpush.msra.mxu0 %v38
  %1200 = vmatpush.msra.mxu0 %v37
  %1201 = vmatmul.f32.gmra.mxu0 %v1183
  %v1202 = vpop.f32.mrf.mxu0
  %v1203 = vadd.f32 0.0, %v1202
  %1204 = vdwg.mxu0
  %1206 = vrot.lane.b32.xlu0 %v1114, 112
  %v1207 = vpop.permute.xlu0 %1206
  %v1208 = vsel %vm427, %v1207, 0
  %1210 = vmatpush.msra.mxu0 0.0
  %1211 = vmatpush.msra.mxu0 0.0
  %1212 = vmatpush.msra.mxu0 0.0
  %1213 = vmatpush.msra.mxu0 0.0
  %1214 = vmatpush.msra.mxu0 0.0
  %1215 = vmatpush.msra.mxu0 0.0
  %1216 = vmatpush.msra.mxu0 0.0
  %1217 = vmatpush.msra.mxu0 0.0
  %1218 = vmatpush.msra.mxu0 0.0
  %1219 = vmatpush.msra.mxu0 0.0
  %1220 = vmatpush.msra.mxu0 0.0
  %1221 = vmatpush.msra.mxu0 0.0
  %1222 = vmatpush.msra.mxu0 0.0
  %1223 = vmatpush.msra.mxu0 0.0
  %1224 = vmatpush.msra.mxu0 %v36
  %1225 = vmatpush.msra.mxu0 %v35
  %1226 = vmatmul.f32.gmra.mxu0 %v1208
  %v1227 = vpop.f32.mrf.mxu0
  %v1228 = vadd.f32 %v1203, %v1227
  %1229 = vdwg.mxu0
  %v1230 = vadd.f32 %v1228, %v535
  %v1232 = vrot.slane %v1230, 1
  %v1233 = vperm.slane %v1230, 0
  %v1234 = vperm.slane %v1232, 0
  %v1237 = vadd.f32 %v415, %v1233
  %v1238 = vadd.f32 %v416, %v1234
  %v1239 = vtanh.pop %v1237
  %v1240 = vtanh.pop %v1238
  %v1241 = vmul.f32 %v1239, %v547
  %v1242 = vmul.f32 %v1240, %v547
  %v1243 = vsel %vm550, %v1241, 0.0
  %1244 = vadd.xlane.f32.xlu0 %v1243
  %v1245 = vpop.xlane.xlu0 %1244
  %v1246 = vsel %vm550, %v1242, 0.0
  %1247 = vadd.xlane.f32.xlu0 %v1246
  %v1248 = vpop.xlane.xlu0 %1247
  %v1251 = vperm.slane %v1245, %v560
  %v1252 = vperm.slane %v1248, %v560
  %v1255 = vmul.f32 %v51, %v1251
  %v1256 = vmul.f32 %v52, %v1252
  %v1259 = vrot.slane %v1255, 3
  %v1260 = vrot.slane %v1256, 2
  %v1261 = vsel %vm571, %v1260, %v1259
  %v1262 = vsel %vm573, %v1261, 0
  %1264 = vmatpush.msra.mxu0 0.0
  %1265 = vmatpush.msra.mxu0 0.0
  %1266 = vmatpush.msra.mxu0 0.0
  %1267 = vmatpush.msra.mxu0 0.0
  %1268 = vmatpush.msra.mxu0 0.0
  %1269 = vmatpush.msra.mxu0 0.0
  %1270 = vmatpush.msra.mxu0 0.0
  %1271 = vmatpush.msra.mxu0 0.0
  %1272 = vmatpush.msra.mxu0 0.0
  %1273 = vmatpush.msra.mxu0 0.0
  %1274 = vmatpush.msra.mxu0 0.0
  %1275 = vmatpush.msra.mxu0 0.0
  %1276 = vmatpush.msra.mxu0 0.0
  %1277 = vmatpush.msra.mxu0 0.0
  %1278 = vmatpush.msra.mxu0 0.0
  %1279 = vmatpush.msra.mxu0 %v578
  %1280 = vmatmul.f32.gmra.mxu0 %v1262
  %v1281 = vpop.f32.mrf.mxu0
  %v1282 = vadd.f32 %v567, %v1281
  %1283 = vdwg.mxu0
  %1284 = vmatpush.msra.mxu0 0.0
  %1285 = vmatpush.msra.mxu0 0.0
  %1286 = vmatpush.msra.mxu0 0.0
  %1287 = vmatpush.msra.mxu0 0.0
  %1288 = vmatpush.msra.mxu0 0.0
  %1289 = vmatpush.msra.mxu0 0.0
  %1290 = vmatpush.msra.mxu0 0.0
  %1291 = vmatpush.msra.mxu0 0.0
  %1292 = vmatpush.msra.mxu0 0.0
  %1293 = vmatpush.msra.mxu0 0.0
  %1294 = vmatpush.msra.mxu0 0.0
  %1295 = vmatpush.msra.mxu0 0.0
  %1296 = vmatpush.msra.mxu0 0.0
  %1297 = vmatpush.msra.mxu0 0.0
  %1298 = vmatpush.msra.mxu0 %v27
  %1299 = vmatpush.msra.mxu0 %v26
  %1300 = vmatmul.f32.gmra.mxu0 %v1208
  %v1301 = vpop.f32.mrf.mxu0
  %v1302 = vadd.f32 %v600, %v1301
  %1303 = vdwg.mxu0
  %v1304 = vadd.f32 %v1282, %v1302
  %v1305 = vxor.u32 %v1304, 2147483648
  %v1306 = vmul.f32 %v1305, 1.442695
  %v1307 = vpow.pop %v1306
  %v1308 = vadd.f32 %v1307, 1.0
  %v1309 = vrcp.pop %v1308
  %v1310 = vmul.f32 %v1308, %v1309
  %v1311 = vsub.f32 1.0, %v1310
  %v1312 = vmul.f32 %v1309, %v1311
  %v1313 = vadd.f32 %v1309, %v1312
  %vm1314 = vweird.f32 %v1308
  %vm1315 = vweird.f32 %v1309
  %vm1316 = vmor %vm1314, %vm1315
  %v1317 = vsel %vm1316, %v1309, %v1313
  %v1318 = vand.u32 2147483647, %v1308
  %vm1319 = vcmp.eq.f32.partialorder %v1318, 8.507059e+37
  %v1320 = vand.u32 %v1308, 2147483648
  %v1321 = vor.u32 1.1754944e-38, %v1320
  %v1322 = vsel %vm1319, %v1321, %v1317
  %v1323 = vmul.f32 1.0, %v1322
  %1325 = vrot.lane.b32.xlu0 %v1302, 96
  %v1326 = vpop.permute.xlu0 %1325
  %v1328 = vmul.f32 %v1323, %v1326
  %1330 = vrot.lane.b32.xlu0 %v1328, 32
  %v1331 = vpop.permute.xlu0 %1330
  %v1333 = vadd.f32 %v1282, %v1331
  %v1334 = vtanh.pop %v1333
  %v1335 = vsub.f32 1.0, %v1323
  %1337 = vrot.lane.b32.xlu0 %v1334, 112
  %v1338 = vpop.permute.xlu0 %1337
  %v1340 = vmul.f32 %v1335, %v1338
  %v1341 = vmul.f32 %v1323, %v1114
  %v1342 = vadd.f32 %v1340, %v1341
  %1343 = vset.pattern.permute.xlu0 4
  %1344 = vperm.xlu0 %1343, %v53
  %v1345 = vpop.permute.xlu0 %1344
  %v1347 = vmul.f32 %v1345, %v422
  %v1348 = vadd.f32 %v1347, %v424
  %1349 = vmatpush.msra.mxu0 0.0
  %1350 = vmatpush.msra.mxu0 0.0
  %1351 = vmatpush.msra.mxu0 0.0
  %1352 = vmatpush.msra.mxu0 0.0
  %1353 = vmatpush.msra.mxu0 0.0
  %1354 = vmatpush.msra.mxu0 0.0
  %1355 = vmatpush.msra.mxu0 0.0
  %1356 = vmatpush.msra.mxu0 0.0
  %1357 = vmatpush.msra.mxu0 0.0
  %1358 = vmatpush.msra.mxu0 0.0
  %1359 = vmatpush.msra.mxu0 0.0
  %1360 = vmatpush.msra.mxu0 0.0
  %1361 = vmatpush.msra.mxu0 0.0
  %1362 = vmatpush.msra.mxu0 0.0
  %1363 = vmatpush.msra.mxu0 %v22
  %1364 = vmatpush.msra.mxu0 %v21
  %1365 = vmatmul.f32.gmra.mxu0 %v1183
  %v1366 = vpop.f32.mrf.mxu0
  %v1367 = vadd.f32 %v426, %v1366
  %1368 = vdwg.mxu0
  %v1369 = vadd.f32 %v1348, %v1367
  %v1370 = vxor.u32 %v1369, 2147483648
  %v1371 = vmul.f32 %v1370, 1.442695
  %v1372 = vpow.pop %v1371
  %v1373 = vadd.f32 %v1372, 1.0
  %v1374 = vrcp.pop %v1373
  %v1375 = vmul.f32 %v1373, %v1374
  %v1376 = vsub.f32 1.0, %v1375
  %v1377 = vmul.f32 %v1374, %v1376
  %v1378 = vadd.f32 %v1374, %v1377
  %vm1379 = vweird.f32 %v1373
  %vm1380 = vweird.f32 %v1374
  %vm1381 = vmor %vm1379, %vm1380
  %v1382 = vsel %vm1381, %v1374, %v1378
  %v1383 = vand.u32 2147483647, %v1373
  %vm1384 = vcmp.eq.f32.partialorder %v1383, 8.507059e+37
  %v1385 = vand.u32 %v1373, 2147483648
  %v1386 = vor.u32 1.1754944e-38, %v1385
  %v1387 = vsel %vm1384, %v1386, %v1382
  %v1388 = vmul.f32 1.0, %v1387
  %1390 = vrot.lane.b32.xlu0 %v1367, 96
  %v1391 = vpop.permute.xlu0 %1390
  %v1393 = vmul.f32 %v1388, %v1391
  %1395 = vrot.lane.b32.xlu0 %v1393, 32
  %v1396 = vpop.permute.xlu0 %1395
  %v1398 = vadd.f32 %v1348, %v1396
  %v1399 = vtanh.pop %v1398
  %v1400 = vsub.f32 1.0, %v1388
  %1402 = vrot.lane.b32.xlu0 %v1399, 112
  %v1403 = vpop.permute.xlu0 %1402
  %v1405 = vmul.f32 %v1400, %v1403
  %v1406 = vmul.f32 %v1388, %v1179
  %v1407 = vadd.f32 %v1405, %v1406
  %1409 = vrot.lane.b32.xlu0 %v1407, 112
  %v1410 = vpop.permute.xlu0 %1409
  %v1411 = vsel %vm427, %v1410, 0
  %1413 = vmatpush.msra.mxu0 0.0
  %1414 = vmatpush.msra.mxu0 0.0
  %1415 = vmatpush.msra.mxu0 0.0
  %1416 = vmatpush.msra.mxu0 0.0
  %1417 = vmatpush.msra.mxu0 0.0
  %1418 = vmatpush.msra.mxu0 0.0
  %1419 = vmatpush.msra.mxu0 0.0
  %1420 = vmatpush.msra.mxu0 0.0
  %1421 = vmatpush.msra.mxu0 0.0
  %1422 = vmatpush.msra.mxu0 0.0
  %1423 = vmatpush.msra.mxu0 0.0
  %1424 = vmatpush.msra.mxu0 0.0
  %1425 = vmatpush.msra.mxu0 0.0
  %1426 = vmatpush.msra.mxu0 0.0
  %1427 = vmatpush.msra.mxu0 %v38
  %1428 = vmatpush.msra.mxu0 %v37
  %1429 = vmatmul.f32.gmra.mxu0 %v1411
  %v1430 = vpop.f32.mrf.mxu0
  %v1431 = vadd.f32 0.0, %v1430
  %1432 = vdwg.mxu0
  %1434 = vrot.lane.b32.xlu0 %v1342, 112
  %v1435 = vpop.permute.xlu0 %1434
  %v1436 = vsel %vm427, %v1435, 0
  %1438 = vmatpush.msra.mxu0 0.0
  %1439 = vmatpush.msra.mxu0 0.0
  %1440 = vmatpush.msra.mxu0 0.0
  %1441 = vmatpush.msra.mxu0 0.0
  %1442 = vmatpush.msra.mxu0 0.0
  %1443 = vmatpush.msra.mxu0 0.0
  %1444 = vmatpush.msra.mxu0 0.0
  %1445 = vmatpush.msra.mxu0 0.0
  %1446 = vmatpush.msra.mxu0 0.0
  %1447 = vmatpush.msra.mxu0 0.0
  %1448 = vmatpush.msra.mxu0 0.0
  %1449 = vmatpush.msra.mxu0 0.0
  %1450 = vmatpush.msra.mxu0 0.0
  %1451 = vmatpush.msra.mxu0 0.0
  %1452 = vmatpush.msra.mxu0 %v36
  %1453 = vmatpush.msra.mxu0 %v35
  %1454 = vmatmul.f32.gmra.mxu0 %v1436
  %v1455 = vpop.f32.mrf.mxu0
  %v1456 = vadd.f32 %v1431, %v1455
  %1457 = vdwg.mxu0
  %v1458 = vadd.f32 %v1456, %v535
  %v1460 = vrot.slane %v1458, 1
  %v1461 = vperm.slane %v1458, 0
  %v1462 = vperm.slane %v1460, 0
  %v1465 = vadd.f32 %v415, %v1461
  %v1466 = vadd.f32 %v416, %v1462
  %v1467 = vtanh.pop %v1465
  %v1468 = vtanh.pop %v1466
  %v1469 = vmul.f32 %v1467, %v547
  %v1470 = vmul.f32 %v1468, %v547
  %v1471 = vsel %vm550, %v1469, 0.0
  %1472 = vadd.xlane.f32.xlu0 %v1471
  %v1473 = vpop.xlane.xlu0 %1472
  %v1474 = vsel %vm550, %v1470, 0.0
  %1475 = vadd.xlane.f32.xlu0 %v1474
  %v1476 = vpop.xlane.xlu0 %1475
  %v1479 = vperm.slane %v1473, %v560
  %v1480 = vperm.slane %v1476, %v560
  %v1483 = vmul.f32 %v51, %v1479
  %v1484 = vmul.f32 %v52, %v1480
  %v1487 = vrot.slane %v1483, 4
  %v1488 = vrot.slane %v1484, 3
  %v1489 = vsel %vm571, %v1488, %v1487
  %v1490 = vsel %vm573, %v1489, 0
  %1492 = vmatpush.msra.mxu0 0.0
  %1493 = vmatpush.msra.mxu0 0.0
  %1494 = vmatpush.msra.mxu0 0.0
  %1495 = vmatpush.msra.mxu0 0.0
  %1496 = vmatpush.msra.mxu0 0.0
  %1497 = vmatpush.msra.mxu0 0.0
  %1498 = vmatpush.msra.mxu0 0.0
  %1499 = vmatpush.msra.mxu0 0.0
  %1500 = vmatpush.msra.mxu0 0.0
  %1501 = vmatpush.msra.mxu0 0.0
  %1502 = vmatpush.msra.mxu0 0.0
  %1503 = vmatpush.msra.mxu0 0.0
  %1504 = vmatpush.msra.mxu0 0.0
  %1505 = vmatpush.msra.mxu0 0.0
  %1506 = vmatpush.msra.mxu0 0.0
  %1507 = vmatpush.msra.mxu0 %v578
  %1508 = vmatmul.f32.gmra.mxu0 %v1490
  %v1509 = vpop.f32.mrf.mxu0
  %v1510 = vadd.f32 %v567, %v1509
  %1511 = vdwg.mxu0
  %1512 = vmatpush.msra.mxu0 0.0
  %1513 = vmatpush.msra.mxu0 0.0
  %1514 = vmatpush.msra.mxu0 0.0
  %1515 = vmatpush.msra.mxu0 0.0
  %1516 = vmatpush.msra.mxu0 0.0
  %1517 = vmatpush.msra.mxu0 0.0
  %1518 = vmatpush.msra.mxu0 0.0
  %1519 = vmatpush.msra.mxu0 0.0
  %1520 = vmatpush.msra.mxu0 0.0
  %1521 = vmatpush.msra.mxu0 0.0
  %1522 = vmatpush.msra.mxu0 0.0
  %1523 = vmatpush.msra.mxu0 0.0
  %1524 = vmatpush.msra.mxu0 0.0
  %1525 = vmatpush.msra.mxu0 0.0
  %1526 = vmatpush.msra.mxu0 %v27
  %1527 = vmatpush.msra.mxu0 %v26
  %1528 = vmatmul.f32.gmra.mxu0 %v1436
  %v1529 = vpop.f32.mrf.mxu0
  %v1530 = vadd.f32 %v600, %v1529
  %1531 = vdwg.mxu0
  %v1532 = vadd.f32 %v1510, %v1530
  %v1533 = vxor.u32 %v1532, 2147483648
  %v1534 = vmul.f32 %v1533, 1.442695
  %v1535 = vpow.pop %v1534
  %v1536 = vadd.f32 %v1535, 1.0
  %v1537 = vrcp.pop %v1536
  %v1538 = vmul.f32 %v1536, %v1537
  %v1539 = vsub.f32 1.0, %v1538
  %v1540 = vmul.f32 %v1537, %v1539
  %v1541 = vadd.f32 %v1537, %v1540
  %vm1542 = vweird.f32 %v1536
  %vm1543 = vweird.f32 %v1537
  %vm1544 = vmor %vm1542, %vm1543
  %v1545 = vsel %vm1544, %v1537, %v1541
  %v1546 = vand.u32 2147483647, %v1536
  %vm1547 = vcmp.eq.f32.partialorder %v1546, 8.507059e+37
  %v1548 = vand.u32 %v1536, 2147483648
  %v1549 = vor.u32 1.1754944e-38, %v1548
  %v1550 = vsel %vm1547, %v1549, %v1545
  %v1551 = vmul.f32 1.0, %v1550
  %1553 = vrot.lane.b32.xlu0 %v1530, 96
  %v1554 = vpop.permute.xlu0 %1553
  %v1556 = vmul.f32 %v1551, %v1554
  %1558 = vrot.lane.b32.xlu0 %v1556, 32
  %v1559 = vpop.permute.xlu0 %1558
  %v1561 = vadd.f32 %v1510, %v1559
  %v1562 = vtanh.pop %v1561
  %v1563 = vsub.f32 1.0, %v1551
  %1565 = vrot.lane.b32.xlu0 %v1562, 112
  %v1566 = vpop.permute.xlu0 %1565
  %v1568 = vmul.f32 %v1563, %v1566
  %v1569 = vmul.f32 %v1551, %v1342
  %v1570 = vadd.f32 %v1568, %v1569
  %1571 = vset.pattern.permute.xlu0 5
  %1572 = vperm.xlu0 %1571, %v53
  %v1573 = vpop.permute.xlu0 %1572
  %v1575 = vmul.f32 %v1573, %v422
  %v1576 = vadd.f32 %v1575, %v424
  %1577 = vmatpush.msra.mxu0 0.0
  %1578 = vmatpush.msra.mxu0 0.0
  %1579 = vmatpush.msra.mxu0 0.0
  %1580 = vmatpush.msra.mxu0 0.0
  %1581 = vmatpush.msra.mxu0 0.0
  %1582 = vmatpush.msra.mxu0 0.0
  %1583 = vmatpush.msra.mxu0 0.0
  %1584 = vmatpush.msra.mxu0 0.0
  %1585 = vmatpush.msra.mxu0 0.0
  %1586 = vmatpush.msra.mxu0 0.0
  %1587 = vmatpush.msra.mxu0 0.0
  %1588 = vmatpush.msra.mxu0 0.0
  %1589 = vmatpush.msra.mxu0 0.0
  %1590 = vmatpush.msra.mxu0 0.0
  %1591 = vmatpush.msra.mxu0 %v22
  %1592 = vmatpush.msra.mxu0 %v21
  %1593 = vmatmul.f32.gmra.mxu0 %v1411
  %v1594 = vpop.f32.mrf.mxu0
  %v1595 = vadd.f32 %v426, %v1594
  %1596 = vdwg.mxu0
  %v1597 = vadd.f32 %v1576, %v1595
  %v1598 = vxor.u32 %v1597, 2147483648
  %v1599 = vmul.f32 %v1598, 1.442695
  %v1600 = vpow.pop %v1599
  %v1601 = vadd.f32 %v1600, 1.0
  %v1602 = vrcp.pop %v1601
  %v1603 = vmul.f32 %v1601, %v1602
  %v1604 = vsub.f32 1.0, %v1603
  %v1605 = vmul.f32 %v1602, %v1604
  %v1606 = vadd.f32 %v1602, %v1605
  %vm1607 = vweird.f32 %v1601
  %vm1608 = vweird.f32 %v1602
  %vm1609 = vmor %vm1607, %vm1608
  %v1610 = vsel %vm1609, %v1602, %v1606
  %v1611 = vand.u32 2147483647, %v1601
  %vm1612 = vcmp.eq.f32.partialorder %v1611, 8.507059e+37
  %v1613 = vand.u32 %v1601, 2147483648
  %v1614 = vor.u32 1.1754944e-38, %v1613
  %v1615 = vsel %vm1612, %v1614, %v1610
  %v1616 = vmul.f32 1.0, %v1615
  %1618 = vrot.lane.b32.xlu0 %v1595, 96
  %v1619 = vpop.permute.xlu0 %1618
  %v1621 = vmul.f32 %v1616, %v1619
  %1623 = vrot.lane.b32.xlu0 %v1621, 32
  %v1624 = vpop.permute.xlu0 %1623
  %v1626 = vadd.f32 %v1576, %v1624
  %v1627 = vtanh.pop %v1626
  %v1628 = vsub.f32 1.0, %v1616
  %1630 = vrot.lane.b32.xlu0 %v1627, 112
  %v1631 = vpop.permute.xlu0 %1630
  %v1633 = vmul.f32 %v1628, %v1631
  %v1634 = vmul.f32 %v1616, %v1407
  %v1635 = vadd.f32 %v1633, %v1634
  %1637 = vrot.lane.b32.xlu0 %v1635, 112
  %v1638 = vpop.permute.xlu0 %1637
  %v1639 = vsel %vm427, %v1638, 0
  %1641 = vmatpush.msra.mxu0 0.0
  %1642 = vmatpush.msra.mxu0 0.0
  %1643 = vmatpush.msra.mxu0 0.0
  %1644 = vmatpush.msra.mxu0 0.0
  %1645 = vmatpush.msra.mxu0 0.0
  %1646 = vmatpush.msra.mxu0 0.0
  %1647 = vmatpush.msra.mxu0 0.0
  %1648 = vmatpush.msra.mxu0 0.0
  %1649 = vmatpush.msra.mxu0 0.0
  %1650 = vmatpush.msra.mxu0 0.0
  %1651 = vmatpush.msra.mxu0 0.0
  %1652 = vmatpush.msra.mxu0 0.0
  %1653 = vmatpush.msra.mxu0 0.0
  %1654 = vmatpush.msra.mxu0 0.0
  %1655 = vmatpush.msra.mxu0 %v38
  %1656 = vmatpush.msra.mxu0 %v37
  %1657 = vmatmul.f32.gmra.mxu0 %v1639
  %v1658 = vpop.f32.mrf.mxu0
  %v1659 = vadd.f32 0.0, %v1658
  %1660 = vdwg.mxu0
  %1662 = vrot.lane.b32.xlu0 %v1570, 112
  %v1663 = vpop.permute.xlu0 %1662
  %v1664 = vsel %vm427, %v1663, 0
  %1666 = vmatpush.msra.mxu0 0.0
  %1667 = vmatpush.msra.mxu0 0.0
  %1668 = vmatpush.msra.mxu0 0.0
  %1669 = vmatpush.msra.mxu0 0.0
  %1670 = vmatpush.msra.mxu0 0.0
  %1671 = vmatpush.msra.mxu0 0.0
  %1672 = vmatpush.msra.mxu0 0.0
  %1673 = vmatpush.msra.mxu0 0.0
  %1674 = vmatpush.msra.mxu0 0.0
  %1675 = vmatpush.msra.mxu0 0.0
  %1676 = vmatpush.msra.mxu0 0.0
  %1677 = vmatpush.msra.mxu0 0.0
  %1678 = vmatpush.msra.mxu0 0.0
  %1679 = vmatpush.msra.mxu0 0.0
  %1680 = vmatpush.msra.mxu0 %v36
  %1681 = vmatpush.msra.mxu0 %v35
  %1682 = vmatmul.f32.gmra.mxu0 %v1664
  %v1683 = vpop.f32.mrf.mxu0
  %v1684 = vadd.f32 %v1659, %v1683
  %1685 = vdwg.mxu0
  %v1686 = vadd.f32 %v1684, %v535
  %v1688 = vrot.slane %v1686, 1
  %v1689 = vperm.slane %v1686, 0
  %v1690 = vperm.slane %v1688, 0
  %v1693 = vadd.f32 %v415, %v1689
  %v1694 = vadd.f32 %v416, %v1690
  %v1695 = vtanh.pop %v1693
  %v1696 = vtanh.pop %v1694
  %v1697 = vmul.f32 %v1695, %v547
  %v1698 = vmul.f32 %v1696, %v547
  %v1699 = vsel %vm550, %v1697, 0.0
  %1700 = vadd.xlane.f32.xlu0 %v1699
  %v1701 = vpop.xlane.xlu0 %1700
  %v1702 = vsel %vm550, %v1698, 0.0
  %1703 = vadd.xlane.f32.xlu0 %v1702
  %v1704 = vpop.xlane.xlu0 %1703
  %v1707 = vperm.slane %v1701, %v560
  %v1708 = vperm.slane %v1704, %v560
  %v1711 = vmul.f32 %v51, %v1707
  %v1712 = vmul.f32 %v52, %v1708
  %v1715 = vrot.slane %v1711, 5
  %v1716 = vrot.slane %v1712, 4
  %v1717 = vsel %vm571, %v1716, %v1715
  %v1718 = vsel %vm573, %v1717, 0
  %1720 = vmatpush.msra.mxu0 0.0
  %1721 = vmatpush.msra.mxu0 0.0
  %1722 = vmatpush.msra.mxu0 0.0
  %1723 = vmatpush.msra.mxu0 0.0
  %1724 = vmatpush.msra.mxu0 0.0
  %1725 = vmatpush.msra.mxu0 0.0
  %1726 = vmatpush.msra.mxu0 0.0
  %1727 = vmatpush.msra.mxu0 0.0
  %1728 = vmatpush.msra.mxu0 0.0
  %1729 = vmatpush.msra.mxu0 0.0
  %1730 = vmatpush.msra.mxu0 0.0
  %1731 = vmatpush.msra.mxu0 0.0
  %1732 = vmatpush.msra.mxu0 0.0
  %1733 = vmatpush.msra.mxu0 0.0
  %1734 = vmatpush.msra.mxu0 0.0
  %1735 = vmatpush.msra.mxu0 %v578
  %1736 = vmatmul.f32.gmra.mxu0 %v1718
  %v1737 = vpop.f32.mrf.mxu0
  %v1738 = vadd.f32 %v567, %v1737
  %1739 = vdwg.mxu0
  %1740 = vmatpush.msra.mxu0 0.0
  %1741 = vmatpush.msra.mxu0 0.0
  %1742 = vmatpush.msra.mxu0 0.0
  %1743 = vmatpush.msra.mxu0 0.0
  %1744 = vmatpush.msra.mxu0 0.0
  %1745 = vmatpush.msra.mxu0 0.0
  %1746 = vmatpush.msra.mxu0 0.0
  %1747 = vmatpush.msra.mxu0 0.0
  %1748 = vmatpush.msra.mxu0 0.0
  %1749 = vmatpush.msra.mxu0 0.0
  %1750 = vmatpush.msra.mxu0 0.0
  %1751 = vmatpush.msra.mxu0 0.0
  %1752 = vmatpush.msra.mxu0 0.0
  %1753 = vmatpush.msra.mxu0 0.0
  %1754 = vmatpush.msra.mxu0 %v27
  %1755 = vmatpush.msra.mxu0 %v26
  %1756 = vmatmul.f32.gmra.mxu0 %v1664
  %v1757 = vpop.f32.mrf.mxu0
  %v1758 = vadd.f32 %v600, %v1757
  %1759 = vdwg.mxu0
  %v1760 = vadd.f32 %v1738, %v1758
  %v1761 = vxor.u32 %v1760, 2147483648
  %v1762 = vmul.f32 %v1761, 1.442695
  %v1763 = vpow.pop %v1762
  %v1764 = vadd.f32 %v1763, 1.0
  %v1765 = vrcp.pop %v1764
  %v1766 = vmul.f32 %v1764, %v1765
  %v1767 = vsub.f32 1.0, %v1766
  %v1768 = vmul.f32 %v1765, %v1767
  %v1769 = vadd.f32 %v1765, %v1768
  %vm1770 = vweird.f32 %v1764
  %vm1771 = vweird.f32 %v1765
  %vm1772 = vmor %vm1770, %vm1771
  %v1773 = vsel %vm1772, %v1765, %v1769
  %v1774 = vand.u32 2147483647, %v1764
  %vm1775 = vcmp.eq.f32.partialorder %v1774, 8.507059e+37
  %v1776 = vand.u32 %v1764, 2147483648
  %v1777 = vor.u32 1.1754944e-38, %v1776
  %v1778 = vsel %vm1775, %v1777, %v1773
  %v1779 = vmul.f32 1.0, %v1778
  %1781 = vrot.lane.b32.xlu0 %v1758, 96
  %v1782 = vpop.permute.xlu0 %1781
  %v1784 = vmul.f32 %v1779, %v1782
  %1786 = vrot.lane.b32.xlu0 %v1784, 32
  %v1787 = vpop.permute.xlu0 %1786
  %v1789 = vadd.f32 %v1738, %v1787
  %v1790 = vtanh.pop %v1789
  %v1791 = vsub.f32 1.0, %v1779
  %1793 = vrot.lane.b32.xlu0 %v1790, 112
  %v1794 = vpop.permute.xlu0 %1793
  %v1796 = vmul.f32 %v1791, %v1794
  %v1797 = vmul.f32 %v1779, %v1570
  %v1798 = vadd.f32 %v1796, %v1797
  %1799 = vset.pattern.permute.xlu0 6
  %1800 = vperm.xlu0 %1799, %v53
  %v1801 = vpop.permute.xlu0 %1800
  %v1803 = vmul.f32 %v1801, %v422
  %v1804 = vadd.f32 %v1803, %v424
  %1805 = vmatpush.msra.mxu0 0.0
  %1806 = vmatpush.msra.mxu0 0.0
  %1807 = vmatpush.msra.mxu0 0.0
  %1808 = vmatpush.msra.mxu0 0.0
  %1809 = vmatpush.msra.mxu0 0.0
  %1810 = vmatpush.msra.mxu0 0.0
  %1811 = vmatpush.msra.mxu0 0.0
  %1812 = vmatpush.msra.mxu0 0.0
  %1813 = vmatpush.msra.mxu0 0.0
  %1814 = vmatpush.msra.mxu0 0.0
  %1815 = vmatpush.msra.mxu0 0.0
  %1816 = vmatpush.msra.mxu0 0.0
  %1817 = vmatpush.msra.mxu0 0.0
  %1818 = vmatpush.msra.mxu0 0.0
  %1819 = vmatpush.msra.mxu0 %v22
  %1820 = vmatpush.msra.mxu0 %v21
  %1821 = vmatmul.f32.gmra.mxu0 %v1639
  %v1822 = vpop.f32.mrf.mxu0
  %v1823 = vadd.f32 %v426, %v1822
  %1824 = vdwg.mxu0
  %v1825 = vadd.f32 %v1804, %v1823
  %v1826 = vxor.u32 %v1825, 2147483648
  %v1827 = vmul.f32 %v1826, 1.442695
  %v1828 = vpow.pop %v1827
  %v1829 = vadd.f32 %v1828, 1.0
  %v1830 = vrcp.pop %v1829
  %v1831 = vmul.f32 %v1829, %v1830
  %v1832 = vsub.f32 1.0, %v1831
  %v1833 = vmul.f32 %v1830, %v1832
  %v1834 = vadd.f32 %v1830, %v1833
  %vm1835 = vweird.f32 %v1829
  %vm1836 = vweird.f32 %v1830
  %vm1837 = vmor %vm1835, %vm1836
  %v1838 = vsel %vm1837, %v1830, %v1834
  %v1839 = vand.u32 2147483647, %v1829
  %vm1840 = vcmp.eq.f32.partialorder %v1839, 8.507059e+37
  %v1841 = vand.u32 %v1829, 2147483648
  %v1842 = vor.u32 1.1754944e-38, %v1841
  %v1843 = vsel %vm1840, %v1842, %v1838
  %v1844 = vmul.f32 1.0, %v1843
  %1846 = vrot.lane.b32.xlu0 %v1823, 96
  %v1847 = vpop.permute.xlu0 %1846
  %v1849 = vmul.f32 %v1844, %v1847
  %1851 = vrot.lane.b32.xlu0 %v1849, 32
  %v1852 = vpop.permute.xlu0 %1851
  %v1854 = vadd.f32 %v1804, %v1852
  %v1855 = vtanh.pop %v1854
  %v1856 = vsub.f32 1.0, %v1844
  %1858 = vrot.lane.b32.xlu0 %v1855, 112
  %v1859 = vpop.permute.xlu0 %1858
  %v1861 = vmul.f32 %v1856, %v1859
  %v1862 = vmul.f32 %v1844, %v1635
  %v1863 = vadd.f32 %v1861, %v1862
  %1865 = vrot.lane.b32.xlu0 %v1863, 112
  %v1866 = vpop.permute.xlu0 %1865
  %v1867 = vsel %vm427, %v1866, 0
  %1869 = vmatpush.msra.mxu0 0.0
  %1870 = vmatpush.msra.mxu0 0.0
  %1871 = vmatpush.msra.mxu0 0.0
  %1872 = vmatpush.msra.mxu0 0.0
  %1873 = vmatpush.msra.mxu0 0.0
  %1874 = vmatpush.msra.mxu0 0.0
  %1875 = vmatpush.msra.mxu0 0.0
  %1876 = vmatpush.msra.mxu0 0.0
  %1877 = vmatpush.msra.mxu0 0.0
  %1878 = vmatpush.msra.mxu0 0.0
  %1879 = vmatpush.msra.mxu0 0.0
  %1880 = vmatpush.msra.mxu0 0.0
  %1881 = vmatpush.msra.mxu0 0.0
  %1882 = vmatpush.msra.mxu0 0.0
  %1883 = vmatpush.msra.mxu0 %v38
  %1884 = vmatpush.msra.mxu0 %v37
  %1885 = vmatmul.f32.gmra.mxu0 %v1867
  %v1886 = vpop.f32.mrf.mxu0
  %v1887 = vadd.f32 0.0, %v1886
  %1888 = vdwg.mxu0
  %1890 = vrot.lane.b32.xlu0 %v1798, 112
  %v1891 = vpop.permute.xlu0 %1890
  %v1892 = vsel %vm427, %v1891, 0
  %1894 = vmatpush.msra.mxu0 0.0
  %1895 = vmatpush.msra.mxu0 0.0
  %1896 = vmatpush.msra.mxu0 0.0
  %1897 = vmatpush.msra.mxu0 0.0
  %1898 = vmatpush.msra.mxu0 0.0
  %1899 = vmatpush.msra.mxu0 0.0
  %1900 = vmatpush.msra.mxu0 0.0
  %1901 = vmatpush.msra.mxu0 0.0
  %1902 = vmatpush.msra.mxu0 0.0
  %1903 = vmatpush.msra.mxu0 0.0
  %1904 = vmatpush.msra.mxu0 0.0
  %1905 = vmatpush.msra.mxu0 0.0
  %1906 = vmatpush.msra.mxu0 0.0
  %1907 = vmatpush.msra.mxu0 0.0
  %1908 = vmatpush.msra.mxu0 %v36
  %1909 = vmatpush.msra.mxu0 %v35
  %1910 = vmatmul.f32.gmra.mxu0 %v1892
  %v1911 = vpop.f32.mrf.mxu0
  %v1912 = vadd.f32 %v1887, %v1911
  %1913 = vdwg.mxu0
  %v1914 = vadd.f32 %v1912, %v535
  %v1916 = vrot.slane %v1914, 1
  %v1917 = vperm.slane %v1914, 0
  %v1918 = vperm.slane %v1916, 0
  %v1921 = vadd.f32 %v415, %v1917
  %v1922 = vadd.f32 %v416, %v1918
  %v1923 = vtanh.pop %v1921
  %v1924 = vtanh.pop %v1922
  %v1925 = vmul.f32 %v1923, %v547
  %v1926 = vmul.f32 %v1924, %v547
  %v1927 = vsel %vm550, %v1925, 0.0
  %1928 = vadd.xlane.f32.xlu0 %v1927
  %v1929 = vpop.xlane.xlu0 %1928
  %v1930 = vsel %vm550, %v1926, 0.0
  %1931 = vadd.xlane.f32.xlu0 %v1930
  %v1932 = vpop.xlane.xlu0 %1931
  %v1935 = vperm.slane %v1929, %v560
  %v1936 = vperm.slane %v1932, %v560
  %v1939 = vmul.f32 %v51, %v1935
  %v1940 = vmul.f32 %v52, %v1936
  %v1943 = vrot.slane %v1939, 6
  %v1944 = vrot.slane %v1940, 5
  %v1945 = vsel %vm571, %v1944, %v1943
  %v1946 = vsel %vm573, %v1945, 0
  %1948 = vmatpush.msra.mxu0 0.0
  %1949 = vmatpush.msra.mxu0 0.0
  %1950 = vmatpush.msra.mxu0 0.0
  %1951 = vmatpush.msra.mxu0 0.0
  %1952 = vmatpush.msra.mxu0 0.0
  %1953 = vmatpush.msra.mxu0 0.0
  %1954 = vmatpush.msra.mxu0 0.0
  %1955 = vmatpush.msra.mxu0 0.0
  %1956 = vmatpush.msra.mxu0 0.0
  %1957 = vmatpush.msra.mxu0 0.0
  %1958 = vmatpush.msra.mxu0 0.0
  %1959 = vmatpush.msra.mxu0 0.0
  %1960 = vmatpush.msra.mxu0 0.0
  %1961 = vmatpush.msra.mxu0 0.0
  %1962 = vmatpush.msra.mxu0 0.0
  %1963 = vmatpush.msra.mxu0 %v578
  %1964 = vmatmul.f32.gmra.mxu0 %v1946
  %v1965 = vpop.f32.mrf.mxu0
  %v1966 = vadd.f32 %v567, %v1965
  %1967 = vdwg.mxu0
  %1968 = vmatpush.msra.mxu0 0.0
  %1969 = vmatpush.msra.mxu0 0.0
  %1970 = vmatpush.msra.mxu0 0.0
  %1971 = vmatpush.msra.mxu0 0.0
  %1972 = vmatpush.msra.mxu0 0.0
  %1973 = vmatpush.msra.mxu0 0.0
  %1974 = vmatpush.msra.mxu0 0.0
  %1975 = vmatpush.msra.mxu0 0.0
  %1976 = vmatpush.msra.mxu0 0.0
  %1977 = vmatpush.msra.mxu0 0.0
  %1978 = vmatpush.msra.mxu0 0.0
  %1979 = vmatpush.msra.mxu0 0.0
  %1980 = vmatpush.msra.mxu0 0.0
  %1981 = vmatpush.msra.mxu0 0.0
  %1982 = vmatpush.msra.mxu0 %v27
  %1983 = vmatpush.msra.mxu0 %v26
  %1984 = vmatmul.f32.gmra.mxu0 %v1892
  %v1985 = vpop.f32.mrf.mxu0
  %v1986 = vadd.f32 %v600, %v1985
  %1987 = vdwg.mxu0
  %v1988 = vadd.f32 %v1966, %v1986
  %v1989 = vxor.u32 %v1988, 2147483648
  %v1990 = vmul.f32 %v1989, 1.442695
  %v1991 = vpow.pop %v1990
  %v1992 = vadd.f32 %v1991, 1.0
  %v1993 = vrcp.pop %v1992
  %v1994 = vmul.f32 %v1992, %v1993
  %v1995 = vsub.f32 1.0, %v1994
  %v1996 = vmul.f32 %v1993, %v1995
  %v1997 = vadd.f32 %v1993, %v1996
  %vm1998 = vweird.f32 %v1992
  %vm1999 = vweird.f32 %v1993
  %vm2000 = vmor %vm1998, %vm1999
  %v2001 = vsel %vm2000, %v1993, %v1997
  %v2002 = vand.u32 2147483647, %v1992
  %vm2003 = vcmp.eq.f32.partialorder %v2002, 8.507059e+37
  %v2004 = vand.u32 %v1992, 2147483648
  %v2005 = vor.u32 1.1754944e-38, %v2004
  %v2006 = vsel %vm2003, %v2005, %v2001
  %v2007 = vmul.f32 1.0, %v2006
  %2009 = vrot.lane.b32.xlu0 %v1986, 96
  %v2010 = vpop.permute.xlu0 %2009
  %v2012 = vmul.f32 %v2007, %v2010
  %2014 = vrot.lane.b32.xlu0 %v2012, 32
  %v2015 = vpop.permute.xlu0 %2014
  %v2017 = vadd.f32 %v1966, %v2015
  %v2018 = vtanh.pop %v2017
  %v2019 = vsub.f32 1.0, %v2007
  %2021 = vrot.lane.b32.xlu0 %v2018, 112
  %v2022 = vpop.permute.xlu0 %2021
  %v2024 = vmul.f32 %v2019, %v2022
  %v2025 = vmul.f32 %v2007, %v1798
  %v2026 = vadd.f32 %v2024, %v2025
  %2027 = vset.pattern.permute.xlu0 7
  %2028 = vperm.xlu0 %2027, %v53
  %v2029 = vpop.permute.xlu0 %2028
  %v2031 = vmul.f32 %v2029, %v422
  %v2032 = vadd.f32 %v2031, %v424
  %2033 = vmatpush.msra.mxu0 0.0
  %2034 = vmatpush.msra.mxu0 0.0
  %2035 = vmatpush.msra.mxu0 0.0
  %2036 = vmatpush.msra.mxu0 0.0
  %2037 = vmatpush.msra.mxu0 0.0
  %2038 = vmatpush.msra.mxu0 0.0
  %2039 = vmatpush.msra.mxu0 0.0
  %2040 = vmatpush.msra.mxu0 0.0
  %2041 = vmatpush.msra.mxu0 0.0
  %2042 = vmatpush.msra.mxu0 0.0
  %2043 = vmatpush.msra.mxu0 0.0
  %2044 = vmatpush.msra.mxu0 0.0
  %2045 = vmatpush.msra.mxu0 0.0
  %2046 = vmatpush.msra.mxu0 0.0
  %2047 = vmatpush.msra.mxu0 %v22
  %2048 = vmatpush.msra.mxu0 %v21
  %2049 = vmatmul.f32.gmra.mxu0 %v1867
  %v2050 = vpop.f32.mrf.mxu0
  %v2051 = vadd.f32 %v426, %v2050
  %2052 = vdwg.mxu0
  %v2053 = vadd.f32 %v2032, %v2051
  %v2054 = vxor.u32 %v2053, 2147483648
  %v2055 = vmul.f32 %v2054, 1.442695
  %v2056 = vpow.pop %v2055
  %v2057 = vadd.f32 %v2056, 1.0
  %v2058 = vrcp.pop %v2057
  %v2059 = vmul.f32 %v2057, %v2058
  %v2060 = vsub.f32 1.0, %v2059
  %v2061 = vmul.f32 %v2058, %v2060
  %v2062 = vadd.f32 %v2058, %v2061
  %vm2063 = vweird.f32 %v2057
  %vm2064 = vweird.f32 %v2058
  %vm2065 = vmor %vm2063, %vm2064
  %v2066 = vsel %vm2065, %v2058, %v2062
  %v2067 = vand.u32 2147483647, %v2057
  %vm2068 = vcmp.eq.f32.partialorder %v2067, 8.507059e+37
  %v2069 = vand.u32 %v2057, 2147483648
  %v2070 = vor.u32 1.1754944e-38, %v2069
  %v2071 = vsel %vm2068, %v2070, %v2066
  %v2072 = vmul.f32 1.0, %v2071
  %2074 = vrot.lane.b32.xlu0 %v2051, 96
  %v2075 = vpop.permute.xlu0 %2074
  %v2077 = vmul.f32 %v2072, %v2075
  %2079 = vrot.lane.b32.xlu0 %v2077, 32
  %v2080 = vpop.permute.xlu0 %2079
  %v2082 = vadd.f32 %v2032, %v2080
  %v2083 = vtanh.pop %v2082
  %v2084 = vsub.f32 1.0, %v2072
  %2086 = vrot.lane.b32.xlu0 %v2083, 112
  %v2087 = vpop.permute.xlu0 %2086
  %v2089 = vmul.f32 %v2084, %v2087
  %v2090 = vmul.f32 %v2072, %v1863
  %v2091 = vadd.f32 %v2089, %v2090
  %2093 = vrot.lane.b32.xlu0 %v2091, 112
  %v2094 = vpop.permute.xlu0 %2093
  %v2095 = vsel %vm427, %v2094, 0
  %2097 = vmatpush.msra.mxu0 0.0
  %2098 = vmatpush.msra.mxu0 0.0
  %2099 = vmatpush.msra.mxu0 0.0
  %2100 = vmatpush.msra.mxu0 0.0
  %2101 = vmatpush.msra.mxu0 0.0
  %2102 = vmatpush.msra.mxu0 0.0
  %2103 = vmatpush.msra.mxu0 0.0
  %2104 = vmatpush.msra.mxu0 0.0
  %2105 = vmatpush.msra.mxu0 0.0
  %2106 = vmatpush.msra.mxu0 0.0
  %2107 = vmatpush.msra.mxu0 0.0
  %2108 = vmatpush.msra.mxu0 0.0
  %2109 = vmatpush.msra.mxu0 0.0
  %2110 = vmatpush.msra.mxu0 0.0
  %2111 = vmatpush.msra.mxu0 %v38
  %2112 = vmatpush.msra.mxu0 %v37
  %2113 = vmatmul.f32.gmra.mxu0 %v2095
  %v2114 = vpop.f32.mrf.mxu0
  %v2115 = vadd.f32 0.0, %v2114
  %2116 = vdwg.mxu0
  %2118 = vrot.lane.b32.xlu0 %v2026, 112
  %v2119 = vpop.permute.xlu0 %2118
  %v2120 = vsel %vm427, %v2119, 0
  %2122 = vmatpush.msra.mxu0 0.0
  %2123 = vmatpush.msra.mxu0 0.0
  %2124 = vmatpush.msra.mxu0 0.0
  %2125 = vmatpush.msra.mxu0 0.0
  %2126 = vmatpush.msra.mxu0 0.0
  %2127 = vmatpush.msra.mxu0 0.0
  %2128 = vmatpush.msra.mxu0 0.0
  %2129 = vmatpush.msra.mxu0 0.0
  %2130 = vmatpush.msra.mxu0 0.0
  %2131 = vmatpush.msra.mxu0 0.0
  %2132 = vmatpush.msra.mxu0 0.0
  %2133 = vmatpush.msra.mxu0 0.0
  %2134 = vmatpush.msra.mxu0 0.0
  %2135 = vmatpush.msra.mxu0 0.0
  %2136 = vmatpush.msra.mxu0 %v36
  %2137 = vmatpush.msra.mxu0 %v35
  %2138 = vmatmul.f32.gmra.mxu0 %v2120
  %v2139 = vpop.f32.mrf.mxu0
  %v2140 = vadd.f32 %v2115, %v2139
  %2141 = vdwg.mxu0
  %v2142 = vadd.f32 %v2140, %v535
  %v2144 = vrot.slane %v2142, 1
  %v2145 = vperm.slane %v2142, 0
  %v2146 = vperm.slane %v2144, 0
  %v2149 = vadd.f32 %v415, %v2145
  %v2150 = vadd.f32 %v416, %v2146
  %v2151 = vtanh.pop %v2149
  %v2152 = vtanh.pop %v2150
  %v2153 = vmul.f32 %v2151, %v547
  %v2154 = vmul.f32 %v2152, %v547
  %v2155 = vsel %vm550, %v2153, 0.0
  %2156 = vadd.xlane.f32.xlu0 %v2155
  %v2157 = vpop.xlane.xlu0 %2156
  %v2158 = vsel %vm550, %v2154, 0.0
  %2159 = vadd.xlane.f32.xlu0 %v2158
  %v2160 = vpop.xlane.xlu0 %2159
  %v2163 = vperm.slane %v2157, %v560
  %v2164 = vperm.slane %v2160, %v560
  %v2167 = vmul.f32 %v51, %v2163
  %v2168 = vmul.f32 %v52, %v2164
  %v2171 = vrot.slane %v2167, 7
  %v2172 = vrot.slane %v2168, 6
  %v2173 = vsel %vm571, %v2172, %v2171
  %v2174 = vsel %vm573, %v2173, 0
  %2176 = vmatpush.msra.mxu0 0.0
  %2177 = vmatpush.msra.mxu0 0.0
  %2178 = vmatpush.msra.mxu0 0.0
  %2179 = vmatpush.msra.mxu0 0.0
  %2180 = vmatpush.msra.mxu0 0.0
  %2181 = vmatpush.msra.mxu0 0.0
  %2182 = vmatpush.msra.mxu0 0.0
  %2183 = vmatpush.msra.mxu0 0.0
  %2184 = vmatpush.msra.mxu0 0.0
  %2185 = vmatpush.msra.mxu0 0.0
  %2186 = vmatpush.msra.mxu0 0.0
  %2187 = vmatpush.msra.mxu0 0.0
  %2188 = vmatpush.msra.mxu0 0.0
  %2189 = vmatpush.msra.mxu0 0.0
  %2190 = vmatpush.msra.mxu0 0.0
  %2191 = vmatpush.msra.mxu0 %v578
  %2192 = vmatmul.f32.gmra.mxu0 %v2174
  %v2193 = vpop.f32.mrf.mxu0
  %v2194 = vadd.f32 %v567, %v2193
  %2195 = vdwg.mxu0
  %2196 = vmatpush.msra.mxu0 0.0
  %2197 = vmatpush.msra.mxu0 0.0
  %2198 = vmatpush.msra.mxu0 0.0
  %2199 = vmatpush.msra.mxu0 0.0
  %2200 = vmatpush.msra.mxu0 0.0
  %2201 = vmatpush.msra.mxu0 0.0
  %2202 = vmatpush.msra.mxu0 0.0
  %2203 = vmatpush.msra.mxu0 0.0
  %2204 = vmatpush.msra.mxu0 0.0
  %2205 = vmatpush.msra.mxu0 0.0
  %2206 = vmatpush.msra.mxu0 0.0
  %2207 = vmatpush.msra.mxu0 0.0
  %2208 = vmatpush.msra.mxu0 0.0
  %2209 = vmatpush.msra.mxu0 0.0
  %2210 = vmatpush.msra.mxu0 %v27
  %2211 = vmatpush.msra.mxu0 %v26
  %2212 = vmatmul.f32.gmra.mxu0 %v2120
  %v2213 = vpop.f32.mrf.mxu0
  %v2214 = vadd.f32 %v600, %v2213
  %2215 = vdwg.mxu0
  %v2216 = vadd.f32 %v2194, %v2214
  %v2217 = vxor.u32 %v2216, 2147483648
  %v2218 = vmul.f32 %v2217, 1.442695
  %v2219 = vpow.pop %v2218
  %v2220 = vadd.f32 %v2219, 1.0
  %v2221 = vrcp.pop %v2220
  %v2222 = vmul.f32 %v2220, %v2221
  %v2223 = vsub.f32 1.0, %v2222
  %v2224 = vmul.f32 %v2221, %v2223
  %v2225 = vadd.f32 %v2221, %v2224
  %vm2226 = vweird.f32 %v2220
  %vm2227 = vweird.f32 %v2221
  %vm2228 = vmor %vm2226, %vm2227
  %v2229 = vsel %vm2228, %v2221, %v2225
  %v2230 = vand.u32 2147483647, %v2220
  %vm2231 = vcmp.eq.f32.partialorder %v2230, 8.507059e+37
  %v2232 = vand.u32 %v2220, 2147483648
  %v2233 = vor.u32 1.1754944e-38, %v2232
  %v2234 = vsel %vm2231, %v2233, %v2229
  %v2235 = vmul.f32 1.0, %v2234
  %2237 = vrot.lane.b32.xlu0 %v2214, 96
  %v2238 = vpop.permute.xlu0 %2237
  %v2240 = vmul.f32 %v2235, %v2238
  %2242 = vrot.lane.b32.xlu0 %v2240, 32
  %v2243 = vpop.permute.xlu0 %2242
  %v2245 = vadd.f32 %v2194, %v2243
  %v2246 = vtanh.pop %v2245
  %v2247 = vsub.f32 1.0, %v2235
  %2249 = vrot.lane.b32.xlu0 %v2246, 112
  %v2250 = vpop.permute.xlu0 %2249
  %v2252 = vmul.f32 %v2247, %v2250
  %v2253 = vmul.f32 %v2235, %v2026
  %v2254 = vadd.f32 %v2252, %v2253
  %2256 = vrot.lane.b32.xlu0 %v2254, 112
  %v2257 = vpop.permute.xlu0 %2256
  %v2258 = vsel %vm427, %v2257, 0
  %2260 = vmatpush.msra.mxu0 0.0
  %2261 = vmatpush.msra.mxu0 0.0
  %2262 = vmatpush.msra.mxu0 0.0
  %2263 = vmatpush.msra.mxu0 0.0
  %2264 = vmatpush.msra.mxu0 0.0
  %2265 = vmatpush.msra.mxu0 0.0
  %2266 = vmatpush.msra.mxu0 0.0
  %2267 = vmatpush.msra.mxu0 0.0
  %2268 = vmatpush.msra.mxu0 0.0
  %2269 = vmatpush.msra.mxu0 0.0
  %2270 = vmatpush.msra.mxu0 0.0
  %2271 = vmatpush.msra.mxu0 0.0
  %2272 = vmatpush.msra.mxu0 0.0
  %2273 = vmatpush.msra.mxu0 0.0
  %2274 = vmatpush.msra.mxu0 %v46
  %2275 = vmatpush.msra.mxu0 %v45
  %2276 = vmatmul.f32.gmra.mxu0 %v2258
  %v2277 = vpop.f32.mrf.mxu0
  %v2278 = vadd.f32 0.0, %v2277
  %2279 = vdwg.mxu0
  %2280 = vmatpush.msra.mxu0 0.0
  %2281 = vmatpush.msra.mxu0 0.0
  %2282 = vmatpush.msra.mxu0 0.0
  %2283 = vmatpush.msra.mxu0 0.0
  %2284 = vmatpush.msra.mxu0 0.0
  %2285 = vmatpush.msra.mxu0 0.0
  %2286 = vmatpush.msra.mxu0 0.0
  %2287 = vmatpush.msra.mxu0 0.0
  %2288 = vmatpush.msra.mxu0 0.0
  %2289 = vmatpush.msra.mxu0 0.0
  %2290 = vmatpush.msra.mxu0 0.0
  %2291 = vmatpush.msra.mxu0 0.0
  %2292 = vmatpush.msra.mxu0 0.0
  %2293 = vmatpush.msra.mxu0 0.0
  %2294 = vmatpush.msra.mxu0 %v44
  %2295 = vmatpush.msra.mxu0 %v43
  %2296 = vmatmul.f32.gmra.mxu0 %v2095
  %v2297 = vpop.f32.mrf.mxu0
  %v2298 = vadd.f32 %v2278, %v2297
  %2299 = vdwg.mxu0
  %v2300 = vperm.slane %v47, 0
  %v2301 = vadd.f32 %v2298, %v2300
  %v2302 = vperm.slane %v33, 0
  %v2304 = vsel %vm576, %v30, 0
  %2306 = vmatpush.msra.mxu0 0.0
  %2307 = vmatpush.msra.mxu0 0.0
  %2308 = vmatpush.msra.mxu0 0.0
  %2309 = vmatpush.msra.mxu0 0.0
  %2310 = vmatpush.msra.mxu0 0.0
  %2311 = vmatpush.msra.mxu0 0.0
  %2312 = vmatpush.msra.mxu0 0.0
  %2313 = vmatpush.msra.mxu0 0.0
  %2314 = vmatpush.msra.mxu0 0.0
  %2315 = vmatpush.msra.mxu0 0.0
  %2316 = vmatpush.msra.mxu0 0.0
  %2317 = vmatpush.msra.mxu0 0.0
  %2318 = vmatpush.msra.mxu0 0.0
  %2319 = vmatpush.msra.mxu0 0.0
  %2320 = vmatpush.msra.mxu0 0.0
  %2321 = vmatpush.msra.mxu0 %v2304
  %2322 = vmatmul.f32.gmra.mxu0 %v2174
  %v2323 = vpop.f32.mrf.mxu0
  %v2324 = vadd.f32 %v2302, %v2323
  %2325 = vdwg.mxu0
  %v2326 = vperm.slane %v34, 0
  %v2328 = vsel %vm427, %v2301, 0
  %2330 = vmatpush.msra.mxu0 0.0
  %2331 = vmatpush.msra.mxu0 0.0
  %2332 = vmatpush.msra.mxu0 0.0
  %2333 = vmatpush.msra.mxu0 0.0
  %2334 = vmatpush.msra.mxu0 0.0
  %2335 = vmatpush.msra.mxu0 0.0
  %2336 = vmatpush.msra.mxu0 0.0
  %2337 = vmatpush.msra.mxu0 0.0
  %2338 = vmatpush.msra.mxu0 0.0
  %2339 = vmatpush.msra.mxu0 0.0
  %2340 = vmatpush.msra.mxu0 0.0
  %2341 = vmatpush.msra.mxu0 0.0
  %2342 = vmatpush.msra.mxu0 0.0
  %2343 = vmatpush.msra.mxu0 0.0
  %2344 = vmatpush.msra.mxu0 %v32
  %2345 = vmatpush.msra.mxu0 %v31
  %2346 = vmatmul.f32.gmra.mxu0 %v2328
  %v2347 = vpop.f32.mrf.mxu0
  %v2348 = vadd.f32 %v2326, %v2347
  %2349 = vdwg.mxu0
  %v2350 = vadd.f32 %v2324, %v2348
  %v2351 = vxor.u32 %v2350, 2147483648
  %v2352 = vmul.f32 %v2351, 1.442695
  %v2353 = vpow.pop %v2352
  %v2354 = vadd.f32 %v2353, 1.0
  %v2355 = vrcp.pop %v2354
  %v2356 = vmul.f32 %v2354, %v2355
  %v2357 = vsub.f32 1.0, %v2356
  %v2358 = vmul.f32 %v2355, %v2357
  %v2359 = vadd.f32 %v2355, %v2358
  %vm2360 = vweird.f32 %v2354
  %vm2361 = vweird.f32 %v2355
  %vm2362 = vmor %vm2360, %vm2361
  %v2363 = vsel %vm2362, %v2355, %v2359
  %v2364 = vand.u32 2147483647, %v2354
  %vm2365 = vcmp.eq.f32.partialorder %v2364, 8.507059e+37
  %v2366 = vand.u32 %v2354, 2147483648
  %v2367 = vor.u32 1.1754944e-38, %v2366
  %v2368 = vsel %vm2365, %v2367, %v2363
  %v2369 = vmul.f32 1.0, %v2368
  %2371 = vrot.lane.b32.xlu0 %v2348, 96
  %v2372 = vpop.permute.xlu0 %2371
  %v2374 = vmul.f32 %v2369, %v2372
  %2376 = vrot.lane.b32.xlu0 %v2374, 32
  %v2377 = vpop.permute.xlu0 %2376
  %v2379 = vadd.f32 %v2324, %v2377
  %v2380 = vtanh.pop %v2379
  %v2381 = vsub.f32 1.0, %v2369
  %2383 = vrot.lane.b32.xlu0 %v2380, 112
  %v2384 = vpop.permute.xlu0 %2383
  %v2386 = vmul.f32 %v2381, %v2384
  %2387 = vrot.lane.b32.xlu0 %v2301, 16
  %v2388 = vpop.permute.xlu0 %2387
  %v2390 = vmul.f32 %v2369, %v2388
  %v2391 = vadd.f32 %v2386, %v2390
  %v2392 = vperm.slane %v50, 0
  %2394 = vrot.lane.b32.xlu0 %v2391, 112
  %v2395 = vpop.permute.xlu0 %2394
  %v2396 = vsel %vm427, %v2395, 0
  %2398 = vmatpush.msra.mxu0 0.0
  %2399 = vmatpush.msra.mxu0 0.0
  %2400 = vmatpush.msra.mxu0 0.0
  %2401 = vmatpush.msra.mxu0 0.0
  %2402 = vmatpush.msra.mxu0 0.0
  %2403 = vmatpush.msra.mxu0 0.0
  %2404 = vmatpush.msra.mxu0 0.0
  %2405 = vmatpush.msra.mxu0 0.0
  %2406 = vmatpush.msra.mxu0 0.0
  %2407 = vmatpush.msra.mxu0 0.0
  %2408 = vmatpush.msra.mxu0 0.0
  %2409 = vmatpush.msra.mxu0 0.0
  %2410 = vmatpush.msra.mxu0 0.0
  %2411 = vmatpush.msra.mxu0 0.0
  %2412 = vmatpush.msra.mxu0 %v49
  %2413 = vmatpush.msra.mxu0 %v48
  %2414 = vmatmul.f32.gmra.mxu0 %v2396
  %v2415 = vpop.f32.mrf.mxu0
  %v2416 = vadd.f32 %v2392, %v2415
  %2417 = vdwg.mxu0
  %v2418 = vxor.u32 %v2416, 2147483648
  %v2419 = vmul.f32 %v2418, 1.442695
  %v2420 = vpow.pop %v2419
  %v2421 = vadd.f32 %v2420, 1.0
  %v2422 = vrcp.pop %v2421
  %v2423 = vmul.f32 %v2421, %v2422
  %v2424 = vsub.f32 1.0, %v2423
  %v2425 = vmul.f32 %v2422, %v2424
  %v2426 = vadd.f32 %v2422, %v2425
  %vm2427 = vweird.f32 %v2421
  %vm2428 = vweird.f32 %v2422
  %vm2429 = vmor %vm2427, %vm2428
  %v2430 = vsel %vm2429, %v2422, %v2426
  %v2431 = vand.u32 2147483647, %v2421
  %vm2432 = vcmp.eq.f32.partialorder %v2431, 8.507059e+37
  %v2433 = vand.u32 %v2421, 2147483648
  %v2434 = vor.u32 1.1754944e-38, %v2433
  %v2435 = vsel %vm2432, %v2434, %v2430
  %v2436 = vmul.f32 1.0, %v2435
  %vm2437 = vcmask 1024
  %2438 = vst.msk [vmem:[%s5] sm:$0x3] %vm2437, %v2436
  // Predicated region
  $region22: #{forward.1} parent=0 // pred_check
    _
  $region23: #{forward.1} parent=0 // pred_check_branch
    %2440 = sbr.rel (0) target = $region25
  $region24: #{forward.1} parent=0 // pred_region
    _
  $region25: #{forward.1} parent=0 // pred_fallthru
    _
  // Predicated region
  $region26: #{forward.1} parent=0 // pred_check
    _
  $region27: #{forward.1} parent=0 // pred_check_branch
    %2442 = sbr.rel (0) target = $region29
  $region28: #{forward.1} parent=0 // pred_region
    _
  $region29: #{forward.1} parent=0 // pred_fallthru
    _

</llo_original>
